<compile_context>
chip_gen: v7x
topology: tpu7x:2x2x1
jax: 0.10.0
libtpu: 0.0.40
codegen_flags: <defaults>
</compile_context>

<pallas_src>
import functools

import jax
import jax.numpy as jnp
from jax.experimental import pallas as pl
from jax.experimental.pallas import tpu as pltpu


# ----------------------------------------------------------------------------
# Fused forward kernel
# ----------------------------------------------------------------------------
def _fused_forward_kernel(
        # graph data (scores oriented (dst, src))
        x_ref, adj_ref, ea_ref,
        # flat per-(layer,edge_dim,head) Aeh scalars (SMEM)
        aeh_ref,
        # consolidated GAT parameters (VMEM)
        w_ref, avb_ref,
        # readout / FFN parameters
        pool_ref, epool_ref, eat_ref, ffn_ref,
        # output
        o_ref,
        *, edge_dim, layer_cfgs, aeh_offsets, h_max, ffn_dims, ffn_rows):

    # ---- hoisted once, shared by all three GAT layers ----
    mask = adj_ref[...] > 0.0                                 # (Ndst, Nsrc)
    neg_big = jnp.float32(-1e30)
    ea_tiles = [ea_ref[d] for d in range(edge_dim)]           # edge_dim x (Ndst, Nsrc)

    def gat_layer(chunks, l, heads, C, concat):
        off = aeh_offsets[l]
        # all Aeh scalars for this layer read from SMEM once (flat [off + d*H + h])
        aeh = [aeh_ref[off + k] for k in range(edge_dim * heads)]
        Fc = chunks[0].shape[1]

        head_outs = []
        for h in range(heads):
            idx = l * h_max + h
            # per-head xh via split-row matmul over the previous layer's
            # per-head chunks (no lane-offset column slices anywhere)
            xh_h = jnp.dot(chunks[0], w_ref[idx, 0:Fc, 0:C],
                           preferred_element_type=jnp.float32)            # (N, C)
            for k in range(1, len(chunks)):
                xh_h = xh_h + jnp.dot(chunks[k],
                                      w_ref[idx, k * Fc:(k + 1) * Fc, 0:C],
                                      preferred_element_type=jnp.float32)

            att_src = avb_ref[idx, 0:1, 0:C]                  # (1, C)
            att_dst = avb_ref[idx, 1:2, 0:C]                  # (1, C)
            # a_src as a (1, Nsrc) row, a_dst as an (Ndst, 1) column
            a_src = jax.lax.dot_general(att_src, xh_h, (((1,), (1,)), ((), ())),
                                        preferred_element_type=jnp.float32)
            a_dst = jax.lax.dot_general(xh_h, att_dst, (((1,), (1,)), ((), ())),
                                        preferred_element_type=jnp.float32)

            # edge-attribute attention term (lin_edge folded with att_edge)
            # TODO(synk): at realistic N fold this reduction over edge_dim into
            # an MXU contraction on the streamed (edge_dim, Tdst, Tsrc) slab.
            ae = aeh[h] * ea_tiles[0]
            for d in range(1, edge_dim):
                ae = ae + aeh[d * heads + h] * ea_tiles[d]    # (Ndst, Nsrc)

            # scores[i, j] = a_dst[i] + a_src[j] + a_edge[i, j]
            s = a_dst + a_src + ae
            s = jnp.maximum(s, 0.2 * s)                       # LeakyReLU(0.2)
            s = jnp.where(mask, s, neg_big)
            m = jnp.max(s, axis=-1, keepdims=True)            # (Ndst, 1)
            p = jnp.where(mask, jnp.exp(s - m), 0.0)          # exp of masked scores
            # Self-loops guarantee >=1 unmasked source per destination, so the
            # denominator is strictly positive (no epsilon needed).
            inv = pl.reciprocal(jnp.sum(p, axis=-1, keepdims=True), approx=True)
            alpha = p * inv                                   # softmax over src, per dst

            # out[i, c] = sum_j alpha[i, j] * xh_h[j, c]  -- plain matmul
            out_h = jnp.dot(alpha, xh_h, preferred_element_type=jnp.float32)
            head_outs.append(out_h)

        if concat:
            # bias + ReLU per head; chunks stay separate (no partial stores,
            # no lane-dim concat) and feed the next layer's split matmul.
            return [jnp.maximum(head_outs[h] + avb_ref[l * h_max + h, 2:3, 0:C], 0.0)
                    for h in range(heads)]
        out = head_outs[0]
        for t in head_outs[1:]:
            out = out + t
        out = out * (1.0 / heads) + avb_ref[l * h_max, 2:3, 0:C]
        return [jnp.maximum(out, 0.0)]                        # ReLU after every conv

    chunks = [x_ref[...]]
    for l, (heads, C, concat) in enumerate(layer_cfgs):
        chunks = gat_layer(chunks, l, heads, C, concat)

    # IdenticalPool: node embeddings pass through unchanged into the readout.
    h_nodes = chunks[0]                                       # (N, D); last layer concat=False

    # global_mean_pool(post_conv, batch)
    readout = jnp.dot(pool_ref[...], h_nodes,
                      preferred_element_type=jnp.float32)     # (G, D)
    # scatter_add of edge_attr[:, :-1] grouped by batch[src]
    og = jnp.dot(epool_ref[...], eat_ref[...],
                 preferred_element_type=jnp.float32)          # (G, edge_dim-1)
    sumsq = jnp.sum(og * og, axis=1, keepdims=True)
    og_n = og * jax.lax.rsqrt(jnp.maximum(sumsq, 1e-24))      # F.normalize(p=2, dim=1)

    # FFN head from the packed parameter slab (8-row-aligned sections)
    d_last, one_gram, d_mid, ncls = ffn_dims
    r_b1, r_w2, r_b2 = ffn_rows
    wf1a = ffn_ref[0:d_last, :]                               # (d_last, d_mid)
    wf1b = ffn_ref[d_last:d_last + one_gram, :]               # (one_gram, d_mid)
    bf1 = ffn_ref[r_b1:r_b1 + 1, :]                           # (1, d_mid)
    wf2 = ffn_ref[r_w2:r_w2 + d_mid, 0:ncls]                  # (d_mid, ncls)
    bf2 = ffn_ref[r_b2:r_b2 + 1, 0:ncls]                      # (1, ncls)

    # Linear on concat([readout, og_n]) == split matmul (mathematically identical)
    hid = (jnp.dot(readout, wf1a, preferred_element_type=jnp.float32)
           + jnp.dot(og_n, wf1b, preferred_element_type=jnp.float32)
           + bf1)
    hid = jnp.maximum(hid, 0.0)
    # TODO(synk): nn.Dropout is identity in eval mode; training-mode dropout not implemented.
    logits = jnp.dot(hid, wf2, preferred_element_type=jnp.float32) + bf2
    m = jnp.max(logits, axis=1, keepdims=True)
    e = jnp.exp(logits - m)
    o_ref[...] = e / jnp.sum(e, axis=1, keepdims=True)        # Softmax(dim=1), exact rows


# ----------------------------------------------------------------------------
# Wrapper: one pallas_call for the whole forward pass
# ----------------------------------------------------------------------------
def gat_mlp_forward(x, adjT, eaT, aeh_all, w_all, avb_all,
                    pool_mat, epool_mat, ea_trunc, ffn_pack,
                    *, layer_cfgs, aeh_offsets, h_max, ffn_dims, ffn_rows):
    G = pool_mat.shape[0]
    ncls = ffn_dims[3]
    edge_dim = eaT.shape[0]

    def vspec(a):
        nd = a.ndim
        return pl.BlockSpec(a.shape, lambda i: (0,) * nd)

    smem_spec = pl.BlockSpec(memory_space=pltpu.MemorySpace.SMEM)

    args = [x, adjT, eaT, aeh_all, w_all, avb_all,
            pool_mat, epool_mat, ea_trunc, ffn_pack]
    specs = [vspec(x), vspec(adjT), vspec(eaT), smem_spec, vspec(w_all),
             vspec(avb_all), vspec(pool_mat), vspec(epool_mat),
             vspec(ea_trunc), vspec(ffn_pack)]

    kern = functools.partial(_fused_forward_kernel,
                             edge_dim=edge_dim,
                             layer_cfgs=tuple(layer_cfgs),
                             aeh_offsets=tuple(aeh_offsets),
                             h_max=h_max,
                             ffn_dims=tuple(ffn_dims),
                             ffn_rows=tuple(ffn_rows))
    return pl.pallas_call(
        kern,
        out_shape=jax.ShapeDtypeStruct((G, ncls), jnp.float32),
        grid=(1,),
        in_specs=specs,
        out_specs=pl.BlockSpec((G, ncls), lambda i: (0, 0)),
        compiler_params=pltpu.CompilerParams(
            dimension_semantics=("arbitrary",),
            # above default scoped limits on all gens, below v7x's 64 MiB physical
            vmem_limit_bytes=48 * 1024 * 1024),
    )(*args)


# ----------------------------------------------------------------------------
# Deterministic parameter init (GATConv shapes)
# ----------------------------------------------------------------------------
def init_gat_params(key, f_in, heads, out_ch, edge_dim, concat):
    k = jax.random.split(key, 5)
    HC = heads * out_ch
    W = jax.random.normal(k[0], (f_in, HC), jnp.float32) * 0.2     # lin_src == lin_dst
    att_src = jax.random.normal(k[1], (heads, out_ch), jnp.float32) * 0.2
    att_dst = jax.random.normal(k[2], (heads, out_ch), jnp.float32) * 0.2
    att_edge = jax.random.normal(k[3], (heads, out_ch), jnp.float32) * 0.2
    W_edge = jax.random.normal(k[4], (edge_dim, HC), jnp.float32) * 0.2
    # lin_edge folded with att_edge: Aeh[d, h] = W_edge[d, h*C:(h+1)*C] @ att_edge[h]
    Aeh = jnp.stack([W_edge[:, h * out_ch:(h + 1) * out_ch] @ att_edge[h]
                     for h in range(heads)], axis=1)               # (edge_dim, heads)
    out_dim = HC if concat else out_ch
    bias = jnp.zeros((out_dim,), jnp.float32)
    return dict(W=W, att_src=att_src, att_dst=att_dst, Aeh=Aeh, bias=bias)


# ----------------------------------------------------------------------------
# Main
# ----------------------------------------------------------------------------
if __name__ == "__main__":
    key = jax.random.PRNGKey(0)
    N = 16
    dim_node = 8
    dim_hidden = [16, 16, 8]
    heads = 2
    edge_dim = 5
    num_classes = 3

    kx, ke, kp1, kp2, kp3, kf1, kf2 = jax.random.split(key, 7)

    # graph: 2 graphs of 8 nodes each, ring + chord edges (no self loops)
    x = jax.random.normal(kx, (N, dim_node), jnp.float32)
    batch = jnp.array([0] * 8 + [1] * 8, jnp.int32)
    src_l, dst_l = [], []
    for g in range(2):
        base = g * 8
        for i in range(8):
            src_l += [base + i, base + i]
            dst_l += [base + (i + 1) % 8, base + (i + 3) % 8]
    src = jnp.array(src_l, jnp.int32)
    dst = jnp.array(dst_l, jnp.int32)
    E = int(src.shape[0])
    edge_attr = jax.random.uniform(ke, (E, edge_dim), jnp.float32)

    # --- glue: densify graph in (dst, src) orientation, GATConv self-loops
    #     (fill_value='mean'); transposes done here are free ---
    adjT = jnp.zeros((N, N), jnp.float32).at[dst, src].set(1.0)        # [dst, src]
    deg_in = jnp.zeros((N,), jnp.float32).at[dst].add(1.0)
    sum_in = jnp.zeros((N, edge_dim), jnp.float32).at[dst].add(edge_attr)
    loop_attr = sum_in / jnp.maximum(deg_in, 1.0)[:, None]
    ea_ds = jnp.zeros((N, N, edge_dim), jnp.float32).at[dst, src].set(edge_attr)
    ii = jnp.arange(N)
    adjT = adjT.at[ii, ii].set(1.0)
    ea_ds = ea_ds.at[ii, ii].set(loop_attr)
    eaT = jnp.transpose(ea_ds, (2, 0, 1))                             # (edge_dim, dst, src)

    # --- glue: pooling matrices (mean pool over nodes, scatter_add over edges) ---
    G = int(batch.max()) + 1
    onehot = (batch[None, :] == jnp.arange(G)[:, None]).astype(jnp.float32)       # (G, N)
    pool_mat = onehot / jnp.sum(onehot, axis=1, keepdims=True)
    edge_batch = batch[src]
    epool_mat = (edge_batch[None, :] == jnp.arange(G)[:, None]).astype(jnp.float32)  # (G, E)

    # --- parameters ---
    p1 = init_gat_params(kp1, dim_node, heads, dim_hidden[0], edge_dim, concat=True)
    p2 = init_gat_params(kp2, dim_hidden[0] * heads, heads, dim_hidden[1], edge_dim, concat=True)
    p3 = init_gat_params(kp3, dim_hidden[1] * heads, 1, dim_hidden[2], edge_dim, concat=False)
    layers = [p1, p2, p3]
    layer_cfgs = [(heads, dim_hidden[0], True),
                  (heads, dim_hidden[1], True),
                  (1, dim_hidden[2], False)]

    # --- consolidate GAT parameters into 3 arrays (per-head blocks, no
    #     lane-offset slices needed in-kernel) ---
    L = len(layers)
    Hm = max(h for h, _, _ in layer_cfgs)
    Fm = max(p["W"].shape[0] for p in layers)
    Cm = max(c for _, c, _ in layer_cfgs)
    w_all = jnp.zeros((L * Hm, Fm, Cm), jnp.float32)
    avb_all = jnp.zeros((L * Hm, 3, Cm), jnp.float32)   # rows: att_src, att_dst, bias
    aeh_parts, aeh_offsets, off = [], [], 0
    for l, (p, (H, C, concat)) in enumerate(zip(layers, layer_cfgs)):
        F_in = p["W"].shape[0]
        for h in range(H):
            idx = l * Hm + h
            w_all = w_all.at[idx, 0:F_in, 0:C].set(p["W"][:, h * C:(h + 1) * C])
            avb_all = avb_all.at[idx, 0, 0:C].set(p["att_src"][h])
            avb_all = avb_all.at[idx, 1, 0:C].set(p["att_dst"][h])
            if concat:
                avb_all = avb_all.at[idx, 2, 0:C].set(p["bias"][h * C:(h + 1) * C])
        if not concat:
            avb_all = avb_all.at[l * Hm, 2, 0:C].set(p["bias"][0:C])
        aeh_offsets.append(off)
        aeh_parts.append(p["Aeh"].reshape(-1))          # flat layout [d*H + h]
        off += edge_dim * H
    aeh_all = jnp.concatenate(aeh_parts)                # (25,) -> SMEM

    # --- consolidate the FFN tail into one 8-row-aligned pack ---
    one_gram_dim = edge_dim - 1
    d_last = dim_hidden[-1]
    d_in = d_last + one_gram_dim
    d_mid = d_in // 2
    wf1 = jax.random.normal(kf1, (d_in, d_mid), jnp.float32) * 0.3
    bf1 = jnp.zeros((d_mid,), jnp.float32)
    wf2 = jax.random.normal(kf2, (d_mid, num_classes), jnp.float32) * 0.3
    bf2 = jnp.zeros((num_classes,), jnp.float32)
    R_B1, R_W2, R_B2 = 16, 24, 32
    ffn_pack = jnp.zeros((40, d_mid), jnp.float32)
    ffn_pack = ffn_pack.at[0:d_in, :].set(wf1)
    ffn_pack = ffn_pack.at[R_B1, :].set(bf1)
    ffn_pack = ffn_pack.at[R_W2:R_W2 + d_mid, 0:num_classes].set(wf2)
    ffn_pack = ffn_pack.at[R_B2, 0:num_classes].set(bf2)

    # --- fused forward pass: one kernel launch, 10 consolidated inputs ---
    out = gat_mlp_forward(
        x, adjT, eaT, aeh_all, w_all, avb_all,
        pool_mat, epool_mat, edge_attr[:, :-1], ffn_pack,
        layer_cfgs=tuple(layer_cfgs), aeh_offsets=tuple(aeh_offsets),
        h_max=Hm, ffn_dims=(d_last, one_gram_dim, d_mid, num_classes),
        ffn_rows=(R_B1, R_W2, R_B2))
    out = jax.block_until_ready(out)

    assert out.shape == (G, num_classes)
    assert bool(jnp.all(jnp.isfinite(out)))
    assert bool(jnp.allclose(jnp.sum(out, axis=1), 1.0, atol=1e-4))  # softmax rows
    print("KERNEL_OK")
</pallas_src>

<mosaic_0001>
module attributes {stable_mosaic.version = 11 : i64} {
  func.func @_fused_forward_kernel(%arg0: i32, %arg1: memref<16x8xf32, #tpu.memory_space<vmem>>, %arg2: memref<16x16xf32, #tpu.memory_space<vmem>>, %arg3: memref<5x16x16xf32, #tpu.memory_space<vmem>>, %arg4: memref<25xf32, #tpu.memory_space<smem>>, %arg5: memref<6x32x16xf32, #tpu.memory_space<vmem>>, %arg6: memref<6x3x16xf32, #tpu.memory_space<vmem>>, %arg7: memref<2x16xf32, #tpu.memory_space<vmem>>, %arg8: memref<2x32xf32, #tpu.memory_space<vmem>>, %arg9: memref<32x4xf32, #tpu.memory_space<vmem>>, %arg10: memref<40x6xf32, #tpu.memory_space<vmem>>, %arg11: memref<2x3xf32, #tpu.memory_space<vmem>>) attributes {dimension_semantics = [#tpu.dimension_semantics<arbitrary>], iteration_bounds = array<i64: 1>, scalar_prefetch = 0 : i64, scratch_operands = 0 : i64, tpu.core_type = #tpu.core_type<tc>, window_params = [{pipeline_mode = #tpu.pipeline_mode<synchronous>, transform_indices = @transform_0, window_bounds = array<i64: 16, 8>}, {pipeline_mode = #tpu.pipeline_mode<synchronous>, transform_indices = @transform_1, window_bounds = array<i64: 16, 16>}, {pipeline_mode = #tpu.pipeline_mode<synchronous>, transform_indices = @transform_2, window_bounds = array<i64: 5, 16, 16>}, {transform_indices = @transform_3, window_bounds = array<i64: 25>}, {pipeline_mode = #tpu.pipeline_mode<synchronous>, transform_indices = @transform_4, window_bounds = array<i64: 6, 32, 16>}, {pipeline_mode = #tpu.pipeline_mode<synchronous>, transform_indices = @transform_5, window_bounds = array<i64: 6, 3, 16>}, {pipeline_mode = #tpu.pipeline_mode<synchronous>, transform_indices = @transform_6, window_bounds = array<i64: 2, 16>}, {pipeline_mode = #tpu.pipeline_mode<synchronous>, transform_indices = @transform_7, window_bounds = array<i64: 2, 32>}, {pipeline_mode = #tpu.pipeline_mode<synchronous>, transform_indices = @transform_8, window_bounds = array<i64: 32, 4>}, {pipeline_mode = #tpu.pipeline_mode<synchronous>, transform_indices = @transform_9, window_bounds = array<i64: 40, 6>}, {pipeline_mode = #tpu.pipeline_mode<synchronous>, transform_indices = @transform_10, window_bounds = array<i64: 2, 3>}]} {
    %c0 = arith.constant 0 : index
    %c0_0 = arith.constant 0 : index
    %0 = vector.load %arg2[%c0, %c0_0] : memref<16x16xf32, #tpu.memory_space<vmem>>, vector<16x16xf32>
    %cst = arith.constant 0.000000e+00 : f32
    %1 = vector.broadcast %cst : f32 to vector<16x16xf32>
    %2 = arith.cmpf ogt, %0, %1 : vector<16x16xf32>
    %c0_1 = arith.constant 0 : index
    %c0_2 = arith.constant 0 : index
    %c0_3 = arith.constant 0 : index
    %3 = vector.load %arg3[%c0_1, %c0_2, %c0_3] : memref<5x16x16xf32, #tpu.memory_space<vmem>>, vector<1x16x16xf32>
    %4 = vector.shape_cast %3 : vector<1x16x16xf32> to vector<16x16xf32>
    %c1 = arith.constant 1 : index
    %c0_4 = arith.constant 0 : index
    %c0_5 = arith.constant 0 : index
    %5 = vector.load %arg3[%c1, %c0_4, %c0_5] : memref<5x16x16xf32, #tpu.memory_space<vmem>>, vector<1x16x16xf32>
    %6 = vector.shape_cast %5 : vector<1x16x16xf32> to vector<16x16xf32>
    %c2 = arith.constant 2 : index
    %c0_6 = arith.constant 0 : index
    %c0_7 = arith.constant 0 : index
    %7 = vector.load %arg3[%c2, %c0_6, %c0_7] : memref<5x16x16xf32, #tpu.memory_space<vmem>>, vector<1x16x16xf32>
    %8 = vector.shape_cast %7 : vector<1x16x16xf32> to vector<16x16xf32>
    %c3 = arith.constant 3 : index
    %c0_8 = arith.constant 0 : index
    %c0_9 = arith.constant 0 : index
    %9 = vector.load %arg3[%c3, %c0_8, %c0_9] : memref<5x16x16xf32, #tpu.memory_space<vmem>>, vector<1x16x16xf32>
    %10 = vector.shape_cast %9 : vector<1x16x16xf32> to vector<16x16xf32>
    %c4 = arith.constant 4 : index
    %c0_10 = arith.constant 0 : index
    %c0_11 = arith.constant 0 : index
    %11 = vector.load %arg3[%c4, %c0_10, %c0_11] : memref<5x16x16xf32, #tpu.memory_space<vmem>>, vector<1x16x16xf32>
    %12 = vector.shape_cast %11 : vector<1x16x16xf32> to vector<16x16xf32>
    %c0_12 = arith.constant 0 : index
    %c0_13 = arith.constant 0 : index
    %13 = vector.load %arg1[%c0_12, %c0_13] : memref<16x8xf32, #tpu.memory_space<vmem>>, vector<16x8xf32>
    %c0_14 = arith.constant 0 : index
    %14 = memref.load %arg4[%c0_14] : memref<25xf32, #tpu.memory_space<smem>>
    %c1_15 = arith.constant 1 : index
    %15 = memref.load %arg4[%c1_15] : memref<25xf32, #tpu.memory_space<smem>>
    %c2_16 = arith.constant 2 : index
    %16 = memref.load %arg4[%c2_16] : memref<25xf32, #tpu.memory_space<smem>>
    %c3_17 = arith.constant 3 : index
    %17 = memref.load %arg4[%c3_17] : memref<25xf32, #tpu.memory_space<smem>>
    %c4_18 = arith.constant 4 : index
    %18 = memref.load %arg4[%c4_18] : memref<25xf32, #tpu.memory_space<smem>>
    %c5 = arith.constant 5 : index
    %19 = memref.load %arg4[%c5] : memref<25xf32, #tpu.memory_space<smem>>
    %c6 = arith.constant 6 : index
    %20 = memref.load %arg4[%c6] : memref<25xf32, #tpu.memory_space<smem>>
    %c7 = arith.constant 7 : index
    %21 = memref.load %arg4[%c7] : memref<25xf32, #tpu.memory_space<smem>>
    %c8 = arith.constant 8 : index
    %22 = memref.load %arg4[%c8] : memref<25xf32, #tpu.memory_space<smem>>
    %c9 = arith.constant 9 : index
    %23 = memref.load %arg4[%c9] : memref<25xf32, #tpu.memory_space<smem>>
    %c0_19 = arith.constant 0 : index
    %c0_20 = arith.constant 0 : index
    %c0_21 = arith.constant 0 : index
    %24 = vector.load %arg5[%c0_19, %c0_20, %c0_21] : memref<6x32x16xf32, #tpu.memory_space<vmem>>, vector<1x8x16xf32>
    %25 = vector.shape_cast %24 : vector<1x8x16xf32> to vector<8x16xf32>
    %cst_22 = arith.constant dense<0.000000e+00> : vector<16x16xf32>
    %26 = tpu.matmul %13, %25, %cst_22 {dimension_numbers = #tpu.dot_dimension_numbers<[1], [0], [0], [1], [0, 0, 1, 1], [], []>} : vector<16x8xf32>, vector<8x16xf32>, vector<16x16xf32> -> vector<16x16xf32>
    %c0_23 = arith.constant 0 : index
    %c0_24 = arith.constant 0 : index
    %c0_25 = arith.constant 0 : index
    %27 = vector.load %arg6[%c0_23, %c0_24, %c0_25] : memref<6x3x16xf32, #tpu.memory_space<vmem>>, vector<1x1x16xf32>
    %28 = vector.shape_cast %27 : vector<1x1x16xf32> to vector<1x16xf32>
    %c0_26 = arith.constant 0 : index
    %c1_27 = arith.constant 1 : index
    %c0_28 = arith.constant 0 : index
    %29 = vector.load %arg6[%c0_26, %c1_27, %c0_28] : memref<6x3x16xf32, #tpu.memory_space<vmem>>, vector<1x1x16xf32>
    %30 = vector.shape_cast %29 : vector<1x1x16xf32> to vector<1x16xf32>
    %cst_29 = arith.constant dense<0.000000e+00> : vector<1x16xf32>
    %31 = tpu.matmul %28, %26, %cst_29 {dimension_numbers = #tpu.dot_dimension_numbers<[1], [1], [0], [0], [0, 0, 1, 0], [], []>} : vector<1x16xf32>, vector<16x16xf32>, vector<1x16xf32> -> vector<1x16xf32>
    %cst_30 = arith.constant dense<0.000000e+00> : vector<16x1xf32>
    %32 = tpu.matmul %26, %30, %cst_30 {dimension_numbers = #tpu.dot_dimension_numbers<[1], [1], [0], [0], [0, 0, 1, 0], [], []>} : vector<16x16xf32>, vector<1x16xf32>, vector<16x1xf32> -> vector<16x1xf32>
    %33 = vector.broadcast %14 : f32 to vector<16x16xf32>
    %34 = arith.mulf %33, %4 : vector<16x16xf32>
    %35 = vector.broadcast %16 : f32 to vector<16x16xf32>
    %36 = arith.mulf %35, %6 : vector<16x16xf32>
    %37 = arith.addf %34, %36 : vector<16x16xf32>
    %38 = vector.broadcast %18 : f32 to vector<16x16xf32>
    %39 = arith.mulf %38, %8 : vector<16x16xf32>
    %40 = arith.addf %37, %39 : vector<16x16xf32>
    %41 = vector.broadcast %20 : f32 to vector<16x16xf32>
    %42 = arith.mulf %41, %10 : vector<16x16xf32>
    %43 = arith.addf %40, %42 : vector<16x16xf32>
    %44 = vector.broadcast %22 : f32 to vector<16x16xf32>
    %45 = arith.mulf %44, %12 : vector<16x16xf32>
    %46 = arith.addf %43, %45 : vector<16x16xf32>
    %47 = vector.broadcast %32 : vector<16x1xf32> to vector<16x16xf32>
    %48 = vector.broadcast %31 : vector<1x16xf32> to vector<16x16xf32>
    %49 = arith.addf %47, %48 : vector<16x16xf32>
    %50 = arith.addf %49, %46 : vector<16x16xf32>
    %cst_31 = arith.constant 2.000000e-01 : f32
    %51 = vector.broadcast %cst_31 : f32 to vector<16x16xf32>
    %52 = arith.mulf %51, %50 : vector<16x16xf32>
    %53 = arith.maximumf %50, %52 : vector<16x16xf32>
    %cst_32 = arith.constant -1.000000e+30 : f32
    %54 = vector.broadcast %cst_32 : f32 to vector<16x16xf32>
    %55 = arith.select %2, %53, %54 : vector<16x16xi1>, vector<16x16xf32>
    %cst_33 = arith.constant dense<0xFF800000> : vector<16xf32>
    %56 = vector.multi_reduction <maximumf>, %55, %cst_33 [1] : vector<16x16xf32> to vector<16xf32>
    %57 = vector.shape_cast %56 : vector<16xf32> to vector<16x1xf32>
    %58 = vector.broadcast %57 : vector<16x1xf32> to vector<16x16xf32>
    %59 = arith.subf %55, %58 : vector<16x16xf32>
    %60 = math.exp %59 : vector<16x16xf32>
    %cst_34 = arith.constant 0.000000e+00 : f32
    %61 = vector.broadcast %cst_34 : f32 to vector<16x16xf32>
    %62 = arith.select %2, %60, %61 : vector<16x16xi1>, vector<16x16xf32>
    %cst_35 = arith.constant dense<0.000000e+00> : vector<16xf32>
    %63 = vector.multi_reduction <add>, %62, %cst_35 [1] : vector<16x16xf32> to vector<16xf32>
    %64 = vector.shape_cast %63 : vector<16xf32> to vector<16x1xf32>
    %65 = tpu.reciprocal %64 {approx = true} : vector<16x1xf32> -> vector<16x1xf32>
    %66 = vector.broadcast %65 : vector<16x1xf32> to vector<16x16xf32>
    %67 = arith.mulf %62, %66 : vector<16x16xf32>
    %cst_36 = arith.constant dense<0.000000e+00> : vector<16x16xf32>
    %68 = tpu.matmul %67, %26, %cst_36 {dimension_numbers = #tpu.dot_dimension_numbers<[1], [0], [0], [1], [0, 0, 1, 1], [], []>} : vector<16x16xf32>, vector<16x16xf32>, vector<16x16xf32> -> vector<16x16xf32>
    %c1_37 = arith.constant 1 : index
    %c0_38 = arith.constant 0 : index
    %c0_39 = arith.constant 0 : index
    %69 = vector.load %arg5[%c1_37, %c0_38, %c0_39] : memref<6x32x16xf32, #tpu.memory_space<vmem>>, vector<1x8x16xf32>
    %70 = vector.shape_cast %69 : vector<1x8x16xf32> to vector<8x16xf32>
    %cst_40 = arith.constant dense<0.000000e+00> : vector<16x16xf32>
    %71 = tpu.matmul %13, %70, %cst_40 {dimension_numbers = #tpu.dot_dimension_numbers<[1], [0], [0], [1], [0, 0, 1, 1], [], []>} : vector<16x8xf32>, vector<8x16xf32>, vector<16x16xf32> -> vector<16x16xf32>
    %c1_41 = arith.constant 1 : index
    %c0_42 = arith.constant 0 : index
    %c0_43 = arith.constant 0 : index
    %72 = vector.load %arg6[%c1_41, %c0_42, %c0_43] : memref<6x3x16xf32, #tpu.memory_space<vmem>>, vector<1x1x16xf32>
    %73 = vector.shape_cast %72 : vector<1x1x16xf32> to vector<1x16xf32>
    %c1_44 = arith.constant 1 : index
    %c1_45 = arith.constant 1 : index
    %c0_46 = arith.constant 0 : index
    %74 = vector.load %arg6[%c1_44, %c1_45, %c0_46] : memref<6x3x16xf32, #tpu.memory_space<vmem>>, vector<1x1x16xf32>
    %75 = vector.shape_cast %74 : vector<1x1x16xf32> to vector<1x16xf32>
    %cst_47 = arith.constant dense<0.000000e+00> : vector<1x16xf32>
    %76 = tpu.matmul %73, %71, %cst_47 {dimension_numbers = #tpu.dot_dimension_numbers<[1], [1], [0], [0], [0, 0, 1, 0], [], []>} : vector<1x16xf32>, vector<16x16xf32>, vector<1x16xf32> -> vector<1x16xf32>
    %cst_48 = arith.constant dense<0.000000e+00> : vector<16x1xf32>
    %77 = tpu.matmul %71, %75, %cst_48 {dimension_numbers = #tpu.dot_dimension_numbers<[1], [1], [0], [0], [0, 0, 1, 0], [], []>} : vector<16x16xf32>, vector<1x16xf32>, vector<16x1xf32> -> vector<16x1xf32>
    %78 = vector.broadcast %15 : f32 to vector<16x16xf32>
    %79 = arith.mulf %78, %4 : vector<16x16xf32>
    %80 = vector.broadcast %17 : f32 to vector<16x16xf32>
    %81 = arith.mulf %80, %6 : vector<16x16xf32>
    %82 = arith.addf %79, %81 : vector<16x16xf32>
    %83 = vector.broadcast %19 : f32 to vector<16x16xf32>
    %84 = arith.mulf %83, %8 : vector<16x16xf32>
    %85 = arith.addf %82, %84 : vector<16x16xf32>
    %86 = vector.broadcast %21 : f32 to vector<16x16xf32>
    %87 = arith.mulf %86, %10 : vector<16x16xf32>
    %88 = arith.addf %85, %87 : vector<16x16xf32>
    %89 = vector.broadcast %23 : f32 to vector<16x16xf32>
    %90 = arith.mulf %89, %12 : vector<16x16xf32>
    %91 = arith.addf %88, %90 : vector<16x16xf32>
    %92 = vector.broadcast %77 : vector<16x1xf32> to vector<16x16xf32>
    %93 = vector.broadcast %76 : vector<1x16xf32> to vector<16x16xf32>
    %94 = arith.addf %92, %93 : vector<16x16xf32>
    %95 = arith.addf %94, %91 : vector<16x16xf32>
    %cst_49 = arith.constant 2.000000e-01 : f32
    %96 = vector.broadcast %cst_49 : f32 to vector<16x16xf32>
    %97 = arith.mulf %96, %95 : vector<16x16xf32>
    %98 = arith.maximumf %95, %97 : vector<16x16xf32>
    %cst_50 = arith.constant -1.000000e+30 : f32
    %99 = vector.broadcast %cst_50 : f32 to vector<16x16xf32>
    %100 = arith.select %2, %98, %99 : vector<16x16xi1>, vector<16x16xf32>
    %cst_51 = arith.constant dense<0xFF800000> : vector<16xf32>
    %101 = vector.multi_reduction <maximumf>, %100, %cst_51 [1] : vector<16x16xf32> to vector<16xf32>
    %102 = vector.shape_cast %101 : vector<16xf32> to vector<16x1xf32>
    %103 = vector.broadcast %102 : vector<16x1xf32> to vector<16x16xf32>
    %104 = arith.subf %100, %103 : vector<16x16xf32>
    %105 = math.exp %104 : vector<16x16xf32>
    %cst_52 = arith.constant 0.000000e+00 : f32
    %106 = vector.broadcast %cst_52 : f32 to vector<16x16xf32>
    %107 = arith.select %2, %105, %106 : vector<16x16xi1>, vector<16x16xf32>
    %cst_53 = arith.constant dense<0.000000e+00> : vector<16xf32>
    %108 = vector.multi_reduction <add>, %107, %cst_53 [1] : vector<16x16xf32> to vector<16xf32>
    %109 = vector.shape_cast %108 : vector<16xf32> to vector<16x1xf32>
    %110 = tpu.reciprocal %109 {approx = true} : vector<16x1xf32> -> vector<16x1xf32>
    %111 = vector.broadcast %110 : vector<16x1xf32> to vector<16x16xf32>
    %112 = arith.mulf %107, %111 : vector<16x16xf32>
    %cst_54 = arith.constant dense<0.000000e+00> : vector<16x16xf32>
    %113 = tpu.matmul %112, %71, %cst_54 {dimension_numbers = #tpu.dot_dimension_numbers<[1], [0], [0], [1], [0, 0, 1, 1], [], []>} : vector<16x16xf32>, vector<16x16xf32>, vector<16x16xf32> -> vector<16x16xf32>
    %c0_55 = arith.constant 0 : index
    %c2_56 = arith.constant 2 : index
    %c0_57 = arith.constant 0 : index
    %114 = vector.load %arg6[%c0_55, %c2_56, %c0_57] : memref<6x3x16xf32, #tpu.memory_space<vmem>>, vector<1x1x16xf32>
    %115 = vector.shape_cast %114 : vector<1x1x16xf32> to vector<1x16xf32>
    %116 = vector.broadcast %115 : vector<1x16xf32> to vector<16x16xf32>
    %117 = arith.addf %68, %116 : vector<16x16xf32>
    %cst_58 = arith.constant 0.000000e+00 : f32
    %118 = vector.broadcast %cst_58 : f32 to vector<16x16xf32>
    %119 = arith.maximumf %117, %118 : vector<16x16xf32>
    %c1_59 = arith.constant 1 : index
    %c2_60 = arith.constant 2 : index
    %c0_61 = arith.constant 0 : index
    %120 = vector.load %arg6[%c1_59, %c2_60, %c0_61] : memref<6x3x16xf32, #tpu.memory_space<vmem>>, vector<1x1x16xf32>
    %121 = vector.shape_cast %120 : vector<1x1x16xf32> to vector<1x16xf32>
    %122 = vector.broadcast %121 : vector<1x16xf32> to vector<16x16xf32>
    %123 = arith.addf %113, %122 : vector<16x16xf32>
    %cst_62 = arith.constant 0.000000e+00 : f32
    %124 = vector.broadcast %cst_62 : f32 to vector<16x16xf32>
    %125 = arith.maximumf %123, %124 : vector<16x16xf32>
    %c10 = arith.constant 10 : index
    %126 = memref.load %arg4[%c10] : memref<25xf32, #tpu.memory_space<smem>>
    %c11 = arith.constant 11 : index
    %127 = memref.load %arg4[%c11] : memref<25xf32, #tpu.memory_space<smem>>
    %c12 = arith.constant 12 : index
    %128 = memref.load %arg4[%c12] : memref<25xf32, #tpu.memory_space<smem>>
    %c13 = arith.constant 13 : index
    %129 = memref.load %arg4[%c13] : memref<25xf32, #tpu.memory_space<smem>>
    %c14 = arith.constant 14 : index
    %130 = memref.load %arg4[%c14] : memref<25xf32, #tpu.memory_space<smem>>
    %c15 = arith.constant 15 : index
    %131 = memref.load %arg4[%c15] : memref<25xf32, #tpu.memory_space<smem>>
    %c16 = arith.constant 16 : index
    %132 = memref.load %arg4[%c16] : memref<25xf32, #tpu.memory_space<smem>>
    %c17 = arith.constant 17 : index
    %133 = memref.load %arg4[%c17] : memref<25xf32, #tpu.memory_space<smem>>
    %c18 = arith.constant 18 : index
    %134 = memref.load %arg4[%c18] : memref<25xf32, #tpu.memory_space<smem>>
    %c19 = arith.constant 19 : index
    %135 = memref.load %arg4[%c19] : memref<25xf32, #tpu.memory_space<smem>>
    %c2_63 = arith.constant 2 : index
    %c0_64 = arith.constant 0 : index
    %c0_65 = arith.constant 0 : index
    %136 = vector.load %arg5[%c2_63, %c0_64, %c0_65] : memref<6x32x16xf32, #tpu.memory_space<vmem>>, vector<1x16x16xf32>
    %137 = vector.shape_cast %136 : vector<1x16x16xf32> to vector<16x16xf32>
    %cst_66 = arith.constant dense<0.000000e+00> : vector<16x16xf32>
    %138 = tpu.matmul %119, %137, %cst_66 {dimension_numbers = #tpu.dot_dimension_numbers<[1], [0], [0], [1], [0, 0, 1, 1], [], []>} : vector<16x16xf32>, vector<16x16xf32>, vector<16x16xf32> -> vector<16x16xf32>
    %c2_67 = arith.constant 2 : index
    %c16_68 = arith.constant 16 : index
    %c0_69 = arith.constant 0 : index
    %139 = vector.load %arg5[%c2_67, %c16_68, %c0_69] : memref<6x32x16xf32, #tpu.memory_space<vmem>>, vector<1x16x16xf32>
    %140 = vector.shape_cast %139 : vector<1x16x16xf32> to vector<16x16xf32>
    %cst_70 = arith.constant dense<0.000000e+00> : vector<16x16xf32>
    %141 = tpu.matmul %125, %140, %cst_70 {dimension_numbers = #tpu.dot_dimension_numbers<[1], [0], [0], [1], [0, 0, 1, 1], [], []>} : vector<16x16xf32>, vector<16x16xf32>, vector<16x16xf32> -> vector<16x16xf32>
    %142 = arith.addf %138, %141 : vector<16x16xf32>
    %c2_71 = arith.constant 2 : index
    %c0_72 = arith.constant 0 : index
    %c0_73 = arith.constant 0 : index
    %143 = vector.load %arg6[%c2_71, %c0_72, %c0_73] : memref<6x3x16xf32, #tpu.memory_space<vmem>>, vector<1x1x16xf32>
    %144 = vector.shape_cast %143 : vector<1x1x16xf32> to vector<1x16xf32>
    %c2_74 = arith.constant 2 : index
    %c1_75 = arith.constant 1 : index
    %c0_76 = arith.constant 0 : index
    %145 = vector.load %arg6[%c2_74, %c1_75, %c0_76] : memref<6x3x16xf32, #tpu.memory_space<vmem>>, vector<1x1x16xf32>
    %146 = vector.shape_cast %145 : vector<1x1x16xf32> to vector<1x16xf32>
    %cst_77 = arith.constant dense<0.000000e+00> : vector<1x16xf32>
    %147 = tpu.matmul %144, %142, %cst_77 {dimension_numbers = #tpu.dot_dimension_numbers<[1], [1], [0], [0], [0, 0, 1, 0], [], []>} : vector<1x16xf32>, vector<16x16xf32>, vector<1x16xf32> -> vector<1x16xf32>
    %cst_78 = arith.constant dense<0.000000e+00> : vector<16x1xf32>
    %148 = tpu.matmul %142, %146, %cst_78 {dimension_numbers = #tpu.dot_dimension_numbers<[1], [1], [0], [0], [0, 0, 1, 0], [], []>} : vector<16x16xf32>, vector<1x16xf32>, vector<16x1xf32> -> vector<16x1xf32>
    %149 = vector.broadcast %126 : f32 to vector<16x16xf32>
    %150 = arith.mulf %149, %4 : vector<16x16xf32>
    %151 = vector.broadcast %128 : f32 to vector<16x16xf32>
    %152 = arith.mulf %151, %6 : vector<16x16xf32>
    %153 = arith.addf %150, %152 : vector<16x16xf32>
    %154 = vector.broadcast %130 : f32 to vector<16x16xf32>
    %155 = arith.mulf %154, %8 : vector<16x16xf32>
    %156 = arith.addf %153, %155 : vector<16x16xf32>
    %157 = vector.broadcast %132 : f32 to vector<16x16xf32>
    %158 = arith.mulf %157, %10 : vector<16x16xf32>
    %159 = arith.addf %156, %158 : vector<16x16xf32>
    %160 = vector.broadcast %134 : f32 to vector<16x16xf32>
    %161 = arith.mulf %160, %12 : vector<16x16xf32>
    %162 = arith.addf %159, %161 : vector<16x16xf32>
    %163 = vector.broadcast %148 : vector<16x1xf32> to vector<16x16xf32>
    %164 = vector.broadcast %147 : vector<1x16xf32> to vector<16x16xf32>
    %165 = arith.addf %163, %164 : vector<16x16xf32>
    %166 = arith.addf %165, %162 : vector<16x16xf32>
    %cst_79 = arith.constant 2.000000e-01 : f32
    %167 = vector.broadcast %cst_79 : f32 to vector<16x16xf32>
    %168 = arith.mulf %167, %166 : vector<16x16xf32>
    %169 = arith.maximumf %166, %168 : vector<16x16xf32>
    %cst_80 = arith.constant -1.000000e+30 : f32
    %170 = vector.broadcast %cst_80 : f32 to vector<16x16xf32>
    %171 = arith.select %2, %169, %170 : vector<16x16xi1>, vector<16x16xf32>
    %cst_81 = arith.constant dense<0xFF800000> : vector<16xf32>
    %172 = vector.multi_reduction <maximumf>, %171, %cst_81 [1] : vector<16x16xf32> to vector<16xf32>
    %173 = vector.shape_cast %172 : vector<16xf32> to vector<16x1xf32>
    %174 = vector.broadcast %173 : vector<16x1xf32> to vector<16x16xf32>
    %175 = arith.subf %171, %174 : vector<16x16xf32>
    %176 = math.exp %175 : vector<16x16xf32>
    %cst_82 = arith.constant 0.000000e+00 : f32
    %177 = vector.broadcast %cst_82 : f32 to vector<16x16xf32>
    %178 = arith.select %2, %176, %177 : vector<16x16xi1>, vector<16x16xf32>
    %cst_83 = arith.constant dense<0.000000e+00> : vector<16xf32>
    %179 = vector.multi_reduction <add>, %178, %cst_83 [1] : vector<16x16xf32> to vector<16xf32>
    %180 = vector.shape_cast %179 : vector<16xf32> to vector<16x1xf32>
    %181 = tpu.reciprocal %180 {approx = true} : vector<16x1xf32> -> vector<16x1xf32>
    %182 = vector.broadcast %181 : vector<16x1xf32> to vector<16x16xf32>
    %183 = arith.mulf %178, %182 : vector<16x16xf32>
    %cst_84 = arith.constant dense<0.000000e+00> : vector<16x16xf32>
    %184 = tpu.matmul %183, %142, %cst_84 {dimension_numbers = #tpu.dot_dimension_numbers<[1], [0], [0], [1], [0, 0, 1, 1], [], []>} : vector<16x16xf32>, vector<16x16xf32>, vector<16x16xf32> -> vector<16x16xf32>
    %c3_85 = arith.constant 3 : index
    %c0_86 = arith.constant 0 : index
    %c0_87 = arith.constant 0 : index
    %185 = vector.load %arg5[%c3_85, %c0_86, %c0_87] : memref<6x32x16xf32, #tpu.memory_space<vmem>>, vector<1x16x16xf32>
    %186 = vector.shape_cast %185 : vector<1x16x16xf32> to vector<16x16xf32>
    %cst_88 = arith.constant dense<0.000000e+00> : vector<16x16xf32>
    %187 = tpu.matmul %119, %186, %cst_88 {dimension_numbers = #tpu.dot_dimension_numbers<[1], [0], [0], [1], [0, 0, 1, 1], [], []>} : vector<16x16xf32>, vector<16x16xf32>, vector<16x16xf32> -> vector<16x16xf32>
    %c3_89 = arith.constant 3 : index
    %c16_90 = arith.constant 16 : index
    %c0_91 = arith.constant 0 : index
    %188 = vector.load %arg5[%c3_89, %c16_90, %c0_91] : memref<6x32x16xf32, #tpu.memory_space<vmem>>, vector<1x16x16xf32>
    %189 = vector.shape_cast %188 : vector<1x16x16xf32> to vector<16x16xf32>
    %cst_92 = arith.constant dense<0.000000e+00> : vector<16x16xf32>
    %190 = tpu.matmul %125, %189, %cst_92 {dimension_numbers = #tpu.dot_dimension_numbers<[1], [0], [0], [1], [0, 0, 1, 1], [], []>} : vector<16x16xf32>, vector<16x16xf32>, vector<16x16xf32> -> vector<16x16xf32>
    %191 = arith.addf %187, %190 : vector<16x16xf32>
    %c3_93 = arith.constant 3 : index
    %c0_94 = arith.constant 0 : index
    %c0_95 = arith.constant 0 : index
    %192 = vector.load %arg6[%c3_93, %c0_94, %c0_95] : memref<6x3x16xf32, #tpu.memory_space<vmem>>, vector<1x1x16xf32>
    %193 = vector.shape_cast %192 : vector<1x1x16xf32> to vector<1x16xf32>
    %c3_96 = arith.constant 3 : index
    %c1_97 = arith.constant 1 : index
    %c0_98 = arith.constant 0 : index
    %194 = vector.load %arg6[%c3_96, %c1_97, %c0_98] : memref<6x3x16xf32, #tpu.memory_space<vmem>>, vector<1x1x16xf32>
    %195 = vector.shape_cast %194 : vector<1x1x16xf32> to vector<1x16xf32>
    %cst_99 = arith.constant dense<0.000000e+00> : vector<1x16xf32>
    %196 = tpu.matmul %193, %191, %cst_99 {dimension_numbers = #tpu.dot_dimension_numbers<[1], [1], [0], [0], [0, 0, 1, 0], [], []>} : vector<1x16xf32>, vector<16x16xf32>, vector<1x16xf32> -> vector<1x16xf32>
    %cst_100 = arith.constant dense<0.000000e+00> : vector<16x1xf32>
    %197 = tpu.matmul %191, %195, %cst_100 {dimension_numbers = #tpu.dot_dimension_numbers<[1], [1], [0], [0], [0, 0, 1, 0], [], []>} : vector<16x16xf32>, vector<1x16xf32>, vector<16x1xf32> -> vector<16x1xf32>
    %198 = vector.broadcast %127 : f32 to vector<16x16xf32>
    %199 = arith.mulf %198, %4 : vector<16x16xf32>
    %200 = vector.broadcast %129 : f32 to vector<16x16xf32>
    %201 = arith.mulf %200, %6 : vector<16x16xf32>
    %202 = arith.addf %199, %201 : vector<16x16xf32>
    %203 = vector.broadcast %131 : f32 to vector<16x16xf32>
    %204 = arith.mulf %203, %8 : vector<16x16xf32>
    %205 = arith.addf %202, %204 : vector<16x16xf32>
    %206 = vector.broadcast %133 : f32 to vector<16x16xf32>
    %207 = arith.mulf %206, %10 : vector<16x16xf32>
    %208 = arith.addf %205, %207 : vector<16x16xf32>
    %209 = vector.broadcast %135 : f32 to vector<16x16xf32>
    %210 = arith.mulf %209, %12 : vector<16x16xf32>
    %211 = arith.addf %208, %210 : vector<16x16xf32>
    %212 = vector.broadcast %197 : vector<16x1xf32> to vector<16x16xf32>
    %213 = vector.broadcast %196 : vector<1x16xf32> to vector<16x16xf32>
    %214 = arith.addf %212, %213 : vector<16x16xf32>
    %215 = arith.addf %214, %211 : vector<16x16xf32>
    %cst_101 = arith.constant 2.000000e-01 : f32
    %216 = vector.broadcast %cst_101 : f32 to vector<16x16xf32>
    %217 = arith.mulf %216, %215 : vector<16x16xf32>
    %218 = arith.maximumf %215, %217 : vector<16x16xf32>
    %cst_102 = arith.constant -1.000000e+30 : f32
    %219 = vector.broadcast %cst_102 : f32 to vector<16x16xf32>
    %220 = arith.select %2, %218, %219 : vector<16x16xi1>, vector<16x16xf32>
    %cst_103 = arith.constant dense<0xFF800000> : vector<16xf32>
    %221 = vector.multi_reduction <maximumf>, %220, %cst_103 [1] : vector<16x16xf32> to vector<16xf32>
    %222 = vector.shape_cast %221 : vector<16xf32> to vector<16x1xf32>
    %223 = vector.broadcast %222 : vector<16x1xf32> to vector<16x16xf32>
    %224 = arith.subf %220, %223 : vector<16x16xf32>
    %225 = math.exp %224 : vector<16x16xf32>
    %cst_104 = arith.constant 0.000000e+00 : f32
    %226 = vector.broadcast %cst_104 : f32 to vector<16x16xf32>
    %227 = arith.select %2, %225, %226 : vector<16x16xi1>, vector<16x16xf32>
    %cst_105 = arith.constant dense<0.000000e+00> : vector<16xf32>
    %228 = vector.multi_reduction <add>, %227, %cst_105 [1] : vector<16x16xf32> to vector<16xf32>
    %229 = vector.shape_cast %228 : vector<16xf32> to vector<16x1xf32>
    %230 = tpu.reciprocal %229 {approx = true} : vector<16x1xf32> -> vector<16x1xf32>
    %231 = vector.broadcast %230 : vector<16x1xf32> to vector<16x16xf32>
    %232 = arith.mulf %227, %231 : vector<16x16xf32>
    %cst_106 = arith.constant dense<0.000000e+00> : vector<16x16xf32>
    %233 = tpu.matmul %232, %191, %cst_106 {dimension_numbers = #tpu.dot_dimension_numbers<[1], [0], [0], [1], [0, 0, 1, 1], [], []>} : vector<16x16xf32>, vector<16x16xf32>, vector<16x16xf32> -> vector<16x16xf32>
    %c2_107 = arith.constant 2 : index
    %c2_108 = arith.constant 2 : index
    %c0_109 = arith.constant 0 : index
    %234 = vector.load %arg6[%c2_107, %c2_108, %c0_109] : memref<6x3x16xf32, #tpu.memory_space<vmem>>, vector<1x1x16xf32>
    %235 = vector.shape_cast %234 : vector<1x1x16xf32> to vector<1x16xf32>
    %236 = vector.broadcast %235 : vector<1x16xf32> to vector<16x16xf32>
    %237 = arith.addf %184, %236 : vector<16x16xf32>
    %cst_110 = arith.constant 0.000000e+00 : f32
    %238 = vector.broadcast %cst_110 : f32 to vector<16x16xf32>
    %239 = arith.maximumf %237, %238 : vector<16x16xf32>
    %c3_111 = arith.constant 3 : index
    %c2_112 = arith.constant 2 : index
    %c0_113 = arith.constant 0 : index
    %240 = vector.load %arg6[%c3_111, %c2_112, %c0_113] : memref<6x3x16xf32, #tpu.memory_space<vmem>>, vector<1x1x16xf32>
    %241 = vector.shape_cast %240 : vector<1x1x16xf32> to vector<1x16xf32>
    %242 = vector.broadcast %241 : vector<1x16xf32> to vector<16x16xf32>
    %243 = arith.addf %233, %242 : vector<16x16xf32>
    %cst_114 = arith.constant 0.000000e+00 : f32
    %244 = vector.broadcast %cst_114 : f32 to vector<16x16xf32>
    %245 = arith.maximumf %243, %244 : vector<16x16xf32>
    %c20 = arith.constant 20 : index
    %246 = memref.load %arg4[%c20] : memref<25xf32, #tpu.memory_space<smem>>
    %c21 = arith.constant 21 : index
    %247 = memref.load %arg4[%c21] : memref<25xf32, #tpu.memory_space<smem>>
    %c22 = arith.constant 22 : index
    %248 = memref.load %arg4[%c22] : memref<25xf32, #tpu.memory_space<smem>>
    %c23 = arith.constant 23 : index
    %249 = memref.load %arg4[%c23] : memref<25xf32, #tpu.memory_space<smem>>
    %c24 = arith.constant 24 : index
    %250 = memref.load %arg4[%c24] : memref<25xf32, #tpu.memory_space<smem>>
    %c4_115 = arith.constant 4 : index
    %c0_116 = arith.constant 0 : index
    %c0_117 = arith.constant 0 : index
    %251 = vector.load %arg5[%c4_115, %c0_116, %c0_117] : memref<6x32x16xf32, #tpu.memory_space<vmem>>, vector<1x16x8xf32>
    %252 = vector.shape_cast %251 : vector<1x16x8xf32> to vector<16x8xf32>
    %cst_118 = arith.constant dense<0.000000e+00> : vector<16x8xf32>
    %253 = tpu.matmul %239, %252, %cst_118 {dimension_numbers = #tpu.dot_dimension_numbers<[1], [0], [0], [1], [0, 0, 1, 1], [], []>} : vector<16x16xf32>, vector<16x8xf32>, vector<16x8xf32> -> vector<16x8xf32>
    %c4_119 = arith.constant 4 : index
    %c16_120 = arith.constant 16 : index
    %c0_121 = arith.constant 0 : index
    %254 = vector.load %arg5[%c4_119, %c16_120, %c0_121] : memref<6x32x16xf32, #tpu.memory_space<vmem>>, vector<1x16x8xf32>
    %255 = vector.shape_cast %254 : vector<1x16x8xf32> to vector<16x8xf32>
    %cst_122 = arith.constant dense<0.000000e+00> : vector<16x8xf32>
    %256 = tpu.matmul %245, %255, %cst_122 {dimension_numbers = #tpu.dot_dimension_numbers<[1], [0], [0], [1], [0, 0, 1, 1], [], []>} : vector<16x16xf32>, vector<16x8xf32>, vector<16x8xf32> -> vector<16x8xf32>
    %257 = arith.addf %253, %256 : vector<16x8xf32>
    %c4_123 = arith.constant 4 : index
    %c0_124 = arith.constant 0 : index
    %c0_125 = arith.constant 0 : index
    %258 = vector.load %arg6[%c4_123, %c0_124, %c0_125] : memref<6x3x16xf32, #tpu.memory_space<vmem>>, vector<1x1x8xf32>
    %259 = vector.shape_cast %258 : vector<1x1x8xf32> to vector<1x8xf32>
    %c4_126 = arith.constant 4 : index
    %c1_127 = arith.constant 1 : index
    %c0_128 = arith.constant 0 : index
    %260 = vector.load %arg6[%c4_126, %c1_127, %c0_128] : memref<6x3x16xf32, #tpu.memory_space<vmem>>, vector<1x1x8xf32>
    %261 = vector.shape_cast %260 : vector<1x1x8xf32> to vector<1x8xf32>
    %cst_129 = arith.constant dense<0.000000e+00> : vector<1x16xf32>
    %262 = tpu.matmul %259, %257, %cst_129 {dimension_numbers = #tpu.dot_dimension_numbers<[1], [1], [0], [0], [0, 0, 1, 0], [], []>} : vector<1x8xf32>, vector<16x8xf32>, vector<1x16xf32> -> vector<1x16xf32>
    %cst_130 = arith.constant dense<0.000000e+00> : vector<16x1xf32>
    %263 = tpu.matmul %257, %261, %cst_130 {dimension_numbers = #tpu.dot_dimension_numbers<[1], [1], [0], [0], [0, 0, 1, 0], [], []>} : vector<16x8xf32>, vector<1x8xf32>, vector<16x1xf32> -> vector<16x1xf32>
    %264 = vector.broadcast %246 : f32 to vector<16x16xf32>
    %265 = arith.mulf %264, %4 : vector<16x16xf32>
    %266 = vector.broadcast %247 : f32 to vector<16x16xf32>
    %267 = arith.mulf %266, %6 : vector<16x16xf32>
    %268 = arith.addf %265, %267 : vector<16x16xf32>
    %269 = vector.broadcast %248 : f32 to vector<16x16xf32>
    %270 = arith.mulf %269, %8 : vector<16x16xf32>
    %271 = arith.addf %268, %270 : vector<16x16xf32>
    %272 = vector.broadcast %249 : f32 to vector<16x16xf32>
    %273 = arith.mulf %272, %10 : vector<16x16xf32>
    %274 = arith.addf %271, %273 : vector<16x16xf32>
    %275 = vector.broadcast %250 : f32 to vector<16x16xf32>
    %276 = arith.mulf %275, %12 : vector<16x16xf32>
    %277 = arith.addf %274, %276 : vector<16x16xf32>
    %278 = vector.broadcast %263 : vector<16x1xf32> to vector<16x16xf32>
    %279 = vector.broadcast %262 : vector<1x16xf32> to vector<16x16xf32>
    %280 = arith.addf %278, %279 : vector<16x16xf32>
    %281 = arith.addf %280, %277 : vector<16x16xf32>
    %cst_131 = arith.constant 2.000000e-01 : f32
    %282 = vector.broadcast %cst_131 : f32 to vector<16x16xf32>
    %283 = arith.mulf %282, %281 : vector<16x16xf32>
    %284 = arith.maximumf %281, %283 : vector<16x16xf32>
    %cst_132 = arith.constant -1.000000e+30 : f32
    %285 = vector.broadcast %cst_132 : f32 to vector<16x16xf32>
    %286 = arith.select %2, %284, %285 : vector<16x16xi1>, vector<16x16xf32>
    %cst_133 = arith.constant dense<0xFF800000> : vector<16xf32>
    %287 = vector.multi_reduction <maximumf>, %286, %cst_133 [1] : vector<16x16xf32> to vector<16xf32>
    %288 = vector.shape_cast %287 : vector<16xf32> to vector<16x1xf32>
    %289 = vector.broadcast %288 : vector<16x1xf32> to vector<16x16xf32>
    %290 = arith.subf %286, %289 : vector<16x16xf32>
    %291 = math.exp %290 : vector<16x16xf32>
    %cst_134 = arith.constant 0.000000e+00 : f32
    %292 = vector.broadcast %cst_134 : f32 to vector<16x16xf32>
    %293 = arith.select %2, %291, %292 : vector<16x16xi1>, vector<16x16xf32>
    %cst_135 = arith.constant dense<0.000000e+00> : vector<16xf32>
    %294 = vector.multi_reduction <add>, %293, %cst_135 [1] : vector<16x16xf32> to vector<16xf32>
    %295 = vector.shape_cast %294 : vector<16xf32> to vector<16x1xf32>
    %296 = tpu.reciprocal %295 {approx = true} : vector<16x1xf32> -> vector<16x1xf32>
    %297 = vector.broadcast %296 : vector<16x1xf32> to vector<16x16xf32>
    %298 = arith.mulf %293, %297 : vector<16x16xf32>
    %cst_136 = arith.constant dense<0.000000e+00> : vector<16x8xf32>
    %299 = tpu.matmul %298, %257, %cst_136 {dimension_numbers = #tpu.dot_dimension_numbers<[1], [0], [0], [1], [0, 0, 1, 1], [], []>} : vector<16x16xf32>, vector<16x8xf32>, vector<16x8xf32> -> vector<16x8xf32>
    %cst_137 = arith.constant 1.000000e+00 : f32
    %300 = vector.broadcast %cst_137 : f32 to vector<16x8xf32>
    %301 = arith.mulf %299, %300 : vector<16x8xf32>
    %c4_138 = arith.constant 4 : index
    %c2_139 = arith.constant 2 : index
    %c0_140 = arith.constant 0 : index
    %302 = vector.load %arg6[%c4_138, %c2_139, %c0_140] : memref<6x3x16xf32, #tpu.memory_space<vmem>>, vector<1x1x8xf32>
    %303 = vector.shape_cast %302 : vector<1x1x8xf32> to vector<1x8xf32>
    %304 = vector.broadcast %303 : vector<1x8xf32> to vector<16x8xf32>
    %305 = arith.addf %301, %304 : vector<16x8xf32>
    %cst_141 = arith.constant 0.000000e+00 : f32
    %306 = vector.broadcast %cst_141 : f32 to vector<16x8xf32>
    %307 = arith.maximumf %305, %306 : vector<16x8xf32>
    %c0_142 = arith.constant 0 : index
    %c0_143 = arith.constant 0 : index
    %308 = vector.load %arg7[%c0_142, %c0_143] : memref<2x16xf32, #tpu.memory_space<vmem>>, vector<2x16xf32>
    %cst_144 = arith.constant dense<0.000000e+00> : vector<2x8xf32>
    %309 = tpu.matmul %308, %307, %cst_144 {dimension_numbers = #tpu.dot_dimension_numbers<[1], [0], [0], [1], [0, 0, 1, 1], [], []>} : vector<2x16xf32>, vector<16x8xf32>, vector<2x8xf32> -> vector<2x8xf32>
    %c0_145 = arith.constant 0 : index
    %c0_146 = arith.constant 0 : index
    %310 = vector.load %arg8[%c0_145, %c0_146] : memref<2x32xf32, #tpu.memory_space<vmem>>, vector<2x32xf32>
    %c0_147 = arith.constant 0 : index
    %c0_148 = arith.constant 0 : index
    %311 = vector.load %arg9[%c0_147, %c0_148] : memref<32x4xf32, #tpu.memory_space<vmem>>, vector<32x4xf32>
    %cst_149 = arith.constant dense<0.000000e+00> : vector<2x4xf32>
    %312 = tpu.matmul %310, %311, %cst_149 {dimension_numbers = #tpu.dot_dimension_numbers<[1], [0], [0], [1], [0, 0, 1, 1], [], []>} : vector<2x32xf32>, vector<32x4xf32>, vector<2x4xf32> -> vector<2x4xf32>
    %313 = arith.mulf %312, %312 : vector<2x4xf32>
    %cst_150 = arith.constant dense<0.000000e+00> : vector<2xf32>
    %314 = vector.multi_reduction <add>, %313, %cst_150 [1] : vector<2x4xf32> to vector<2xf32>
    %315 = vector.shape_cast %314 : vector<2xf32> to vector<2x1xf32>
    %cst_151 = arith.constant 1.000000e-24 : f32
    %316 = vector.broadcast %cst_151 : f32 to vector<2x1xf32>
    %317 = arith.maximumf %315, %316 : vector<2x1xf32>
    %318 = math.rsqrt %317 : vector<2x1xf32>
    %319 = vector.broadcast %318 : vector<2x1xf32> to vector<2x4xf32>
    %320 = arith.mulf %312, %319 : vector<2x4xf32>
    %c0_152 = arith.constant 0 : index
    %c0_153 = arith.constant 0 : index
    %321 = vector.load %arg10[%c0_152, %c0_153] : memref<40x6xf32, #tpu.memory_space<vmem>>, vector<8x6xf32>
    %c8_154 = arith.constant 8 : index
    %c0_155 = arith.constant 0 : index
    %322 = vector.load %arg10[%c8_154, %c0_155] : memref<40x6xf32, #tpu.memory_space<vmem>>, vector<4x6xf32>
    %c16_156 = arith.constant 16 : index
    %c0_157 = arith.constant 0 : index
    %323 = vector.load %arg10[%c16_156, %c0_157] : memref<40x6xf32, #tpu.memory_space<vmem>>, vector<1x6xf32>
    %c24_158 = arith.constant 24 : index
    %c0_159 = arith.constant 0 : index
    %324 = vector.load %arg10[%c24_158, %c0_159] : memref<40x6xf32, #tpu.memory_space<vmem>>, vector<6x3xf32>
    %c32 = arith.constant 32 : index
    %c0_160 = arith.constant 0 : index
    %325 = vector.load %arg10[%c32, %c0_160] : memref<40x6xf32, #tpu.memory_space<vmem>>, vector<1x3xf32>
    %cst_161 = arith.constant dense<0.000000e+00> : vector<2x6xf32>
    %326 = tpu.matmul %309, %321, %cst_161 {dimension_numbers = #tpu.dot_dimension_numbers<[1], [0], [0], [1], [0, 0, 1, 1], [], []>} : vector<2x8xf32>, vector<8x6xf32>, vector<2x6xf32> -> vector<2x6xf32>
    %cst_162 = arith.constant dense<0.000000e+00> : vector<2x6xf32>
    %327 = tpu.matmul %320, %322, %cst_162 {dimension_numbers = #tpu.dot_dimension_numbers<[1], [0], [0], [1], [0, 0, 1, 1], [], []>} : vector<2x4xf32>, vector<4x6xf32>, vector<2x6xf32> -> vector<2x6xf32>
    %328 = arith.addf %326, %327 : vector<2x6xf32>
    %329 = vector.broadcast %323 : vector<1x6xf32> to vector<2x6xf32>
    %330 = arith.addf %328, %329 : vector<2x6xf32>
    %cst_163 = arith.constant 0.000000e+00 : f32
    %331 = vector.broadcast %cst_163 : f32 to vector<2x6xf32>
    %332 = arith.maximumf %330, %331 : vector<2x6xf32>
    %cst_164 = arith.constant dense<0.000000e+00> : vector<2x3xf32>
    %333 = tpu.matmul %332, %324, %cst_164 {dimension_numbers = #tpu.dot_dimension_numbers<[1], [0], [0], [1], [0, 0, 1, 1], [], []>} : vector<2x6xf32>, vector<6x3xf32>, vector<2x3xf32> -> vector<2x3xf32>
    %334 = vector.broadcast %325 : vector<1x3xf32> to vector<2x3xf32>
    %335 = arith.addf %333, %334 : vector<2x3xf32>
    %cst_165 = arith.constant dense<0xFF800000> : vector<2xf32>
    %336 = vector.multi_reduction <maximumf>, %335, %cst_165 [1] : vector<2x3xf32> to vector<2xf32>
    %337 = vector.shape_cast %336 : vector<2xf32> to vector<2x1xf32>
    %338 = vector.broadcast %337 : vector<2x1xf32> to vector<2x3xf32>
    %339 = arith.subf %335, %338 : vector<2x3xf32>
    %340 = math.exp %339 : vector<2x3xf32>
    %cst_166 = arith.constant dense<0.000000e+00> : vector<2xf32>
    %341 = vector.multi_reduction <add>, %340, %cst_166 [1] : vector<2x3xf32> to vector<2xf32>
    %342 = vector.shape_cast %341 : vector<2xf32> to vector<2x1xf32>
    %343 = vector.broadcast %342 : vector<2x1xf32> to vector<2x3xf32>
    %344 = arith.divf %340, %343 : vector<2x3xf32>
    %c0_167 = arith.constant 0 : index
    %c0_168 = arith.constant 0 : index
    %345 = vector.load %arg11[%c0_167, %c0_168] : memref<2x3xf32, #tpu.memory_space<vmem>>, vector<2x3xf32>
    tpu.vector_store %arg11[%c0_167, %c0_168], %344 {strides = array<i32>} : memref<2x3xf32, #tpu.memory_space<vmem>>, vector<2x3xf32>,
    return
  }
  func.func @transform_0(%arg0: i32) -> (i32, i32) {
    %c0_i32 = arith.constant 0 : i32
    %c0_i32_0 = arith.constant 0 : i32
    %c0_i32_1 = arith.constant 0 : i32
    return %c0_i32, %c0_i32_0 : i32, i32
  }
  func.func @transform_1(%arg0: i32) -> (i32, i32) {
    %c0_i32 = arith.constant 0 : i32
    %c0_i32_0 = arith.constant 0 : i32
    %c0_i32_1 = arith.constant 0 : i32
    return %c0_i32, %c0_i32_0 : i32, i32
  }
  func.func @transform_2(%arg0: i32) -> (i32, i32, i32) {
    %c0_i32 = arith.constant 0 : i32
    %c0_i32_0 = arith.constant 0 : i32
    %c0_i32_1 = arith.constant 0 : i32
    %c0_i32_2 = arith.constant 0 : i32
    return %c0_i32, %c0_i32_0, %c0_i32_1 : i32, i32, i32
  }
  func.func @transform_3(%arg0: i32) -> i32 {
    %c0_i32 = arith.constant 0 : i32
    %c0_i32_0 = arith.constant 0 : i32
    return %c0_i32 : i32
  }
  func.func @transform_4(%arg0: i32) -> (i32, i32, i32) {
    %c0_i32 = arith.constant 0 : i32
    %c0_i32_0 = arith.constant 0 : i32
    %c0_i32_1 = arith.constant 0 : i32
    %c0_i32_2 = arith.constant 0 : i32
    return %c0_i32, %c0_i32_0, %c0_i32_1 : i32, i32, i32
  }
  func.func @transform_5(%arg0: i32) -> (i32, i32, i32) {
    %c0_i32 = arith.constant 0 : i32
    %c0_i32_0 = arith.constant 0 : i32
    %c0_i32_1 = arith.constant 0 : i32
    %c0_i32_2 = arith.constant 0 : i32
    return %c0_i32, %c0_i32_0, %c0_i32_1 : i32, i32, i32
  }
  func.func @transform_6(%arg0: i32) -> (i32, i32) {
    %c0_i32 = arith.constant 0 : i32
    %c0_i32_0 = arith.constant 0 : i32
    %c0_i32_1 = arith.constant 0 : i32
    return %c0_i32, %c0_i32_0 : i32, i32
  }
  func.func @transform_7(%arg0: i32) -> (i32, i32) {
    %c0_i32 = arith.constant 0 : i32
    %c0_i32_0 = arith.constant 0 : i32
    %c0_i32_1 = arith.constant 0 : i32
    return %c0_i32, %c0_i32_0 : i32, i32
  }
  func.func @transform_8(%arg0: i32) -> (i32, i32) {
    %c0_i32 = arith.constant 0 : i32
    %c0_i32_0 = arith.constant 0 : i32
    %c0_i32_1 = arith.constant 0 : i32
    return %c0_i32, %c0_i32_0 : i32, i32
  }
  func.func @transform_9(%arg0: i32) -> (i32, i32) {
    %c0_i32 = arith.constant 0 : i32
    %c0_i32_0 = arith.constant 0 : i32
    %c0_i32_1 = arith.constant 0 : i32
    return %c0_i32, %c0_i32_0 : i32, i32
  }
  func.func @transform_10(%arg0: i32) -> (i32, i32) {
    %c0_i32 = arith.constant 0 : i32
    %c0_i32_0 = arith.constant 0 : i32
    %c0_i32_1 = arith.constant 0 : i32
    return %c0_i32, %c0_i32_0 : i32, i32
  }
}

</mosaic_0001>

<llo_original>
// kernel: tpu_custom_call.1
$region0: #{tpu_custom_call.1}
  #allocation0 [shape = 'u32[]', space=smem, size = 0x4, offset = 0x4, fixed_abs, tag = 'smem constant byte address 0x4 - core index']
  #allocation1 [shape = 'u32[144,128]{1,0:T(1,128)}', space=vmem, size = 0x12000, scoped, tag = 'internal scratch']
  %s0 = inlined_call_operand.vmem [shape: f32[16,8], index: 0, kind: input, shape index: {}]
  %s1 = inlined_call_operand.vmem [shape: f32[16,16], index: 1, kind: input, shape index: {}]
  %s2 = inlined_call_operand.vmem [shape: f32[5,16,16], index: 2, kind: input, shape index: {}]
  %s3 = inlined_call_operand.vmem [shape: f32[25], index: 3, kind: input, shape index: {}]
  %s4 = inlined_call_operand.vmem [shape: f32[6,32,16], index: 4, kind: input, shape index: {}]
  %s5 = inlined_call_operand.vmem [shape: f32[6,3,16], index: 5, kind: input, shape index: {}]
  %s6 = inlined_call_operand.vmem [shape: f32[2,16], index: 6, kind: input, shape index: {}]
  %s7 = inlined_call_operand.vmem [shape: f32[2,32], index: 7, kind: input, shape index: {}]
  %s8 = inlined_call_operand.vmem [shape: f32[32,4], index: 8, kind: input, shape index: {}]
  %s9 = inlined_call_operand.vmem [shape: f32[40,6], index: 9, kind: input, shape index: {}]
  %s10 = inlined_call_operand.hbm [shape: f32[2,3], index: 10, kind: output, shape index: {}]
  %s11 = sld [smem:[#allocation0]]
  $region54: #{tpu_custom_call.1} parent=0
    _
  %s13 = ssub.s32 1, %s11
  %s14 = scalar_select 0, %s13, %s11
  $region1: #{tpu_custom_call.1} parent=0
    #allocation2 [shape = 'u8[512]{0}', space=smem, size = 0x200, scoped, tag = 'input window, operand 3, single buffered']
    #allocation3 [shape = 's32[1]{0}', space=sflag, size = 0x4, scoped, tag = 'scoped memory for tpu_custom_call.1']
    #allocation4 [shape = 's32[1]{0}', space=sflag, size = 0x4, scoped, tag = 'scoped memory for tpu_custom_call.1']
    #allocation5 [shape = 'u8[1024]{0}', space=vmem, size = 0x400, scoped, tag = 'output window, operand 0, single buffered']
    %15 = vsyncpa [#allocation4], 0
    %16 = vsyncpa [#allocation3], 0
    // Predicated region
    $region2: #{tpu_custom_call.1} parent=1 // pred_check
      _
    $region3: #{tpu_custom_call.1} parent=1 // pred_check_branch
      %18 = sbr.rel (0) target = $region5
    $region4: #{tpu_custom_call.1} parent=1 // pred_region
      _
    $region5: #{tpu_custom_call.1} parent=1 // pred_fallthru
      _
    // Predicated region
    $region6: #{tpu_custom_call.1} parent=1 // pred_check
      _
    $region7: #{tpu_custom_call.1} parent=1 // pred_check_branch
      %20 = sbr.rel (0) target = $region9
    $region8: #{tpu_custom_call.1} parent=1 // pred_region
      _
    $region9: #{tpu_custom_call.1} parent=1 // pred_fallthru
      _
    // Predicated region
    $region10: #{tpu_custom_call.1} parent=1 // pred_check
      _
    $region11: #{tpu_custom_call.1} parent=1 // pred_check_branch
      %22 = sbr.rel (0) target = $region13
    $region12: #{tpu_custom_call.1} parent=1 // pred_region
      _
    $region13: #{tpu_custom_call.1} parent=1 // pred_fallthru
      _
    // Predicated region
    $region14: #{tpu_custom_call.1} parent=1 // pred_check
      _
    $region15: #{tpu_custom_call.1} parent=1 // pred_check_branch
      %24 = sbr.rel (0) target = $region17
    $region16: #{tpu_custom_call.1} parent=1 // pred_region
      %s26 = ssub.s32 16, 16
      %27 = vsyncadd [#allocation4], %s26
      %s29 = sshll.u32 %s3, 4
      %s30 = int_to_ptr.vmem [resolvable:$true] %s29
      %32 = dma.vmem_to_smem %s30, 16, [#allocation2], [#allocation4]
    $region17: #{tpu_custom_call.1} parent=1 // pred_fallthru
      _
    // Predicated region
    $region18: #{tpu_custom_call.1} parent=1 // pred_check
      _
    $region19: #{tpu_custom_call.1} parent=1 // pred_check_branch
      %34 = sbr.rel (0) target = $region21
    $region20: #{tpu_custom_call.1} parent=1 // pred_region
      _
    $region21: #{tpu_custom_call.1} parent=1 // pred_fallthru
      _
    // Predicated region
    $region22: #{tpu_custom_call.1} parent=1 // pred_check
      _
    $region23: #{tpu_custom_call.1} parent=1 // pred_check_branch
      %36 = sbr.rel (0) target = $region25
    $region24: #{tpu_custom_call.1} parent=1 // pred_region
      _
    $region25: #{tpu_custom_call.1} parent=1 // pred_fallthru
      _
    // Predicated region
    $region26: #{tpu_custom_call.1} parent=1 // pred_check
      _
    $region27: #{tpu_custom_call.1} parent=1 // pred_check_branch
      %38 = sbr.rel (0) target = $region29
    $region28: #{tpu_custom_call.1} parent=1 // pred_region
      _
    $region29: #{tpu_custom_call.1} parent=1 // pred_fallthru
      _
    // Predicated region
    $region30: #{tpu_custom_call.1} parent=1 // pred_check
      _
    $region31: #{tpu_custom_call.1} parent=1 // pred_check_branch
      %40 = sbr.rel (0) target = $region33
    $region32: #{tpu_custom_call.1} parent=1 // pred_region
      _
    $region33: #{tpu_custom_call.1} parent=1 // pred_fallthru
      _
    // Predicated region
    $region34: #{tpu_custom_call.1} parent=1 // pred_check
      _
    $region35: #{tpu_custom_call.1} parent=1 // pred_check_branch
      %42 = sbr.rel (0) target = $region37
    $region36: #{tpu_custom_call.1} parent=1 // pred_region
      _
    $region37: #{tpu_custom_call.1} parent=1 // pred_fallthru
      _
    // Predicated region
    $region38: #{tpu_custom_call.1} parent=1 // pred_check
      _
    $region39: #{tpu_custom_call.1} parent=1 // pred_check_branch
      %44 = sbr.rel (0) target = $region41
    $region40: #{tpu_custom_call.1} parent=1 // pred_region
      _
    $region41: #{tpu_custom_call.1} parent=1 // pred_fallthru
      _
    // Predicated region
    $region42: #{tpu_custom_call.1} parent=1 // pred_check
      _
    $region43: #{tpu_custom_call.1} parent=1 // pred_check_branch
      %46 = sbr.rel (0) target = $region45
    $region44: #{tpu_custom_call.1} parent=1 // pred_region
      %47 = dma.done [#allocation4], 16
    $region45: #{tpu_custom_call.1} parent=1 // pred_fallthru
      _
    %48 = sfence
    %v49 = vld [vmem:[%s1] sm:$0xff]
    %v50 = vld [vmem:[%s1 + $0x8] sm:$0xff]
    %vm51 = vcmp.gt.f32.partialorder %v49, 0.0
    %vm52 = vcmp.gt.f32.partialorder %v50, 0.0
    %v53 = vld [vmem:[%s2] sm:$0xff]
    %v54 = vld [vmem:[%s2 + $0x8] sm:$0xff]
    %s55 = scalar_lea.vmem %s2, 16
    %v56 = vld [vmem:[%s55] sm:$0xff]
    %v57 = vld [vmem:[%s55 + $0x8] sm:$0xff]
    %s58 = scalar_lea.vmem %s2, 32
    %v59 = vld [vmem:[%s58] sm:$0xff]
    %v60 = vld [vmem:[%s58 + $0x8] sm:$0xff]
    %s61 = scalar_lea.vmem %s2, 48
    %v62 = vld [vmem:[%s61] sm:$0xff]
    %v63 = vld [vmem:[%s61 + $0x8] sm:$0xff]
    %s64 = scalar_lea.vmem %s2, 64
    %v65 = vld [vmem:[%s64] sm:$0xff]
    %v66 = vld [vmem:[%s64 + $0x8] sm:$0xff]
    %v67 = vld [vmem:[%s0] sm:$0xff]
    %v68 = vld [vmem:[%s0 + $0x8] sm:$0xff]
    %s69 = sld [smem:[#allocation2]]
    %s70 = sld [smem:[#allocation2 + $0x1]]
    %s71 = sld [smem:[#allocation2 + $0x2]]
    %s72 = sld [smem:[#allocation2 + $0x3]]
    %s73 = sld [smem:[#allocation2 + $0x4]]
    %s74 = sld [smem:[#allocation2 + $0x5]]
    %s75 = sld [smem:[#allocation2 + $0x6]]
    %s76 = sld [smem:[#allocation2 + $0x7]]
    %s77 = sld [smem:[#allocation2 + $0x8]]
    %s78 = sld [smem:[#allocation2 + $0x9]]
    %v79 = vld [vmem:[%s4] sm:$0xff]
    %vm80 = vcmask 64512
    %v82 = vsel %vm80, %v67, 0
    %v85 = vsel %vm80, %v68, 0
    %87 = vmatprep.subr.mxu0 0.0
    %88 = vmatpush1.msra.mxu0 %v79
    %89 = vmatprep.subr.mxu0 0.0
    %90 = vmatpush1.msra.mxu0 0.0
    %91 = vmatprep.subr.mxu0 0.0
    %92 = vmatpush1.msra.mxu0 0.0
    %93 = vmatprep.subr.mxu0 0.0
    %94 = vmatpush1.msra.mxu0 0.0
    %95 = vmatprep.subr.mxu0 0.0
    %96 = vmatpush1.msra.mxu0 0.0
    %97 = vmatprep.subr.mxu0 0.0
    %98 = vmatpush1.msra.mxu0 0.0
    %99 = vmatprep.subr.mxu0 0.0
    %100 = vmatpush1.msra.mxu0 0.0
    %101 = vmatprep.subr.mxu0 0.0
    %102 = vmatpush1.msra.mxu0 0.0
    %103 = vmatprep.subr.mxu0 0.0
    %104 = vmatpush1.msra.mxu0 0.0
    %105 = vmatprep.subr.mxu0 0.0
    %106 = vmatpush1.msra.mxu0 0.0
    %107 = vmatprep.subr.mxu0 0.0
    %108 = vmatpush1.msra.mxu0 0.0
    %109 = vmatprep.subr.mxu0 0.0
    %110 = vmatpush1.msra.mxu0 0.0
    %111 = vmatprep.subr.mxu0 0.0
    %112 = vmatpush1.msra.mxu0 0.0
    %113 = vmatprep.subr.mxu0 0.0
    %114 = vmatpush1.msra.mxu0 0.0
    %115 = vmatprep.subr.mxu0 0.0
    %116 = vmatpush1.msra.mxu0 0.0
    %117 = vmatprep.subr.mxu0 0.0
    %118 = vmatpush1.msra.mxu0 0.0
    %119 = vmatprep.subr.mxu0 0.0
    %120 = vmatpush1.msra.mxu0 0.0
    %121 = vmatprep.subr.mxu0 0.0
    %122 = vmatpush1.msra.mxu0 0.0
    %123 = vmatprep.subr.mxu0 0.0
    %124 = vmatpush1.msra.mxu0 0.0
    %125 = vmatprep.subr.mxu0 0.0
    %126 = vmatpush1.msra.mxu0 0.0
    %127 = vmatprep.subr.mxu0 0.0
    %128 = vmatpush1.msra.mxu0 0.0
    %129 = vmatprep.subr.mxu0 0.0
    %130 = vmatpush1.msra.mxu0 0.0
    %131 = vmatprep.subr.mxu0 0.0
    %132 = vmatpush1.msra.mxu0 0.0
    %133 = vmatprep.subr.mxu0 0.0
    %134 = vmatpush1.msra.mxu0 0.0
    %135 = vmatprep.subr.mxu0 0.0
    %136 = vmatpush1.msra.mxu0 0.0
    %137 = vmatprep.subr.mxu0 0.0
    %138 = vmatpush1.msra.mxu0 0.0
    %139 = vmatprep.subr.mxu0 0.0
    %140 = vmatpush1.msra.mxu0 0.0
    %141 = vmatprep.subr.mxu0 0.0
    %142 = vmatpush1.msra.mxu0 0.0
    %143 = vmatprep.subr.mxu0 0.0
    %144 = vmatpush1.msra.mxu0 0.0
    %145 = vmatprep.subr.mxu0 0.0
    %146 = vmatpush1.msra.mxu0 0.0
    %147 = vmatprep.subr.mxu0 0.0
    %148 = vmatpush1.msra.mxu0 0.0
    %149 = vmatprep.subr.mxu0 0.0
    %150 = vmatpush1.msra.mxu0 0.0
    %151 = vmatprep.mubr.f32.mxu0 0.0
    %152 = vmatmul.mubr.f32.gmra.mrb[0].mxu0 %v82
    %v153 = vpop.f32.mrb[0].mxu0
    %v154 = vadd.f32 0.0, %v153
    %v155 = vpop.f32.mrb[0].mxu0
    %156 = vmatprep.mubr.f32.mxu0 0.0
    %157 = vmatmul.mubr.f32.gmra.mrb[0].mxu0 %v85
    %v158 = vpop.f32.mrb[0].mxu0
    %v159 = vadd.f32 0.0, %v158
    %v160 = vpop.f32.mrb[0].mxu0
    %161 = vdwg.mxu0
    %v162 = vld [vmem:[%s5] sm:$0x1]
    %v163 = vld [vmem:[%s5 + $0x1] sm:$0x1]
    %vm164 = vcmask 130048
    %v166 = vsel %vm164, %v162, 0
    %v169 = vsel %vm164, %v154, 0
    %v172 = vsel %vm164, %v159, 0
    %174 = vmatprep.subr.mxu0 0.0
    %175 = vmatpush1.xpose.msra.mxu0 %v169
    %176 = vmatprep.subr.mxu0 0.0
    %177 = vmatpush1.xpose.msra.mxu0 %v172
    %178 = vmatprep.subr.mxu0 0.0
    %179 = vmatpush1.xpose.msra.mxu0 0.0
    %180 = vmatprep.subr.mxu0 0.0
    %181 = vmatpush1.xpose.msra.mxu0 0.0
    %182 = vmatprep.subr.mxu0 0.0
    %183 = vmatpush1.xpose.msra.mxu0 0.0
    %184 = vmatprep.subr.mxu0 0.0
    %185 = vmatpush1.xpose.msra.mxu0 0.0
    %186 = vmatprep.subr.mxu0 0.0
    %187 = vmatpush1.xpose.msra.mxu0 0.0
    %188 = vmatprep.subr.mxu0 0.0
    %189 = vmatpush1.xpose.msra.mxu0 0.0
    %190 = vmatprep.subr.mxu0 0.0
    %191 = vmatpush1.xpose.msra.mxu0 0.0
    %192 = vmatprep.subr.mxu0 0.0
    %193 = vmatpush1.xpose.msra.mxu0 0.0
    %194 = vmatprep.subr.mxu0 0.0
    %195 = vmatpush1.xpose.msra.mxu0 0.0
    %196 = vmatprep.subr.mxu0 0.0
    %197 = vmatpush1.xpose.msra.mxu0 0.0
    %198 = vmatprep.subr.mxu0 0.0
    %199 = vmatpush1.xpose.msra.mxu0 0.0
    %200 = vmatprep.subr.mxu0 0.0
    %201 = vmatpush1.xpose.msra.mxu0 0.0
    %202 = vmatprep.subr.mxu0 0.0
    %203 = vmatpush1.xpose.msra.mxu0 0.0
    %204 = vmatprep.subr.mxu0 0.0
    %205 = vmatpush1.xpose.msra.mxu0 0.0
    %206 = vmatprep.subr.mxu0 0.0
    %207 = vmatpush1.xpose.msra.mxu0 0.0
    %208 = vmatprep.subr.mxu0 0.0
    %209 = vmatpush1.xpose.msra.mxu0 0.0
    %210 = vmatprep.subr.mxu0 0.0
    %211 = vmatpush1.xpose.msra.mxu0 0.0
    %212 = vmatprep.subr.mxu0 0.0
    %213 = vmatpush1.xpose.msra.mxu0 0.0
    %214 = vmatprep.subr.mxu0 0.0
    %215 = vmatpush1.xpose.msra.mxu0 0.0
    %216 = vmatprep.subr.mxu0 0.0
    %217 = vmatpush1.xpose.msra.mxu0 0.0
    %218 = vmatprep.subr.mxu0 0.0
    %219 = vmatpush1.xpose.msra.mxu0 0.0
    %220 = vmatprep.subr.mxu0 0.0
    %221 = vmatpush1.xpose.msra.mxu0 0.0
    %222 = vmatprep.subr.mxu0 0.0
    %223 = vmatpush1.xpose.msra.mxu0 0.0
    %224 = vmatprep.subr.mxu0 0.0
    %225 = vmatpush1.xpose.msra.mxu0 0.0
    %226 = vmatprep.subr.mxu0 0.0
    %227 = vmatpush1.xpose.msra.mxu0 0.0
    %228 = vmatprep.subr.mxu0 0.0
    %229 = vmatpush1.xpose.msra.mxu0 0.0
    %230 = vmatprep.subr.mxu0 0.0
    %231 = vmatpush1.xpose.msra.mxu0 0.0
    %232 = vmatprep.subr.mxu0 0.0
    %233 = vmatpush1.xpose.msra.mxu0 0.0
    %234 = vmatprep.subr.mxu0 0.0
    %235 = vmatpush1.xpose.msra.mxu0 0.0
    %236 = vmatprep.subr.mxu0 0.0
    %237 = vmatpush1.xpose.msra.mxu0 0.0
    %238 = vmatprep.mubr.f32.mxu0 0.0
    %239 = vmatmul.mubr.f32.gmra.mrb[0].mxu0 %v166
    %v240 = vpop.f32.mrb[0].mxu0
    %v241 = vadd.f32 0.0, %v240
    %v242 = vpop.f32.mrb[0].mxu0
    %243 = vdwg.mxu0
    %v244 = vlaneseq
    %v245 = vshrl.u32 %v244, 7
    %v246 = vsub.s32 0, %v245
    %v247 = vrot.slane %v163, %v246
    %v248 = vmul.f32 %v154, %v247
    %v249 = vmul.f32 %v159, %v247
    %v250 = vsel %vm164, %v248, 0.0
    %251 = vadd.xlane.f32.xlu0 %v250
    %v252 = vpop.xlane.xlu0 %251
    %v253 = vsel %vm164, %v249, 0.0
    %254 = vadd.xlane.f32.xlu0 %v253
    %v255 = vpop.xlane.xlu0 %254
    %v256 = vstv %s69
    %v257 = vmul.f32 %v256, %v53
    %v258 = vmul.f32 %v256, %v54
    %v259 = vstv %s71
    %v260 = vmul.f32 %v259, %v56
    %v261 = vmul.f32 %v259, %v57
    %v262 = vadd.f32 %v257, %v260
    %v263 = vadd.f32 %v258, %v261
    %v264 = vstv %s73
    %v265 = vmul.f32 %v264, %v59
    %v266 = vmul.f32 %v264, %v60
    %v267 = vadd.f32 %v262, %v265
    %v268 = vadd.f32 %v263, %v266
    %v269 = vstv %s75
    %v270 = vmul.f32 %v269, %v62
    %v271 = vmul.f32 %v269, %v63
    %v272 = vadd.f32 %v267, %v270
    %v273 = vadd.f32 %v268, %v271
    %v274 = vstv %s77
    %v275 = vmul.f32 %v274, %v65
    %v276 = vmul.f32 %v274, %v66
    %v277 = vadd.f32 %v272, %v275
    %v278 = vadd.f32 %v273, %v276
    %v279 = vlaneseq
    %v280 = vshrl.u32 %v279, 7
    %v281 = vsub.s32 0, %v280
    %v282 = vrot.slane %v241, %v281
    %v283 = vadd.f32 %v252, %v282
    %v284 = vadd.f32 %v255, %v282
    %v285 = vadd.f32 %v283, %v277
    %v286 = vadd.f32 %v284, %v278
    %v287 = vmul.f32 %v285, 0.2
    %v288 = vmul.f32 %v286, 0.2
    %v289 = vmax.f32 %v285, %v287
    %v290 = vmax.f32 %v286, %v288
    %v291 = vsel %vm51, %v289, -1e+30
    %v292 = vsel %vm52, %v290, -1e+30
    %v293 = vsel %vm164, %v291, -inf
    %294 = vmax.xlane.f32.xlu0 %v293
    %v295 = vpop.xlane.xlu0 %294
    %v296 = vsel %vm164, %v292, -inf
    %297 = vmax.xlane.f32.xlu0 %v296
    %v298 = vpop.xlane.xlu0 %297
    %v299 = vsub.f32 %v291, %v295
    %v300 = vsub.f32 %v292, %v298
    %v301 = vmul.f32 %v299, 1.442695
    %v302 = vpow.pop %v301
    %v303 = vmul.f32 %v300, 1.442695
    %v304 = vpow.pop %v303
    %v305 = vsel %vm51, %v302, 0.0
    %v306 = vsel %vm52, %v304, 0.0
    %v307 = vsel %vm164, %v305, 0.0
    %308 = vadd.xlane.f32.xlu0 %v307
    %v309 = vpop.xlane.xlu0 %308
    %v310 = vsel %vm164, %v306, 0.0
    %311 = vadd.xlane.f32.xlu0 %v310
    %v312 = vpop.xlane.xlu0 %311
    %v313 = vrcp.pop %v309
    %v314 = vrcp.pop %v312
    %v315 = vmul.f32 %v305, %v313
    %v316 = vmul.f32 %v306, %v314
    %s317 = scalar_lea.vmem %s4, 32
    %v318 = vld [vmem:[%s317] sm:$0xff]
    %319 = vmatprep.subr.mxu0 0.0
    %320 = vmatpush1.msra.mxu0 %v318
    %321 = vmatprep.subr.mxu0 0.0
    %322 = vmatpush1.msra.mxu0 0.0
    %323 = vmatprep.subr.mxu0 0.0
    %324 = vmatpush1.msra.mxu0 0.0
    %325 = vmatprep.subr.mxu0 0.0
    %326 = vmatpush1.msra.mxu0 0.0
    %327 = vmatprep.subr.mxu0 0.0
    %328 = vmatpush1.msra.mxu0 0.0
    %329 = vmatprep.subr.mxu0 0.0
    %330 = vmatpush1.msra.mxu0 0.0
    %331 = vmatprep.subr.mxu0 0.0
    %332 = vmatpush1.msra.mxu0 0.0
    %333 = vmatprep.subr.mxu0 0.0
    %334 = vmatpush1.msra.mxu0 0.0
    %335 = vmatprep.subr.mxu0 0.0
    %336 = vmatpush1.msra.mxu0 0.0
    %337 = vmatprep.subr.mxu0 0.0
    %338 = vmatpush1.msra.mxu0 0.0
    %339 = vmatprep.subr.mxu0 0.0
    %340 = vmatpush1.msra.mxu0 0.0
    %341 = vmatprep.subr.mxu0 0.0
    %342 = vmatpush1.msra.mxu0 0.0
    %343 = vmatprep.subr.mxu0 0.0
    %344 = vmatpush1.msra.mxu0 0.0
    %345 = vmatprep.subr.mxu0 0.0
    %346 = vmatpush1.msra.mxu0 0.0
    %347 = vmatprep.subr.mxu0 0.0
    %348 = vmatpush1.msra.mxu0 0.0
    %349 = vmatprep.subr.mxu0 0.0
    %350 = vmatpush1.msra.mxu0 0.0
    %351 = vmatprep.subr.mxu0 0.0
    %352 = vmatpush1.msra.mxu0 0.0
    %353 = vmatprep.subr.mxu0 0.0
    %354 = vmatpush1.msra.mxu0 0.0
    %355 = vmatprep.subr.mxu0 0.0
    %356 = vmatpush1.msra.mxu0 0.0
    %357 = vmatprep.subr.mxu0 0.0
    %358 = vmatpush1.msra.mxu0 0.0
    %359 = vmatprep.subr.mxu0 0.0
    %360 = vmatpush1.msra.mxu0 0.0
    %361 = vmatprep.subr.mxu0 0.0
    %362 = vmatpush1.msra.mxu0 0.0
    %363 = vmatprep.subr.mxu0 0.0
    %364 = vmatpush1.msra.mxu0 0.0
    %365 = vmatprep.subr.mxu0 0.0
    %366 = vmatpush1.msra.mxu0 0.0
    %367 = vmatprep.subr.mxu0 0.0
    %368 = vmatpush1.msra.mxu0 0.0
    %369 = vmatprep.subr.mxu0 0.0
    %370 = vmatpush1.msra.mxu0 0.0
    %371 = vmatprep.subr.mxu0 0.0
    %372 = vmatpush1.msra.mxu0 0.0
    %373 = vmatprep.subr.mxu0 0.0
    %374 = vmatpush1.msra.mxu0 0.0
    %375 = vmatprep.subr.mxu0 0.0
    %376 = vmatpush1.msra.mxu0 0.0
    %377 = vmatprep.subr.mxu0 0.0
    %378 = vmatpush1.msra.mxu0 0.0
    %379 = vmatprep.subr.mxu0 0.0
    %380 = vmatpush1.msra.mxu0 0.0
    %381 = vmatprep.subr.mxu0 0.0
    %382 = vmatpush1.msra.mxu0 0.0
    %383 = vmatprep.mubr.f32.mxu0 0.0
    %384 = vmatmul.mubr.f32.gmra.mrb[0].mxu0 %v82
    %v385 = vpop.f32.mrb[0].mxu0
    %v386 = vadd.f32 0.0, %v385
    %v387 = vpop.f32.mrb[0].mxu0
    %388 = vmatprep.mubr.f32.mxu0 0.0
    %389 = vmatmul.mubr.f32.gmra.mrb[0].mxu0 %v85
    %v390 = vpop.f32.mrb[0].mxu0
    %v391 = vadd.f32 0.0, %v390
    %v392 = vpop.f32.mrb[0].mxu0
    %393 = vdwg.mxu0
    %s394 = scalar_lea.vmem %s5, 4
    %v395 = vld [vmem:[%s394] sm:$0x1]
    %v396 = vld [vmem:[%s394 + $0x1] sm:$0x1]
    %v398 = vsel %vm164, %v395, 0
    %v401 = vsel %vm164, %v386, 0
    %v404 = vsel %vm164, %v391, 0
    %406 = vmatprep.subr.mxu0 0.0
    %407 = vmatpush1.xpose.msra.mxu0 %v401
    %408 = vmatprep.subr.mxu0 0.0
    %409 = vmatpush1.xpose.msra.mxu0 %v404
    %410 = vmatprep.subr.mxu0 0.0
    %411 = vmatpush1.xpose.msra.mxu0 0.0
    %412 = vmatprep.subr.mxu0 0.0
    %413 = vmatpush1.xpose.msra.mxu0 0.0
    %414 = vmatprep.subr.mxu0 0.0
    %415 = vmatpush1.xpose.msra.mxu0 0.0
    %416 = vmatprep.subr.mxu0 0.0
    %417 = vmatpush1.xpose.msra.mxu0 0.0
    %418 = vmatprep.subr.mxu0 0.0
    %419 = vmatpush1.xpose.msra.mxu0 0.0
    %420 = vmatprep.subr.mxu0 0.0
    %421 = vmatpush1.xpose.msra.mxu0 0.0
    %422 = vmatprep.subr.mxu0 0.0
    %423 = vmatpush1.xpose.msra.mxu0 0.0
    %424 = vmatprep.subr.mxu0 0.0
    %425 = vmatpush1.xpose.msra.mxu0 0.0
    %426 = vmatprep.subr.mxu0 0.0
    %427 = vmatpush1.xpose.msra.mxu0 0.0
    %428 = vmatprep.subr.mxu0 0.0
    %429 = vmatpush1.xpose.msra.mxu0 0.0
    %430 = vmatprep.subr.mxu0 0.0
    %431 = vmatpush1.xpose.msra.mxu0 0.0
    %432 = vmatprep.subr.mxu0 0.0
    %433 = vmatpush1.xpose.msra.mxu0 0.0
    %434 = vmatprep.subr.mxu0 0.0
    %435 = vmatpush1.xpose.msra.mxu0 0.0
    %436 = vmatprep.subr.mxu0 0.0
    %437 = vmatpush1.xpose.msra.mxu0 0.0
    %438 = vmatprep.subr.mxu0 0.0
    %439 = vmatpush1.xpose.msra.mxu0 0.0
    %440 = vmatprep.subr.mxu0 0.0
    %441 = vmatpush1.xpose.msra.mxu0 0.0
    %442 = vmatprep.subr.mxu0 0.0
    %443 = vmatpush1.xpose.msra.mxu0 0.0
    %444 = vmatprep.subr.mxu0 0.0
    %445 = vmatpush1.xpose.msra.mxu0 0.0
    %446 = vmatprep.subr.mxu0 0.0
    %447 = vmatpush1.xpose.msra.mxu0 0.0
    %448 = vmatprep.subr.mxu0 0.0
    %449 = vmatpush1.xpose.msra.mxu0 0.0
    %450 = vmatprep.subr.mxu0 0.0
    %451 = vmatpush1.xpose.msra.mxu0 0.0
    %452 = vmatprep.subr.mxu0 0.0
    %453 = vmatpush1.xpose.msra.mxu0 0.0
    %454 = vmatprep.subr.mxu0 0.0
    %455 = vmatpush1.xpose.msra.mxu0 0.0
    %456 = vmatprep.subr.mxu0 0.0
    %457 = vmatpush1.xpose.msra.mxu0 0.0
    %458 = vmatprep.subr.mxu0 0.0
    %459 = vmatpush1.xpose.msra.mxu0 0.0
    %460 = vmatprep.subr.mxu0 0.0
    %461 = vmatpush1.xpose.msra.mxu0 0.0
    %462 = vmatprep.subr.mxu0 0.0
    %463 = vmatpush1.xpose.msra.mxu0 0.0
    %464 = vmatprep.subr.mxu0 0.0
    %465 = vmatpush1.xpose.msra.mxu0 0.0
    %466 = vmatprep.subr.mxu0 0.0
    %467 = vmatpush1.xpose.msra.mxu0 0.0
    %468 = vmatprep.subr.mxu0 0.0
    %469 = vmatpush1.xpose.msra.mxu0 0.0
    %470 = vmatprep.mubr.f32.mxu0 0.0
    %471 = vmatmul.mubr.f32.gmra.mrb[0].mxu0 %v398
    %v472 = vpop.f32.mrb[0].mxu0
    %v473 = vadd.f32 0.0, %v472
    %v474 = vpop.f32.mrb[0].mxu0
    %475 = vdwg.mxu0
    %v476 = vlaneseq
    %v477 = vshrl.u32 %v476, 7
    %v478 = vsub.s32 0, %v477
    %v479 = vrot.slane %v396, %v478
    %v480 = vmul.f32 %v386, %v479
    %v481 = vmul.f32 %v391, %v479
    %v482 = vsel %vm164, %v480, 0.0
    %483 = vadd.xlane.f32.xlu0 %v482
    %v484 = vpop.xlane.xlu0 %483
    %v485 = vsel %vm164, %v481, 0.0
    %486 = vadd.xlane.f32.xlu0 %v485
    %v487 = vpop.xlane.xlu0 %486
    %v488 = vstv %s70
    %v489 = vmul.f32 %v488, %v53
    %v490 = vmul.f32 %v488, %v54
    %v491 = vstv %s72
    %v492 = vmul.f32 %v491, %v56
    %v493 = vmul.f32 %v491, %v57
    %v494 = vadd.f32 %v489, %v492
    %v495 = vadd.f32 %v490, %v493
    %v496 = vstv %s74
    %v497 = vmul.f32 %v496, %v59
    %v498 = vmul.f32 %v496, %v60
    %v499 = vadd.f32 %v494, %v497
    %v500 = vadd.f32 %v495, %v498
    %v501 = vstv %s76
    %v502 = vmul.f32 %v501, %v62
    %v503 = vmul.f32 %v501, %v63
    %v504 = vadd.f32 %v499, %v502
    %v505 = vadd.f32 %v500, %v503
    %v506 = vstv %s78
    %v507 = vmul.f32 %v506, %v65
    %v508 = vmul.f32 %v506, %v66
    %v509 = vadd.f32 %v504, %v507
    %v510 = vadd.f32 %v505, %v508
    %v511 = vlaneseq
    %v512 = vshrl.u32 %v511, 7
    %v513 = vsub.s32 0, %v512
    %v514 = vrot.slane %v473, %v513
    %v515 = vadd.f32 %v484, %v514
    %v516 = vadd.f32 %v487, %v514
    %v517 = vadd.f32 %v515, %v509
    %v518 = vadd.f32 %v516, %v510
    %v519 = vmul.f32 %v517, 0.2
    %v520 = vmul.f32 %v518, 0.2
    %v521 = vmax.f32 %v517, %v519
    %v522 = vmax.f32 %v518, %v520
    %v523 = vsel %vm51, %v521, -1e+30
    %v524 = vsel %vm52, %v522, -1e+30
    %v525 = vsel %vm164, %v523, -inf
    %526 = vmax.xlane.f32.xlu0 %v525
    %v527 = vpop.xlane.xlu0 %526
    %v528 = vsel %vm164, %v524, -inf
    %529 = vmax.xlane.f32.xlu0 %v528
    %v530 = vpop.xlane.xlu0 %529
    %v531 = vsub.f32 %v523, %v527
    %v532 = vsub.f32 %v524, %v530
    %v533 = vmul.f32 %v531, 1.442695
    %v534 = vpow.pop %v533
    %v535 = vmul.f32 %v532, 1.442695
    %v536 = vpow.pop %v535
    %v537 = vsel %vm51, %v534, 0.0
    %v538 = vsel %vm52, %v536, 0.0
    %v539 = vsel %vm164, %v537, 0.0
    %540 = vadd.xlane.f32.xlu0 %v539
    %v541 = vpop.xlane.xlu0 %540
    %v542 = vsel %vm164, %v538, 0.0
    %543 = vadd.xlane.f32.xlu0 %v542
    %v544 = vpop.xlane.xlu0 %543
    %v545 = vrcp.pop %v541
    %v546 = vrcp.pop %v544
    %v547 = vmul.f32 %v537, %v545
    %v548 = vmul.f32 %v538, %v546
    %v549 = vld [vmem:[%s5 + $0x2] sm:$0x1]
    %v550 = vlaneseq
    %v551 = vshrl.u32 %v550, 7
    %v552 = vsub.s32 0, %v551
    %v553 = vrot.slane %v549, %v552
    %v555 = vsel %vm164, %v315, 0
    %v558 = vsel %vm164, %v316, 0
    %560 = vmatprep.subr.mxu0 0.0
    %561 = vmatpush1.msra.mxu0 %v154
    %562 = vmatprep.subr.mxu0 0.0
    %563 = vmatpush1.msra.mxu0 %v159
    %564 = vmatprep.subr.mxu0 0.0
    %565 = vmatpush1.msra.mxu0 0.0
    %566 = vmatprep.subr.mxu0 0.0
    %567 = vmatpush1.msra.mxu0 0.0
    %568 = vmatprep.subr.mxu0 0.0
    %569 = vmatpush1.msra.mxu0 0.0
    %570 = vmatprep.subr.mxu0 0.0
    %571 = vmatpush1.msra.mxu0 0.0
    %572 = vmatprep.subr.mxu0 0.0
    %573 = vmatpush1.msra.mxu0 0.0
    %574 = vmatprep.subr.mxu0 0.0
    %575 = vmatpush1.msra.mxu0 0.0
    %576 = vmatprep.subr.mxu0 0.0
    %577 = vmatpush1.msra.mxu0 0.0
    %578 = vmatprep.subr.mxu0 0.0
    %579 = vmatpush1.msra.mxu0 0.0
    %580 = vmatprep.subr.mxu0 0.0
    %581 = vmatpush1.msra.mxu0 0.0
    %582 = vmatprep.subr.mxu0 0.0
    %583 = vmatpush1.msra.mxu0 0.0
    %584 = vmatprep.subr.mxu0 0.0
    %585 = vmatpush1.msra.mxu0 0.0
    %586 = vmatprep.subr.mxu0 0.0
    %587 = vmatpush1.msra.mxu0 0.0
    %588 = vmatprep.subr.mxu0 0.0
    %589 = vmatpush1.msra.mxu0 0.0
    %590 = vmatprep.subr.mxu0 0.0
    %591 = vmatpush1.msra.mxu0 0.0
    %592 = vmatprep.subr.mxu0 0.0
    %593 = vmatpush1.msra.mxu0 0.0
    %594 = vmatprep.subr.mxu0 0.0
    %595 = vmatpush1.msra.mxu0 0.0
    %596 = vmatprep.subr.mxu0 0.0
    %597 = vmatpush1.msra.mxu0 0.0
    %598 = vmatprep.subr.mxu0 0.0
    %599 = vmatpush1.msra.mxu0 0.0
    %600 = vmatprep.subr.mxu0 0.0
    %601 = vmatpush1.msra.mxu0 0.0
    %602 = vmatprep.subr.mxu0 0.0
    %603 = vmatpush1.msra.mxu0 0.0
    %604 = vmatprep.subr.mxu0 0.0
    %605 = vmatpush1.msra.mxu0 0.0
    %606 = vmatprep.subr.mxu0 0.0
    %607 = vmatpush1.msra.mxu0 0.0
    %608 = vmatprep.subr.mxu0 0.0
    %609 = vmatpush1.msra.mxu0 0.0
    %610 = vmatprep.subr.mxu0 0.0
    %611 = vmatpush1.msra.mxu0 0.0
    %612 = vmatprep.subr.mxu0 0.0
    %613 = vmatpush1.msra.mxu0 0.0
    %614 = vmatprep.subr.mxu0 0.0
    %615 = vmatpush1.msra.mxu0 0.0
    %616 = vmatprep.subr.mxu0 0.0
    %617 = vmatpush1.msra.mxu0 0.0
    %618 = vmatprep.subr.mxu0 0.0
    %619 = vmatpush1.msra.mxu0 0.0
    %620 = vmatprep.subr.mxu0 0.0
    %621 = vmatpush1.msra.mxu0 0.0
    %622 = vmatprep.subr.mxu0 0.0
    %623 = vmatpush1.msra.mxu0 0.0
    %624 = vmatprep.mubr.f32.mxu0 0.0
    %625 = vmatmul.mubr.f32.gmra.mrb[0].mxu0 %v555
    %v626 = vpop.f32.mrb[0].mxu0
    %v627 = vadd.f32 %v553, %v626
    %v628 = vpop.f32.mrb[0].mxu0
    %629 = vmatprep.mubr.f32.mxu0 0.0
    %630 = vmatmul.mubr.f32.gmra.mrb[0].mxu0 %v558
    %v631 = vpop.f32.mrb[0].mxu0
    %v632 = vadd.f32 %v553, %v631
    %v633 = vpop.f32.mrb[0].mxu0
    %634 = vdwg.mxu0
    %v635 = vmax.f32 %v627, 0.0
    %v636 = vmax.f32 %v632, 0.0
    %v637 = vld [vmem:[%s394 + $0x2] sm:$0x1]
    %v638 = vlaneseq
    %v639 = vshrl.u32 %v638, 7
    %v640 = vsub.s32 0, %v639
    %v641 = vrot.slane %v637, %v640
    %v643 = vsel %vm164, %v547, 0
    %v646 = vsel %vm164, %v548, 0
    %648 = vmatprep.subr.mxu0 0.0
    %649 = vmatpush1.msra.mxu0 %v386
    %650 = vmatprep.subr.mxu0 0.0
    %651 = vmatpush1.msra.mxu0 %v391
    %652 = vmatprep.subr.mxu0 0.0
    %653 = vmatpush1.msra.mxu0 0.0
    %654 = vmatprep.subr.mxu0 0.0
    %655 = vmatpush1.msra.mxu0 0.0
    %656 = vmatprep.subr.mxu0 0.0
    %657 = vmatpush1.msra.mxu0 0.0
    %658 = vmatprep.subr.mxu0 0.0
    %659 = vmatpush1.msra.mxu0 0.0
    %660 = vmatprep.subr.mxu0 0.0
    %661 = vmatpush1.msra.mxu0 0.0
    %662 = vmatprep.subr.mxu0 0.0
    %663 = vmatpush1.msra.mxu0 0.0
    %664 = vmatprep.subr.mxu0 0.0
    %665 = vmatpush1.msra.mxu0 0.0
    %666 = vmatprep.subr.mxu0 0.0
    %667 = vmatpush1.msra.mxu0 0.0
    %668 = vmatprep.subr.mxu0 0.0
    %669 = vmatpush1.msra.mxu0 0.0
    %670 = vmatprep.subr.mxu0 0.0
    %671 = vmatpush1.msra.mxu0 0.0
    %672 = vmatprep.subr.mxu0 0.0
    %673 = vmatpush1.msra.mxu0 0.0
    %674 = vmatprep.subr.mxu0 0.0
    %675 = vmatpush1.msra.mxu0 0.0
    %676 = vmatprep.subr.mxu0 0.0
    %677 = vmatpush1.msra.mxu0 0.0
    %678 = vmatprep.subr.mxu0 0.0
    %679 = vmatpush1.msra.mxu0 0.0
    %680 = vmatprep.subr.mxu0 0.0
    %681 = vmatpush1.msra.mxu0 0.0
    %682 = vmatprep.subr.mxu0 0.0
    %683 = vmatpush1.msra.mxu0 0.0
    %684 = vmatprep.subr.mxu0 0.0
    %685 = vmatpush1.msra.mxu0 0.0
    %686 = vmatprep.subr.mxu0 0.0
    %687 = vmatpush1.msra.mxu0 0.0
    %688 = vmatprep.subr.mxu0 0.0
    %689 = vmatpush1.msra.mxu0 0.0
    %690 = vmatprep.subr.mxu0 0.0
    %691 = vmatpush1.msra.mxu0 0.0
    %692 = vmatprep.subr.mxu0 0.0
    %693 = vmatpush1.msra.mxu0 0.0
    %694 = vmatprep.subr.mxu0 0.0
    %695 = vmatpush1.msra.mxu0 0.0
    %696 = vmatprep.subr.mxu0 0.0
    %697 = vmatpush1.msra.mxu0 0.0
    %698 = vmatprep.subr.mxu0 0.0
    %699 = vmatpush1.msra.mxu0 0.0
    %700 = vmatprep.subr.mxu0 0.0
    %701 = vmatpush1.msra.mxu0 0.0
    %702 = vmatprep.subr.mxu0 0.0
    %703 = vmatpush1.msra.mxu0 0.0
    %704 = vmatprep.subr.mxu0 0.0
    %705 = vmatpush1.msra.mxu0 0.0
    %706 = vmatprep.subr.mxu0 0.0
    %707 = vmatpush1.msra.mxu0 0.0
    %708 = vmatprep.subr.mxu0 0.0
    %709 = vmatpush1.msra.mxu0 0.0
    %710 = vmatprep.subr.mxu0 0.0
    %711 = vmatpush1.msra.mxu0 0.0
    %712 = vmatprep.mubr.f32.mxu0 0.0
    %713 = vmatmul.mubr.f32.gmra.mrb[0].mxu0 %v643
    %v714 = vpop.f32.mrb[0].mxu0
    %v715 = vadd.f32 %v641, %v714
    %v716 = vpop.f32.mrb[0].mxu0
    %717 = vmatprep.mubr.f32.mxu0 0.0
    %718 = vmatmul.mubr.f32.gmra.mrb[0].mxu0 %v646
    %v719 = vpop.f32.mrb[0].mxu0
    %v720 = vadd.f32 %v641, %v719
    %v721 = vpop.f32.mrb[0].mxu0
    %722 = vdwg.mxu0
    %v723 = vmax.f32 %v715, 0.0
    %v724 = vmax.f32 %v720, 0.0
    %s725 = sld [smem:[#allocation2 + $0xa]]
    %s726 = sld [smem:[#allocation2 + $0xb]]
    %s727 = sld [smem:[#allocation2 + $0xc]]
    %s728 = sld [smem:[#allocation2 + $0xd]]
    %s729 = sld [smem:[#allocation2 + $0xe]]
    %s730 = sld [smem:[#allocation2 + $0xf]]
    %s731 = sld [smem:[#allocation2 + $0x10]]
    %s732 = sld [smem:[#allocation2 + $0x11]]
    %s733 = sld [smem:[#allocation2 + $0x12]]
    %s734 = sld [smem:[#allocation2 + $0x13]]
    %s735 = scalar_lea.vmem %s4, 64
    %v736 = vld [vmem:[%s735] sm:$0xff]
    %v737 = vld [vmem:[%s735 + $0x8] sm:$0xff]
    %v738 = vld [vmem:[%s735 + $0x10] sm:$0xff]
    %v739 = vld [vmem:[%s735 + $0x18] sm:$0xff]
    %v741 = vsel %vm164, %v723, 0
    %v744 = vsel %vm164, %v724, 0
    %746 = vmatprep.subr.mxu0 0.0
    %747 = vmatpush1.msra.mxu0 %v738
    %748 = vmatprep.subr.mxu0 0.0
    %749 = vmatpush1.msra.mxu0 %v739
    %750 = vmatprep.subr.mxu0 0.0
    %751 = vmatpush1.msra.mxu0 0.0
    %752 = vmatprep.subr.mxu0 0.0
    %753 = vmatpush1.msra.mxu0 0.0
    %754 = vmatprep.subr.mxu0 0.0
    %755 = vmatpush1.msra.mxu0 0.0
    %756 = vmatprep.subr.mxu0 0.0
    %757 = vmatpush1.msra.mxu0 0.0
    %758 = vmatprep.subr.mxu0 0.0
    %759 = vmatpush1.msra.mxu0 0.0
    %760 = vmatprep.subr.mxu0 0.0
    %761 = vmatpush1.msra.mxu0 0.0
    %762 = vmatprep.subr.mxu0 0.0
    %763 = vmatpush1.msra.mxu0 0.0
    %764 = vmatprep.subr.mxu0 0.0
    %765 = vmatpush1.msra.mxu0 0.0
    %766 = vmatprep.subr.mxu0 0.0
    %767 = vmatpush1.msra.mxu0 0.0
    %768 = vmatprep.subr.mxu0 0.0
    %769 = vmatpush1.msra.mxu0 0.0
    %770 = vmatprep.subr.mxu0 0.0
    %771 = vmatpush1.msra.mxu0 0.0
    %772 = vmatprep.subr.mxu0 0.0
    %773 = vmatpush1.msra.mxu0 0.0
    %774 = vmatprep.subr.mxu0 0.0
    %775 = vmatpush1.msra.mxu0 0.0
    %776 = vmatprep.subr.mxu0 0.0
    %777 = vmatpush1.msra.mxu0 0.0
    %778 = vmatprep.subr.mxu0 0.0
    %779 = vmatpush1.msra.mxu0 0.0
    %780 = vmatprep.subr.mxu0 0.0
    %781 = vmatpush1.msra.mxu0 0.0
    %782 = vmatprep.subr.mxu0 0.0
    %783 = vmatpush1.msra.mxu0 0.0
    %784 = vmatprep.subr.mxu0 0.0
    %785 = vmatpush1.msra.mxu0 0.0
    %786 = vmatprep.subr.mxu0 0.0
    %787 = vmatpush1.msra.mxu0 0.0
    %788 = vmatprep.subr.mxu0 0.0
    %789 = vmatpush1.msra.mxu0 0.0
    %790 = vmatprep.subr.mxu0 0.0
    %791 = vmatpush1.msra.mxu0 0.0
    %792 = vmatprep.subr.mxu0 0.0
    %793 = vmatpush1.msra.mxu0 0.0
    %794 = vmatprep.subr.mxu0 0.0
    %795 = vmatpush1.msra.mxu0 0.0
    %796 = vmatprep.subr.mxu0 0.0
    %797 = vmatpush1.msra.mxu0 0.0
    %798 = vmatprep.subr.mxu0 0.0
    %799 = vmatpush1.msra.mxu0 0.0
    %800 = vmatprep.subr.mxu0 0.0
    %801 = vmatpush1.msra.mxu0 0.0
    %802 = vmatprep.subr.mxu0 0.0
    %803 = vmatpush1.msra.mxu0 0.0
    %804 = vmatprep.subr.mxu0 0.0
    %805 = vmatpush1.msra.mxu0 0.0
    %806 = vmatprep.subr.mxu0 0.0
    %807 = vmatpush1.msra.mxu0 0.0
    %808 = vmatprep.subr.mxu0 0.0
    %809 = vmatpush1.msra.mxu0 0.0
    %810 = vmatprep.mubr.f32.mxu0 0.0
    %811 = vmatmul.mubr.f32.gmra.mrb[0].mxu0 %v741
    %v812 = vpop.f32.mrb[0].mxu0
    %v813 = vadd.f32 0.0, %v812
    %v814 = vpop.f32.mrb[0].mxu0
    %815 = vmatprep.mubr.f32.mxu0 0.0
    %816 = vmatmul.mubr.f32.gmra.mrb[0].mxu0 %v744
    %v817 = vpop.f32.mrb[0].mxu0
    %v818 = vadd.f32 0.0, %v817
    %v819 = vpop.f32.mrb[0].mxu0
    %820 = vdwg.mxu0
    %v822 = vsel %vm164, %v635, 0
    %v825 = vsel %vm164, %v636, 0
    %827 = vmatprep.subr.mxu0 0.0
    %828 = vmatpush1.msra.mxu0 %v736
    %829 = vmatprep.subr.mxu0 0.0
    %830 = vmatpush1.msra.mxu0 %v737
    %831 = vmatprep.subr.mxu0 0.0
    %832 = vmatpush1.msra.mxu0 0.0
    %833 = vmatprep.subr.mxu0 0.0
    %834 = vmatpush1.msra.mxu0 0.0
    %835 = vmatprep.subr.mxu0 0.0
    %836 = vmatpush1.msra.mxu0 0.0
    %837 = vmatprep.subr.mxu0 0.0
    %838 = vmatpush1.msra.mxu0 0.0
    %839 = vmatprep.subr.mxu0 0.0
    %840 = vmatpush1.msra.mxu0 0.0
    %841 = vmatprep.subr.mxu0 0.0
    %842 = vmatpush1.msra.mxu0 0.0
    %843 = vmatprep.subr.mxu0 0.0
    %844 = vmatpush1.msra.mxu0 0.0
    %845 = vmatprep.subr.mxu0 0.0
    %846 = vmatpush1.msra.mxu0 0.0
    %847 = vmatprep.subr.mxu0 0.0
    %848 = vmatpush1.msra.mxu0 0.0
    %849 = vmatprep.subr.mxu0 0.0
    %850 = vmatpush1.msra.mxu0 0.0
    %851 = vmatprep.subr.mxu0 0.0
    %852 = vmatpush1.msra.mxu0 0.0
    %853 = vmatprep.subr.mxu0 0.0
    %854 = vmatpush1.msra.mxu0 0.0
    %855 = vmatprep.subr.mxu0 0.0
    %856 = vmatpush1.msra.mxu0 0.0
    %857 = vmatprep.subr.mxu0 0.0
    %858 = vmatpush1.msra.mxu0 0.0
    %859 = vmatprep.subr.mxu0 0.0
    %860 = vmatpush1.msra.mxu0 0.0
    %861 = vmatprep.subr.mxu0 0.0
    %862 = vmatpush1.msra.mxu0 0.0
    %863 = vmatprep.subr.mxu0 0.0
    %864 = vmatpush1.msra.mxu0 0.0
    %865 = vmatprep.subr.mxu0 0.0
    %866 = vmatpush1.msra.mxu0 0.0
    %867 = vmatprep.subr.mxu0 0.0
    %868 = vmatpush1.msra.mxu0 0.0
    %869 = vmatprep.subr.mxu0 0.0
    %870 = vmatpush1.msra.mxu0 0.0
    %871 = vmatprep.subr.mxu0 0.0
    %872 = vmatpush1.msra.mxu0 0.0
    %873 = vmatprep.subr.mxu0 0.0
    %874 = vmatpush1.msra.mxu0 0.0
    %875 = vmatprep.subr.mxu0 0.0
    %876 = vmatpush1.msra.mxu0 0.0
    %877 = vmatprep.subr.mxu0 0.0
    %878 = vmatpush1.msra.mxu0 0.0
    %879 = vmatprep.subr.mxu0 0.0
    %880 = vmatpush1.msra.mxu0 0.0
    %881 = vmatprep.subr.mxu0 0.0
    %882 = vmatpush1.msra.mxu0 0.0
    %883 = vmatprep.subr.mxu0 0.0
    %884 = vmatpush1.msra.mxu0 0.0
    %885 = vmatprep.subr.mxu0 0.0
    %886 = vmatpush1.msra.mxu0 0.0
    %887 = vmatprep.subr.mxu0 0.0
    %888 = vmatpush1.msra.mxu0 0.0
    %889 = vmatprep.subr.mxu0 0.0
    %890 = vmatpush1.msra.mxu0 0.0
    %891 = vmatprep.mubr.f32.mxu0 0.0
    %892 = vmatmul.mubr.f32.gmra.mrb[0].mxu0 %v822
    %v893 = vpop.f32.mrb[0].mxu0
    %v894 = vadd.f32 %v813, %v893
    %v895 = vpop.f32.mrb[0].mxu0
    %896 = vmatprep.mubr.f32.mxu0 0.0
    %897 = vmatmul.mubr.f32.gmra.mrb[0].mxu0 %v825
    %v898 = vpop.f32.mrb[0].mxu0
    %v899 = vadd.f32 %v818, %v898
    %v900 = vpop.f32.mrb[0].mxu0
    %901 = vdwg.mxu0
    %s902 = scalar_lea.vmem %s5, 8
    %v903 = vld [vmem:[%s902] sm:$0x1]
    %v904 = vld [vmem:[%s902 + $0x1] sm:$0x1]
    %v906 = vsel %vm164, %v903, 0
    %v909 = vsel %vm164, %v894, 0
    %v912 = vsel %vm164, %v899, 0
    %914 = vmatprep.subr.mxu0 0.0
    %915 = vmatpush1.xpose.msra.mxu0 %v909
    %916 = vmatprep.subr.mxu0 0.0
    %917 = vmatpush1.xpose.msra.mxu0 %v912
    %918 = vmatprep.subr.mxu0 0.0
    %919 = vmatpush1.xpose.msra.mxu0 0.0
    %920 = vmatprep.subr.mxu0 0.0
    %921 = vmatpush1.xpose.msra.mxu0 0.0
    %922 = vmatprep.subr.mxu0 0.0
    %923 = vmatpush1.xpose.msra.mxu0 0.0
    %924 = vmatprep.subr.mxu0 0.0
    %925 = vmatpush1.xpose.msra.mxu0 0.0
    %926 = vmatprep.subr.mxu0 0.0
    %927 = vmatpush1.xpose.msra.mxu0 0.0
    %928 = vmatprep.subr.mxu0 0.0
    %929 = vmatpush1.xpose.msra.mxu0 0.0
    %930 = vmatprep.subr.mxu0 0.0
    %931 = vmatpush1.xpose.msra.mxu0 0.0
    %932 = vmatprep.subr.mxu0 0.0
    %933 = vmatpush1.xpose.msra.mxu0 0.0
    %934 = vmatprep.subr.mxu0 0.0
    %935 = vmatpush1.xpose.msra.mxu0 0.0
    %936 = vmatprep.subr.mxu0 0.0
    %937 = vmatpush1.xpose.msra.mxu0 0.0
    %938 = vmatprep.subr.mxu0 0.0
    %939 = vmatpush1.xpose.msra.mxu0 0.0
    %940 = vmatprep.subr.mxu0 0.0
    %941 = vmatpush1.xpose.msra.mxu0 0.0
    %942 = vmatprep.subr.mxu0 0.0
    %943 = vmatpush1.xpose.msra.mxu0 0.0
    %944 = vmatprep.subr.mxu0 0.0
    %945 = vmatpush1.xpose.msra.mxu0 0.0
    %946 = vmatprep.subr.mxu0 0.0
    %947 = vmatpush1.xpose.msra.mxu0 0.0
    %948 = vmatprep.subr.mxu0 0.0
    %949 = vmatpush1.xpose.msra.mxu0 0.0
    %950 = vmatprep.subr.mxu0 0.0
    %951 = vmatpush1.xpose.msra.mxu0 0.0
    %952 = vmatprep.subr.mxu0 0.0
    %953 = vmatpush1.xpose.msra.mxu0 0.0
    %954 = vmatprep.subr.mxu0 0.0
    %955 = vmatpush1.xpose.msra.mxu0 0.0
    %956 = vmatprep.subr.mxu0 0.0
    %957 = vmatpush1.xpose.msra.mxu0 0.0
    %958 = vmatprep.subr.mxu0 0.0
    %959 = vmatpush1.xpose.msra.mxu0 0.0
    %960 = vmatprep.subr.mxu0 0.0
    %961 = vmatpush1.xpose.msra.mxu0 0.0
    %962 = vmatprep.subr.mxu0 0.0
    %963 = vmatpush1.xpose.msra.mxu0 0.0
    %964 = vmatprep.subr.mxu0 0.0
    %965 = vmatpush1.xpose.msra.mxu0 0.0
    %966 = vmatprep.subr.mxu0 0.0
    %967 = vmatpush1.xpose.msra.mxu0 0.0
    %968 = vmatprep.subr.mxu0 0.0
    %969 = vmatpush1.xpose.msra.mxu0 0.0
    %970 = vmatprep.subr.mxu0 0.0
    %971 = vmatpush1.xpose.msra.mxu0 0.0
    %972 = vmatprep.subr.mxu0 0.0
    %973 = vmatpush1.xpose.msra.mxu0 0.0
    %974 = vmatprep.subr.mxu0 0.0
    %975 = vmatpush1.xpose.msra.mxu0 0.0
    %976 = vmatprep.subr.mxu0 0.0
    %977 = vmatpush1.xpose.msra.mxu0 0.0
    %978 = vmatprep.mubr.f32.mxu0 0.0
    %979 = vmatmul.mubr.f32.gmra.mrb[0].mxu0 %v906
    %v980 = vpop.f32.mrb[0].mxu0
    %v981 = vadd.f32 0.0, %v980
    %v982 = vpop.f32.mrb[0].mxu0
    %983 = vdwg.mxu0
    %v984 = vlaneseq
    %v985 = vshrl.u32 %v984, 7
    %v986 = vsub.s32 0, %v985
    %v987 = vrot.slane %v904, %v986
    %v988 = vmul.f32 %v894, %v987
    %v989 = vmul.f32 %v899, %v987
    %v990 = vsel %vm164, %v988, 0.0
    %991 = vadd.xlane.f32.xlu0 %v990
    %v992 = vpop.xlane.xlu0 %991
    %v993 = vsel %vm164, %v989, 0.0
    %994 = vadd.xlane.f32.xlu0 %v993
    %v995 = vpop.xlane.xlu0 %994
    %v996 = vstv %s725
    %v997 = vmul.f32 %v996, %v53
    %v998 = vmul.f32 %v996, %v54
    %v999 = vstv %s727
    %v1000 = vmul.f32 %v999, %v56
    %v1001 = vmul.f32 %v999, %v57
    %v1002 = vadd.f32 %v997, %v1000
    %v1003 = vadd.f32 %v998, %v1001
    %v1004 = vstv %s729
    %v1005 = vmul.f32 %v1004, %v59
    %v1006 = vmul.f32 %v1004, %v60
    %v1007 = vadd.f32 %v1002, %v1005
    %v1008 = vadd.f32 %v1003, %v1006
    %v1009 = vstv %s731
    %v1010 = vmul.f32 %v1009, %v62
    %v1011 = vmul.f32 %v1009, %v63
    %v1012 = vadd.f32 %v1007, %v1010
    %v1013 = vadd.f32 %v1008, %v1011
    %v1014 = vstv %s733
    %v1015 = vmul.f32 %v1014, %v65
    %v1016 = vmul.f32 %v1014, %v66
    %v1017 = vadd.f32 %v1012, %v1015
    %v1018 = vadd.f32 %v1013, %v1016
    %v1019 = vlaneseq
    %v1020 = vshrl.u32 %v1019, 7
    %v1021 = vsub.s32 0, %v1020
    %v1022 = vrot.slane %v981, %v1021
    %v1023 = vadd.f32 %v992, %v1022
    %v1024 = vadd.f32 %v995, %v1022
    %v1025 = vadd.f32 %v1023, %v1017
    %v1026 = vadd.f32 %v1024, %v1018
    %v1027 = vmul.f32 %v1025, 0.2
    %v1028 = vmul.f32 %v1026, 0.2
    %v1029 = vmax.f32 %v1025, %v1027
    %v1030 = vmax.f32 %v1026, %v1028
    %v1031 = vsel %vm51, %v1029, -1e+30
    %v1032 = vsel %vm52, %v1030, -1e+30
    %v1033 = vsel %vm164, %v1031, -inf
    %1034 = vmax.xlane.f32.xlu0 %v1033
    %v1035 = vpop.xlane.xlu0 %1034
    %v1036 = vsel %vm164, %v1032, -inf
    %1037 = vmax.xlane.f32.xlu0 %v1036
    %v1038 = vpop.xlane.xlu0 %1037
    %v1039 = vsub.f32 %v1031, %v1035
    %v1040 = vsub.f32 %v1032, %v1038
    %v1041 = vmul.f32 %v1039, 1.442695
    %v1042 = vpow.pop %v1041
    %v1043 = vmul.f32 %v1040, 1.442695
    %v1044 = vpow.pop %v1043
    %v1045 = vsel %vm51, %v1042, 0.0
    %v1046 = vsel %vm52, %v1044, 0.0
    %v1047 = vsel %vm164, %v1045, 0.0
    %1048 = vadd.xlane.f32.xlu0 %v1047
    %v1049 = vpop.xlane.xlu0 %1048
    %v1050 = vsel %vm164, %v1046, 0.0
    %1051 = vadd.xlane.f32.xlu0 %v1050
    %v1052 = vpop.xlane.xlu0 %1051
    %v1053 = vrcp.pop %v1049
    %v1054 = vrcp.pop %v1052
    %v1055 = vmul.f32 %v1045, %v1053
    %v1056 = vmul.f32 %v1046, %v1054
    %s1057 = scalar_lea.vmem %s4, 96
    %v1058 = vld [vmem:[%s1057] sm:$0xff]
    %v1059 = vld [vmem:[%s1057 + $0x8] sm:$0xff]
    %v1060 = vld [vmem:[%s1057 + $0x10] sm:$0xff]
    %v1061 = vld [vmem:[%s1057 + $0x18] sm:$0xff]
    %1062 = vmatprep.subr.mxu0 0.0
    %1063 = vmatpush1.msra.mxu0 %v1060
    %1064 = vmatprep.subr.mxu0 0.0
    %1065 = vmatpush1.msra.mxu0 %v1061
    %1066 = vmatprep.subr.mxu0 0.0
    %1067 = vmatpush1.msra.mxu0 0.0
    %1068 = vmatprep.subr.mxu0 0.0
    %1069 = vmatpush1.msra.mxu0 0.0
    %1070 = vmatprep.subr.mxu0 0.0
    %1071 = vmatpush1.msra.mxu0 0.0
    %1072 = vmatprep.subr.mxu0 0.0
    %1073 = vmatpush1.msra.mxu0 0.0
    %1074 = vmatprep.subr.mxu0 0.0
    %1075 = vmatpush1.msra.mxu0 0.0
    %1076 = vmatprep.subr.mxu0 0.0
    %1077 = vmatpush1.msra.mxu0 0.0
    %1078 = vmatprep.subr.mxu0 0.0
    %1079 = vmatpush1.msra.mxu0 0.0
    %1080 = vmatprep.subr.mxu0 0.0
    %1081 = vmatpush1.msra.mxu0 0.0
    %1082 = vmatprep.subr.mxu0 0.0
    %1083 = vmatpush1.msra.mxu0 0.0
    %1084 = vmatprep.subr.mxu0 0.0
    %1085 = vmatpush1.msra.mxu0 0.0
    %1086 = vmatprep.subr.mxu0 0.0
    %1087 = vmatpush1.msra.mxu0 0.0
    %1088 = vmatprep.subr.mxu0 0.0
    %1089 = vmatpush1.msra.mxu0 0.0
    %1090 = vmatprep.subr.mxu0 0.0
    %1091 = vmatpush1.msra.mxu0 0.0
    %1092 = vmatprep.subr.mxu0 0.0
    %1093 = vmatpush1.msra.mxu0 0.0
    %1094 = vmatprep.subr.mxu0 0.0
    %1095 = vmatpush1.msra.mxu0 0.0
    %1096 = vmatprep.subr.mxu0 0.0
    %1097 = vmatpush1.msra.mxu0 0.0
    %1098 = vmatprep.subr.mxu0 0.0
    %1099 = vmatpush1.msra.mxu0 0.0
    %1100 = vmatprep.subr.mxu0 0.0
    %1101 = vmatpush1.msra.mxu0 0.0
    %1102 = vmatprep.subr.mxu0 0.0
    %1103 = vmatpush1.msra.mxu0 0.0
    %1104 = vmatprep.subr.mxu0 0.0
    %1105 = vmatpush1.msra.mxu0 0.0
    %1106 = vmatprep.subr.mxu0 0.0
    %1107 = vmatpush1.msra.mxu0 0.0
    %1108 = vmatprep.subr.mxu0 0.0
    %1109 = vmatpush1.msra.mxu0 0.0
    %1110 = vmatprep.subr.mxu0 0.0
    %1111 = vmatpush1.msra.mxu0 0.0
    %1112 = vmatprep.subr.mxu0 0.0
    %1113 = vmatpush1.msra.mxu0 0.0
    %1114 = vmatprep.subr.mxu0 0.0
    %1115 = vmatpush1.msra.mxu0 0.0
    %1116 = vmatprep.subr.mxu0 0.0
    %1117 = vmatpush1.msra.mxu0 0.0
    %1118 = vmatprep.subr.mxu0 0.0
    %1119 = vmatpush1.msra.mxu0 0.0
    %1120 = vmatprep.subr.mxu0 0.0
    %1121 = vmatpush1.msra.mxu0 0.0
    %1122 = vmatprep.subr.mxu0 0.0
    %1123 = vmatpush1.msra.mxu0 0.0
    %1124 = vmatprep.subr.mxu0 0.0
    %1125 = vmatpush1.msra.mxu0 0.0
    %1126 = vmatprep.mubr.f32.mxu0 0.0
    %1127 = vmatmul.mubr.f32.gmra.mrb[0].mxu0 %v741
    %v1128 = vpop.f32.mrb[0].mxu0
    %v1129 = vadd.f32 0.0, %v1128
    %v1130 = vpop.f32.mrb[0].mxu0
    %1131 = vmatprep.mubr.f32.mxu0 0.0
    %1132 = vmatmul.mubr.f32.gmra.mrb[0].mxu0 %v744
    %v1133 = vpop.f32.mrb[0].mxu0
    %v1134 = vadd.f32 0.0, %v1133
    %v1135 = vpop.f32.mrb[0].mxu0
    %1136 = vdwg.mxu0
    %1137 = vmatprep.subr.mxu0 0.0
    %1138 = vmatpush1.msra.mxu0 %v1058
    %1139 = vmatprep.subr.mxu0 0.0
    %1140 = vmatpush1.msra.mxu0 %v1059
    %1141 = vmatprep.subr.mxu0 0.0
    %1142 = vmatpush1.msra.mxu0 0.0
    %1143 = vmatprep.subr.mxu0 0.0
    %1144 = vmatpush1.msra.mxu0 0.0
    %1145 = vmatprep.subr.mxu0 0.0
    %1146 = vmatpush1.msra.mxu0 0.0
    %1147 = vmatprep.subr.mxu0 0.0
    %1148 = vmatpush1.msra.mxu0 0.0
    %1149 = vmatprep.subr.mxu0 0.0
    %1150 = vmatpush1.msra.mxu0 0.0
    %1151 = vmatprep.subr.mxu0 0.0
    %1152 = vmatpush1.msra.mxu0 0.0
    %1153 = vmatprep.subr.mxu0 0.0
    %1154 = vmatpush1.msra.mxu0 0.0
    %1155 = vmatprep.subr.mxu0 0.0
    %1156 = vmatpush1.msra.mxu0 0.0
    %1157 = vmatprep.subr.mxu0 0.0
    %1158 = vmatpush1.msra.mxu0 0.0
    %1159 = vmatprep.subr.mxu0 0.0
    %1160 = vmatpush1.msra.mxu0 0.0
    %1161 = vmatprep.subr.mxu0 0.0
    %1162 = vmatpush1.msra.mxu0 0.0
    %1163 = vmatprep.subr.mxu0 0.0
    %1164 = vmatpush1.msra.mxu0 0.0
    %1165 = vmatprep.subr.mxu0 0.0
    %1166 = vmatpush1.msra.mxu0 0.0
    %1167 = vmatprep.subr.mxu0 0.0
    %1168 = vmatpush1.msra.mxu0 0.0
    %1169 = vmatprep.subr.mxu0 0.0
    %1170 = vmatpush1.msra.mxu0 0.0
    %1171 = vmatprep.subr.mxu0 0.0
    %1172 = vmatpush1.msra.mxu0 0.0
    %1173 = vmatprep.subr.mxu0 0.0
    %1174 = vmatpush1.msra.mxu0 0.0
    %1175 = vmatprep.subr.mxu0 0.0
    %1176 = vmatpush1.msra.mxu0 0.0
    %1177 = vmatprep.subr.mxu0 0.0
    %1178 = vmatpush1.msra.mxu0 0.0
    %1179 = vmatprep.subr.mxu0 0.0
    %1180 = vmatpush1.msra.mxu0 0.0
    %1181 = vmatprep.subr.mxu0 0.0
    %1182 = vmatpush1.msra.mxu0 0.0
    %1183 = vmatprep.subr.mxu0 0.0
    %1184 = vmatpush1.msra.mxu0 0.0
    %1185 = vmatprep.subr.mxu0 0.0
    %1186 = vmatpush1.msra.mxu0 0.0
    %1187 = vmatprep.subr.mxu0 0.0
    %1188 = vmatpush1.msra.mxu0 0.0
    %1189 = vmatprep.subr.mxu0 0.0
    %1190 = vmatpush1.msra.mxu0 0.0
    %1191 = vmatprep.subr.mxu0 0.0
    %1192 = vmatpush1.msra.mxu0 0.0
    %1193 = vmatprep.subr.mxu0 0.0
    %1194 = vmatpush1.msra.mxu0 0.0
    %1195 = vmatprep.subr.mxu0 0.0
    %1196 = vmatpush1.msra.mxu0 0.0
    %1197 = vmatprep.subr.mxu0 0.0
    %1198 = vmatpush1.msra.mxu0 0.0
    %1199 = vmatprep.subr.mxu0 0.0
    %1200 = vmatpush1.msra.mxu0 0.0
    %1201 = vmatprep.mubr.f32.mxu0 0.0
    %1202 = vmatmul.mubr.f32.gmra.mrb[0].mxu0 %v822
    %v1203 = vpop.f32.mrb[0].mxu0
    %v1204 = vadd.f32 %v1129, %v1203
    %v1205 = vpop.f32.mrb[0].mxu0
    %1206 = vmatprep.mubr.f32.mxu0 0.0
    %1207 = vmatmul.mubr.f32.gmra.mrb[0].mxu0 %v825
    %v1208 = vpop.f32.mrb[0].mxu0
    %v1209 = vadd.f32 %v1134, %v1208
    %v1210 = vpop.f32.mrb[0].mxu0
    %1211 = vdwg.mxu0
    %s1212 = scalar_lea.vmem %s5, 12
    %v1213 = vld [vmem:[%s1212] sm:$0x1]
    %v1214 = vld [vmem:[%s1212 + $0x1] sm:$0x1]
    %v1216 = vsel %vm164, %v1213, 0
    %v1219 = vsel %vm164, %v1204, 0
    %v1222 = vsel %vm164, %v1209, 0
    %1224 = vmatprep.subr.mxu0 0.0
    %1225 = vmatpush1.xpose.msra.mxu0 %v1219
    %1226 = vmatprep.subr.mxu0 0.0
    %1227 = vmatpush1.xpose.msra.mxu0 %v1222
    %1228 = vmatprep.subr.mxu0 0.0
    %1229 = vmatpush1.xpose.msra.mxu0 0.0
    %1230 = vmatprep.subr.mxu0 0.0
    %1231 = vmatpush1.xpose.msra.mxu0 0.0
    %1232 = vmatprep.subr.mxu0 0.0
    %1233 = vmatpush1.xpose.msra.mxu0 0.0
    %1234 = vmatprep.subr.mxu0 0.0
    %1235 = vmatpush1.xpose.msra.mxu0 0.0
    %1236 = vmatprep.subr.mxu0 0.0
    %1237 = vmatpush1.xpose.msra.mxu0 0.0
    %1238 = vmatprep.subr.mxu0 0.0
    %1239 = vmatpush1.xpose.msra.mxu0 0.0
    %1240 = vmatprep.subr.mxu0 0.0
    %1241 = vmatpush1.xpose.msra.mxu0 0.0
    %1242 = vmatprep.subr.mxu0 0.0
    %1243 = vmatpush1.xpose.msra.mxu0 0.0
    %1244 = vmatprep.subr.mxu0 0.0
    %1245 = vmatpush1.xpose.msra.mxu0 0.0
    %1246 = vmatprep.subr.mxu0 0.0
    %1247 = vmatpush1.xpose.msra.mxu0 0.0
    %1248 = vmatprep.subr.mxu0 0.0
    %1249 = vmatpush1.xpose.msra.mxu0 0.0
    %1250 = vmatprep.subr.mxu0 0.0
    %1251 = vmatpush1.xpose.msra.mxu0 0.0
    %1252 = vmatprep.subr.mxu0 0.0
    %1253 = vmatpush1.xpose.msra.mxu0 0.0
    %1254 = vmatprep.subr.mxu0 0.0
    %1255 = vmatpush1.xpose.msra.mxu0 0.0
    %1256 = vmatprep.subr.mxu0 0.0
    %1257 = vmatpush1.xpose.msra.mxu0 0.0
    %1258 = vmatprep.subr.mxu0 0.0
    %1259 = vmatpush1.xpose.msra.mxu0 0.0
    %1260 = vmatprep.subr.mxu0 0.0
    %1261 = vmatpush1.xpose.msra.mxu0 0.0
    %1262 = vmatprep.subr.mxu0 0.0
    %1263 = vmatpush1.xpose.msra.mxu0 0.0
    %1264 = vmatprep.subr.mxu0 0.0
    %1265 = vmatpush1.xpose.msra.mxu0 0.0
    %1266 = vmatprep.subr.mxu0 0.0
    %1267 = vmatpush1.xpose.msra.mxu0 0.0
    %1268 = vmatprep.subr.mxu0 0.0
    %1269 = vmatpush1.xpose.msra.mxu0 0.0
    %1270 = vmatprep.subr.mxu0 0.0
    %1271 = vmatpush1.xpose.msra.mxu0 0.0
    %1272 = vmatprep.subr.mxu0 0.0
    %1273 = vmatpush1.xpose.msra.mxu0 0.0
    %1274 = vmatprep.subr.mxu0 0.0
    %1275 = vmatpush1.xpose.msra.mxu0 0.0
    %1276 = vmatprep.subr.mxu0 0.0
    %1277 = vmatpush1.xpose.msra.mxu0 0.0
    %1278 = vmatprep.subr.mxu0 0.0
    %1279 = vmatpush1.xpose.msra.mxu0 0.0
    %1280 = vmatprep.subr.mxu0 0.0
    %1281 = vmatpush1.xpose.msra.mxu0 0.0
    %1282 = vmatprep.subr.mxu0 0.0
    %1283 = vmatpush1.xpose.msra.mxu0 0.0
    %1284 = vmatprep.subr.mxu0 0.0
    %1285 = vmatpush1.xpose.msra.mxu0 0.0
    %1286 = vmatprep.subr.mxu0 0.0
    %1287 = vmatpush1.xpose.msra.mxu0 0.0
    %1288 = vmatprep.mubr.f32.mxu0 0.0
    %1289 = vmatmul.mubr.f32.gmra.mrb[0].mxu0 %v1216
    %v1290 = vpop.f32.mrb[0].mxu0
    %v1291 = vadd.f32 0.0, %v1290
    %v1292 = vpop.f32.mrb[0].mxu0
    %1293 = vdwg.mxu0
    %v1294 = vlaneseq
    %v1295 = vshrl.u32 %v1294, 7
    %v1296 = vsub.s32 0, %v1295
    %v1297 = vrot.slane %v1214, %v1296
    %v1298 = vmul.f32 %v1204, %v1297
    %v1299 = vmul.f32 %v1209, %v1297
    %v1300 = vsel %vm164, %v1298, 0.0
    %1301 = vadd.xlane.f32.xlu0 %v1300
    %v1302 = vpop.xlane.xlu0 %1301
    %v1303 = vsel %vm164, %v1299, 0.0
    %1304 = vadd.xlane.f32.xlu0 %v1303
    %v1305 = vpop.xlane.xlu0 %1304
    %v1306 = vstv %s726
    %v1307 = vmul.f32 %v1306, %v53
    %v1308 = vmul.f32 %v1306, %v54
    %v1309 = vstv %s728
    %v1310 = vmul.f32 %v1309, %v56
    %v1311 = vmul.f32 %v1309, %v57
    %v1312 = vadd.f32 %v1307, %v1310
    %v1313 = vadd.f32 %v1308, %v1311
    %v1314 = vstv %s730
    %v1315 = vmul.f32 %v1314, %v59
    %v1316 = vmul.f32 %v1314, %v60
    %v1317 = vadd.f32 %v1312, %v1315
    %v1318 = vadd.f32 %v1313, %v1316
    %v1319 = vstv %s732
    %v1320 = vmul.f32 %v1319, %v62
    %v1321 = vmul.f32 %v1319, %v63
    %v1322 = vadd.f32 %v1317, %v1320
    %v1323 = vadd.f32 %v1318, %v1321
    %v1324 = vstv %s734
    %v1325 = vmul.f32 %v1324, %v65
    %v1326 = vmul.f32 %v1324, %v66
    %v1327 = vadd.f32 %v1322, %v1325
    %v1328 = vadd.f32 %v1323, %v1326
    %v1329 = vlaneseq
    %v1330 = vshrl.u32 %v1329, 7
    %v1331 = vsub.s32 0, %v1330
    %v1332 = vrot.slane %v1291, %v1331
    %v1333 = vadd.f32 %v1302, %v1332
    %v1334 = vadd.f32 %v1305, %v1332
    %v1335 = vadd.f32 %v1333, %v1327
    %v1336 = vadd.f32 %v1334, %v1328
    %v1337 = vmul.f32 %v1335, 0.2
    %v1338 = vmul.f32 %v1336, 0.2
    %v1339 = vmax.f32 %v1335, %v1337
    %v1340 = vmax.f32 %v1336, %v1338
    %v1341 = vsel %vm51, %v1339, -1e+30
    %v1342 = vsel %vm52, %v1340, -1e+30
    %v1343 = vsel %vm164, %v1341, -inf
    %1344 = vmax.xlane.f32.xlu0 %v1343
    %v1345 = vpop.xlane.xlu0 %1344
    %v1346 = vsel %vm164, %v1342, -inf
    %1347 = vmax.xlane.f32.xlu0 %v1346
    %v1348 = vpop.xlane.xlu0 %1347
    %v1349 = vsub.f32 %v1341, %v1345
    %v1350 = vsub.f32 %v1342, %v1348
    %v1351 = vmul.f32 %v1349, 1.442695
    %v1352 = vpow.pop %v1351
    %v1353 = vmul.f32 %v1350, 1.442695
    %v1354 = vpow.pop %v1353
    %v1355 = vsel %vm51, %v1352, 0.0
    %v1356 = vsel %vm52, %v1354, 0.0
    %v1357 = vsel %vm164, %v1355, 0.0
    %1358 = vadd.xlane.f32.xlu0 %v1357
    %v1359 = vpop.xlane.xlu0 %1358
    %v1360 = vsel %vm164, %v1356, 0.0
    %1361 = vadd.xlane.f32.xlu0 %v1360
    %v1362 = vpop.xlane.xlu0 %1361
    %v1363 = vrcp.pop %v1359
    %v1364 = vrcp.pop %v1362
    %v1365 = vmul.f32 %v1355, %v1363
    %v1366 = vmul.f32 %v1356, %v1364
    %v1367 = vld [vmem:[%s902 + $0x2] sm:$0x1]
    %v1368 = vlaneseq
    %v1369 = vshrl.u32 %v1368, 7
    %v1370 = vsub.s32 0, %v1369
    %v1371 = vrot.slane %v1367, %v1370
    %v1373 = vsel %vm164, %v1055, 0
    %v1376 = vsel %vm164, %v1056, 0
    %1378 = vmatprep.subr.mxu0 0.0
    %1379 = vmatpush1.msra.mxu0 %v894
    %1380 = vmatprep.subr.mxu0 0.0
    %1381 = vmatpush1.msra.mxu0 %v899
    %1382 = vmatprep.subr.mxu0 0.0
    %1383 = vmatpush1.msra.mxu0 0.0
    %1384 = vmatprep.subr.mxu0 0.0
    %1385 = vmatpush1.msra.mxu0 0.0
    %1386 = vmatprep.subr.mxu0 0.0
    %1387 = vmatpush1.msra.mxu0 0.0
    %1388 = vmatprep.subr.mxu0 0.0
    %1389 = vmatpush1.msra.mxu0 0.0
    %1390 = vmatprep.subr.mxu0 0.0
    %1391 = vmatpush1.msra.mxu0 0.0
    %1392 = vmatprep.subr.mxu0 0.0
    %1393 = vmatpush1.msra.mxu0 0.0
    %1394 = vmatprep.subr.mxu0 0.0
    %1395 = vmatpush1.msra.mxu0 0.0
    %1396 = vmatprep.subr.mxu0 0.0
    %1397 = vmatpush1.msra.mxu0 0.0
    %1398 = vmatprep.subr.mxu0 0.0
    %1399 = vmatpush1.msra.mxu0 0.0
    %1400 = vmatprep.subr.mxu0 0.0
    %1401 = vmatpush1.msra.mxu0 0.0
    %1402 = vmatprep.subr.mxu0 0.0
    %1403 = vmatpush1.msra.mxu0 0.0
    %1404 = vmatprep.subr.mxu0 0.0
    %1405 = vmatpush1.msra.mxu0 0.0
    %1406 = vmatprep.subr.mxu0 0.0
    %1407 = vmatpush1.msra.mxu0 0.0
    %1408 = vmatprep.subr.mxu0 0.0
    %1409 = vmatpush1.msra.mxu0 0.0
    %1410 = vmatprep.subr.mxu0 0.0
    %1411 = vmatpush1.msra.mxu0 0.0
    %1412 = vmatprep.subr.mxu0 0.0
    %1413 = vmatpush1.msra.mxu0 0.0
    %1414 = vmatprep.subr.mxu0 0.0
    %1415 = vmatpush1.msra.mxu0 0.0
    %1416 = vmatprep.subr.mxu0 0.0
    %1417 = vmatpush1.msra.mxu0 0.0
    %1418 = vmatprep.subr.mxu0 0.0
    %1419 = vmatpush1.msra.mxu0 0.0
    %1420 = vmatprep.subr.mxu0 0.0
    %1421 = vmatpush1.msra.mxu0 0.0
    %1422 = vmatprep.subr.mxu0 0.0
    %1423 = vmatpush1.msra.mxu0 0.0
    %1424 = vmatprep.subr.mxu0 0.0
    %1425 = vmatpush1.msra.mxu0 0.0
    %1426 = vmatprep.subr.mxu0 0.0
    %1427 = vmatpush1.msra.mxu0 0.0
    %1428 = vmatprep.subr.mxu0 0.0
    %1429 = vmatpush1.msra.mxu0 0.0
    %1430 = vmatprep.subr.mxu0 0.0
    %1431 = vmatpush1.msra.mxu0 0.0
    %1432 = vmatprep.subr.mxu0 0.0
    %1433 = vmatpush1.msra.mxu0 0.0
    %1434 = vmatprep.subr.mxu0 0.0
    %1435 = vmatpush1.msra.mxu0 0.0
    %1436 = vmatprep.subr.mxu0 0.0
    %1437 = vmatpush1.msra.mxu0 0.0
    %1438 = vmatprep.subr.mxu0 0.0
    %1439 = vmatpush1.msra.mxu0 0.0
    %1440 = vmatprep.subr.mxu0 0.0
    %1441 = vmatpush1.msra.mxu0 0.0
    %1442 = vmatprep.mubr.f32.mxu0 0.0
    %1443 = vmatmul.mubr.f32.gmra.mrb[0].mxu0 %v1373
    %v1444 = vpop.f32.mrb[0].mxu0
    %v1445 = vadd.f32 %v1371, %v1444
    %v1446 = vpop.f32.mrb[0].mxu0
    %1447 = vmatprep.mubr.f32.mxu0 0.0
    %1448 = vmatmul.mubr.f32.gmra.mrb[0].mxu0 %v1376
    %v1449 = vpop.f32.mrb[0].mxu0
    %v1450 = vadd.f32 %v1371, %v1449
    %v1451 = vpop.f32.mrb[0].mxu0
    %1452 = vdwg.mxu0
    %v1453 = vmax.f32 %v1445, 0.0
    %v1454 = vmax.f32 %v1450, 0.0
    %v1455 = vld [vmem:[%s1212 + $0x2] sm:$0x1]
    %v1456 = vlaneseq
    %v1457 = vshrl.u32 %v1456, 7
    %v1458 = vsub.s32 0, %v1457
    %v1459 = vrot.slane %v1455, %v1458
    %v1461 = vsel %vm164, %v1365, 0
    %v1464 = vsel %vm164, %v1366, 0
    %1466 = vmatprep.subr.mxu0 0.0
    %1467 = vmatpush1.msra.mxu0 %v1204
    %1468 = vmatprep.subr.mxu0 0.0
    %1469 = vmatpush1.msra.mxu0 %v1209
    %1470 = vmatprep.subr.mxu0 0.0
    %1471 = vmatpush1.msra.mxu0 0.0
    %1472 = vmatprep.subr.mxu0 0.0
    %1473 = vmatpush1.msra.mxu0 0.0
    %1474 = vmatprep.subr.mxu0 0.0
    %1475 = vmatpush1.msra.mxu0 0.0
    %1476 = vmatprep.subr.mxu0 0.0
    %1477 = vmatpush1.msra.mxu0 0.0
    %1478 = vmatprep.subr.mxu0 0.0
    %1479 = vmatpush1.msra.mxu0 0.0
    %1480 = vmatprep.subr.mxu0 0.0
    %1481 = vmatpush1.msra.mxu0 0.0
    %1482 = vmatprep.subr.mxu0 0.0
    %1483 = vmatpush1.msra.mxu0 0.0
    %1484 = vmatprep.subr.mxu0 0.0
    %1485 = vmatpush1.msra.mxu0 0.0
    %1486 = vmatprep.subr.mxu0 0.0
    %1487 = vmatpush1.msra.mxu0 0.0
    %1488 = vmatprep.subr.mxu0 0.0
    %1489 = vmatpush1.msra.mxu0 0.0
    %1490 = vmatprep.subr.mxu0 0.0
    %1491 = vmatpush1.msra.mxu0 0.0
    %1492 = vmatprep.subr.mxu0 0.0
    %1493 = vmatpush1.msra.mxu0 0.0
    %1494 = vmatprep.subr.mxu0 0.0
    %1495 = vmatpush1.msra.mxu0 0.0
    %1496 = vmatprep.subr.mxu0 0.0
    %1497 = vmatpush1.msra.mxu0 0.0
    %1498 = vmatprep.subr.mxu0 0.0
    %1499 = vmatpush1.msra.mxu0 0.0
    %1500 = vmatprep.subr.mxu0 0.0
    %1501 = vmatpush1.msra.mxu0 0.0
    %1502 = vmatprep.subr.mxu0 0.0
    %1503 = vmatpush1.msra.mxu0 0.0
    %1504 = vmatprep.subr.mxu0 0.0
    %1505 = vmatpush1.msra.mxu0 0.0
    %1506 = vmatprep.subr.mxu0 0.0
    %1507 = vmatpush1.msra.mxu0 0.0
    %1508 = vmatprep.subr.mxu0 0.0
    %1509 = vmatpush1.msra.mxu0 0.0
    %1510 = vmatprep.subr.mxu0 0.0
    %1511 = vmatpush1.msra.mxu0 0.0
    %1512 = vmatprep.subr.mxu0 0.0
    %1513 = vmatpush1.msra.mxu0 0.0
    %1514 = vmatprep.subr.mxu0 0.0
    %1515 = vmatpush1.msra.mxu0 0.0
    %1516 = vmatprep.subr.mxu0 0.0
    %1517 = vmatpush1.msra.mxu0 0.0
    %1518 = vmatprep.subr.mxu0 0.0
    %1519 = vmatpush1.msra.mxu0 0.0
    %1520 = vmatprep.subr.mxu0 0.0
    %1521 = vmatpush1.msra.mxu0 0.0
    %1522 = vmatprep.subr.mxu0 0.0
    %1523 = vmatpush1.msra.mxu0 0.0
    %1524 = vmatprep.subr.mxu0 0.0
    %1525 = vmatpush1.msra.mxu0 0.0
    %1526 = vmatprep.subr.mxu0 0.0
    %1527 = vmatpush1.msra.mxu0 0.0
    %1528 = vmatprep.subr.mxu0 0.0
    %1529 = vmatpush1.msra.mxu0 0.0
    %1530 = vmatprep.mubr.f32.mxu0 0.0
    %1531 = vmatmul.mubr.f32.gmra.mrb[0].mxu0 %v1461
    %v1532 = vpop.f32.mrb[0].mxu0
    %v1533 = vadd.f32 %v1459, %v1532
    %v1534 = vpop.f32.mrb[0].mxu0
    %1535 = vmatprep.mubr.f32.mxu0 0.0
    %1536 = vmatmul.mubr.f32.gmra.mrb[0].mxu0 %v1464
    %v1537 = vpop.f32.mrb[0].mxu0
    %v1538 = vadd.f32 %v1459, %v1537
    %v1539 = vpop.f32.mrb[0].mxu0
    %1540 = vdwg.mxu0
    %v1541 = vmax.f32 %v1533, 0.0
    %v1542 = vmax.f32 %v1538, 0.0
    %s1543 = sld [smem:[#allocation2 + $0x14]]
    %s1544 = sld [smem:[#allocation2 + $0x15]]
    %s1545 = sld [smem:[#allocation2 + $0x16]]
    %s1546 = sld [smem:[#allocation2 + $0x17]]
    %s1547 = sld [smem:[#allocation2 + $0x18]]
    %s1548 = scalar_lea.vmem %s4, 128
    %v1549 = vld [vmem:[%s1548] sm:$0xff]
    %v1550 = vld [vmem:[%s1548 + $0x8] sm:$0xff]
    %v1551 = vld [vmem:[%s1548 + $0x10] sm:$0xff]
    %v1552 = vld [vmem:[%s1548 + $0x18] sm:$0xff]
    %v1554 = vsel %vm164, %v1541, 0
    %v1557 = vsel %vm164, %v1542, 0
    %1559 = vmatprep.subr.mxu0 0.0
    %1560 = vmatpush1.msra.mxu0 %v1551
    %1561 = vmatprep.subr.mxu0 0.0
    %1562 = vmatpush1.msra.mxu0 %v1552
    %1563 = vmatprep.subr.mxu0 0.0
    %1564 = vmatpush1.msra.mxu0 0.0
    %1565 = vmatprep.subr.mxu0 0.0
    %1566 = vmatpush1.msra.mxu0 0.0
    %1567 = vmatprep.subr.mxu0 0.0
    %1568 = vmatpush1.msra.mxu0 0.0
    %1569 = vmatprep.subr.mxu0 0.0
    %1570 = vmatpush1.msra.mxu0 0.0
    %1571 = vmatprep.subr.mxu0 0.0
    %1572 = vmatpush1.msra.mxu0 0.0
    %1573 = vmatprep.subr.mxu0 0.0
    %1574 = vmatpush1.msra.mxu0 0.0
    %1575 = vmatprep.subr.mxu0 0.0
    %1576 = vmatpush1.msra.mxu0 0.0
    %1577 = vmatprep.subr.mxu0 0.0
    %1578 = vmatpush1.msra.mxu0 0.0
    %1579 = vmatprep.subr.mxu0 0.0
    %1580 = vmatpush1.msra.mxu0 0.0
    %1581 = vmatprep.subr.mxu0 0.0
    %1582 = vmatpush1.msra.mxu0 0.0
    %1583 = vmatprep.subr.mxu0 0.0
    %1584 = vmatpush1.msra.mxu0 0.0
    %1585 = vmatprep.subr.mxu0 0.0
    %1586 = vmatpush1.msra.mxu0 0.0
    %1587 = vmatprep.subr.mxu0 0.0
    %1588 = vmatpush1.msra.mxu0 0.0
    %1589 = vmatprep.subr.mxu0 0.0
    %1590 = vmatpush1.msra.mxu0 0.0
    %1591 = vmatprep.subr.mxu0 0.0
    %1592 = vmatpush1.msra.mxu0 0.0
    %1593 = vmatprep.subr.mxu0 0.0
    %1594 = vmatpush1.msra.mxu0 0.0
    %1595 = vmatprep.subr.mxu0 0.0
    %1596 = vmatpush1.msra.mxu0 0.0
    %1597 = vmatprep.subr.mxu0 0.0
    %1598 = vmatpush1.msra.mxu0 0.0
    %1599 = vmatprep.subr.mxu0 0.0
    %1600 = vmatpush1.msra.mxu0 0.0
    %1601 = vmatprep.subr.mxu0 0.0
    %1602 = vmatpush1.msra.mxu0 0.0
    %1603 = vmatprep.subr.mxu0 0.0
    %1604 = vmatpush1.msra.mxu0 0.0
    %1605 = vmatprep.subr.mxu0 0.0
    %1606 = vmatpush1.msra.mxu0 0.0
    %1607 = vmatprep.subr.mxu0 0.0
    %1608 = vmatpush1.msra.mxu0 0.0
    %1609 = vmatprep.subr.mxu0 0.0
    %1610 = vmatpush1.msra.mxu0 0.0
    %1611 = vmatprep.subr.mxu0 0.0
    %1612 = vmatpush1.msra.mxu0 0.0
    %1613 = vmatprep.subr.mxu0 0.0
    %1614 = vmatpush1.msra.mxu0 0.0
    %1615 = vmatprep.subr.mxu0 0.0
    %1616 = vmatpush1.msra.mxu0 0.0
    %1617 = vmatprep.subr.mxu0 0.0
    %1618 = vmatpush1.msra.mxu0 0.0
    %1619 = vmatprep.subr.mxu0 0.0
    %1620 = vmatpush1.msra.mxu0 0.0
    %1621 = vmatprep.subr.mxu0 0.0
    %1622 = vmatpush1.msra.mxu0 0.0
    %1623 = vmatprep.mubr.f32.mxu0 0.0
    %1624 = vmatmul.mubr.f32.gmra.mrb[0].mxu0 %v1554
    %v1625 = vpop.f32.mrb[0].mxu0
    %v1626 = vadd.f32 0.0, %v1625
    %v1627 = vpop.f32.mrb[0].mxu0
    %1628 = vmatprep.mubr.f32.mxu0 0.0
    %1629 = vmatmul.mubr.f32.gmra.mrb[0].mxu0 %v1557
    %v1630 = vpop.f32.mrb[0].mxu0
    %v1631 = vadd.f32 0.0, %v1630
    %v1632 = vpop.f32.mrb[0].mxu0
    %1633 = vdwg.mxu0
    %v1635 = vsel %vm164, %v1453, 0
    %v1638 = vsel %vm164, %v1454, 0
    %1640 = vmatprep.subr.mxu0 0.0
    %1641 = vmatpush1.msra.mxu0 %v1549
    %1642 = vmatprep.subr.mxu0 0.0
    %1643 = vmatpush1.msra.mxu0 %v1550
    %1644 = vmatprep.subr.mxu0 0.0
    %1645 = vmatpush1.msra.mxu0 0.0
    %1646 = vmatprep.subr.mxu0 0.0
    %1647 = vmatpush1.msra.mxu0 0.0
    %1648 = vmatprep.subr.mxu0 0.0
    %1649 = vmatpush1.msra.mxu0 0.0
    %1650 = vmatprep.subr.mxu0 0.0
    %1651 = vmatpush1.msra.mxu0 0.0
    %1652 = vmatprep.subr.mxu0 0.0
    %1653 = vmatpush1.msra.mxu0 0.0
    %1654 = vmatprep.subr.mxu0 0.0
    %1655 = vmatpush1.msra.mxu0 0.0
    %1656 = vmatprep.subr.mxu0 0.0
    %1657 = vmatpush1.msra.mxu0 0.0
    %1658 = vmatprep.subr.mxu0 0.0
    %1659 = vmatpush1.msra.mxu0 0.0
    %1660 = vmatprep.subr.mxu0 0.0
    %1661 = vmatpush1.msra.mxu0 0.0
    %1662 = vmatprep.subr.mxu0 0.0
    %1663 = vmatpush1.msra.mxu0 0.0
    %1664 = vmatprep.subr.mxu0 0.0
    %1665 = vmatpush1.msra.mxu0 0.0
    %1666 = vmatprep.subr.mxu0 0.0
    %1667 = vmatpush1.msra.mxu0 0.0
    %1668 = vmatprep.subr.mxu0 0.0
    %1669 = vmatpush1.msra.mxu0 0.0
    %1670 = vmatprep.subr.mxu0 0.0
    %1671 = vmatpush1.msra.mxu0 0.0
    %1672 = vmatprep.subr.mxu0 0.0
    %1673 = vmatpush1.msra.mxu0 0.0
    %1674 = vmatprep.subr.mxu0 0.0
    %1675 = vmatpush1.msra.mxu0 0.0
    %1676 = vmatprep.subr.mxu0 0.0
    %1677 = vmatpush1.msra.mxu0 0.0
    %1678 = vmatprep.subr.mxu0 0.0
    %1679 = vmatpush1.msra.mxu0 0.0
    %1680 = vmatprep.subr.mxu0 0.0
    %1681 = vmatpush1.msra.mxu0 0.0
    %1682 = vmatprep.subr.mxu0 0.0
    %1683 = vmatpush1.msra.mxu0 0.0
    %1684 = vmatprep.subr.mxu0 0.0
    %1685 = vmatpush1.msra.mxu0 0.0
    %1686 = vmatprep.subr.mxu0 0.0
    %1687 = vmatpush1.msra.mxu0 0.0
    %1688 = vmatprep.subr.mxu0 0.0
    %1689 = vmatpush1.msra.mxu0 0.0
    %1690 = vmatprep.subr.mxu0 0.0
    %1691 = vmatpush1.msra.mxu0 0.0
    %1692 = vmatprep.subr.mxu0 0.0
    %1693 = vmatpush1.msra.mxu0 0.0
    %1694 = vmatprep.subr.mxu0 0.0
    %1695 = vmatpush1.msra.mxu0 0.0
    %1696 = vmatprep.subr.mxu0 0.0
    %1697 = vmatpush1.msra.mxu0 0.0
    %1698 = vmatprep.subr.mxu0 0.0
    %1699 = vmatpush1.msra.mxu0 0.0
    %1700 = vmatprep.subr.mxu0 0.0
    %1701 = vmatpush1.msra.mxu0 0.0
    %1702 = vmatprep.subr.mxu0 0.0
    %1703 = vmatpush1.msra.mxu0 0.0
    %1704 = vmatprep.mubr.f32.mxu0 0.0
    %1705 = vmatmul.mubr.f32.gmra.mrb[0].mxu0 %v1635
    %v1706 = vpop.f32.mrb[0].mxu0
    %v1707 = vadd.f32 %v1626, %v1706
    %v1708 = vpop.f32.mrb[0].mxu0
    %1709 = vmatprep.mubr.f32.mxu0 0.0
    %1710 = vmatmul.mubr.f32.gmra.mrb[0].mxu0 %v1638
    %v1711 = vpop.f32.mrb[0].mxu0
    %v1712 = vadd.f32 %v1631, %v1711
    %v1713 = vpop.f32.mrb[0].mxu0
    %1714 = vdwg.mxu0
    %s1715 = scalar_lea.vmem %s5, 16
    %v1716 = vld [vmem:[%s1715] sm:$0x1]
    %v1717 = vld [vmem:[%s1715 + $0x1] sm:$0x1]
    %v1719 = vsel %vm80, %v1716, 0
    %v1722 = vsel %vm80, %v1707, 0
    %v1725 = vsel %vm80, %v1712, 0
    %1727 = vmatprep.subr.mxu0 0.0
    %1728 = vmatpush1.xpose.msra.mxu0 %v1722
    %1729 = vmatprep.subr.mxu0 0.0
    %1730 = vmatpush1.xpose.msra.mxu0 %v1725
    %1731 = vmatprep.subr.mxu0 0.0
    %1732 = vmatpush1.xpose.msra.mxu0 0.0
    %1733 = vmatprep.subr.mxu0 0.0
    %1734 = vmatpush1.xpose.msra.mxu0 0.0
    %1735 = vmatprep.subr.mxu0 0.0
    %1736 = vmatpush1.xpose.msra.mxu0 0.0
    %1737 = vmatprep.subr.mxu0 0.0
    %1738 = vmatpush1.xpose.msra.mxu0 0.0
    %1739 = vmatprep.subr.mxu0 0.0
    %1740 = vmatpush1.xpose.msra.mxu0 0.0
    %1741 = vmatprep.subr.mxu0 0.0
    %1742 = vmatpush1.xpose.msra.mxu0 0.0
    %1743 = vmatprep.subr.mxu0 0.0
    %1744 = vmatpush1.xpose.msra.mxu0 0.0
    %1745 = vmatprep.subr.mxu0 0.0
    %1746 = vmatpush1.xpose.msra.mxu0 0.0
    %1747 = vmatprep.subr.mxu0 0.0
    %1748 = vmatpush1.xpose.msra.mxu0 0.0
    %1749 = vmatprep.subr.mxu0 0.0
    %1750 = vmatpush1.xpose.msra.mxu0 0.0
    %1751 = vmatprep.subr.mxu0 0.0
    %1752 = vmatpush1.xpose.msra.mxu0 0.0
    %1753 = vmatprep.subr.mxu0 0.0
    %1754 = vmatpush1.xpose.msra.mxu0 0.0
    %1755 = vmatprep.subr.mxu0 0.0
    %1756 = vmatpush1.xpose.msra.mxu0 0.0
    %1757 = vmatprep.subr.mxu0 0.0
    %1758 = vmatpush1.xpose.msra.mxu0 0.0
    %1759 = vmatprep.subr.mxu0 0.0
    %1760 = vmatpush1.xpose.msra.mxu0 0.0
    %1761 = vmatprep.subr.mxu0 0.0
    %1762 = vmatpush1.xpose.msra.mxu0 0.0
    %1763 = vmatprep.subr.mxu0 0.0
    %1764 = vmatpush1.xpose.msra.mxu0 0.0
    %1765 = vmatprep.subr.mxu0 0.0
    %1766 = vmatpush1.xpose.msra.mxu0 0.0
    %1767 = vmatprep.subr.mxu0 0.0
    %1768 = vmatpush1.xpose.msra.mxu0 0.0
    %1769 = vmatprep.subr.mxu0 0.0
    %1770 = vmatpush1.xpose.msra.mxu0 0.0
    %1771 = vmatprep.subr.mxu0 0.0
    %1772 = vmatpush1.xpose.msra.mxu0 0.0
    %1773 = vmatprep.subr.mxu0 0.0
    %1774 = vmatpush1.xpose.msra.mxu0 0.0
    %1775 = vmatprep.subr.mxu0 0.0
    %1776 = vmatpush1.xpose.msra.mxu0 0.0
    %1777 = vmatprep.subr.mxu0 0.0
    %1778 = vmatpush1.xpose.msra.mxu0 0.0
    %1779 = vmatprep.subr.mxu0 0.0
    %1780 = vmatpush1.xpose.msra.mxu0 0.0
    %1781 = vmatprep.subr.mxu0 0.0
    %1782 = vmatpush1.xpose.msra.mxu0 0.0
    %1783 = vmatprep.subr.mxu0 0.0
    %1784 = vmatpush1.xpose.msra.mxu0 0.0
    %1785 = vmatprep.subr.mxu0 0.0
    %1786 = vmatpush1.xpose.msra.mxu0 0.0
    %1787 = vmatprep.subr.mxu0 0.0
    %1788 = vmatpush1.xpose.msra.mxu0 0.0
    %1789 = vmatprep.subr.mxu0 0.0
    %1790 = vmatpush1.xpose.msra.mxu0 0.0
    %1791 = vmatprep.mubr.f32.mxu0 0.0
    %1792 = vmatmul.mubr.f32.gmra.mrb[0].mxu0 %v1719
    %v1793 = vpop.f32.mrb[0].mxu0
    %v1794 = vadd.f32 0.0, %v1793
    %v1795 = vpop.f32.mrb[0].mxu0
    %1796 = vdwg.mxu0
    %v1797 = vlaneseq
    %v1798 = vshrl.u32 %v1797, 7
    %v1799 = vsub.s32 0, %v1798
    %v1800 = vrot.slane %v1717, %v1799
    %v1801 = vmul.f32 %v1707, %v1800
    %v1802 = vmul.f32 %v1712, %v1800
    %v1803 = vsel %vm80, %v1801, 0.0
    %1804 = vadd.xlane.f32.xlu0 %v1803
    %v1805 = vpop.xlane.xlu0 %1804
    %v1806 = vsel %vm80, %v1802, 0.0
    %1807 = vadd.xlane.f32.xlu0 %v1806
    %v1808 = vpop.xlane.xlu0 %1807
    %v1809 = vstv %s1543
    %v1810 = vmul.f32 %v1809, %v53
    %v1811 = vmul.f32 %v1809, %v54
    %v1812 = vstv %s1544
    %v1813 = vmul.f32 %v1812, %v56
    %v1814 = vmul.f32 %v1812, %v57
    %v1815 = vadd.f32 %v1810, %v1813
    %v1816 = vadd.f32 %v1811, %v1814
    %v1817 = vstv %s1545
    %v1818 = vmul.f32 %v1817, %v59
    %v1819 = vmul.f32 %v1817, %v60
    %v1820 = vadd.f32 %v1815, %v1818
    %v1821 = vadd.f32 %v1816, %v1819
    %v1822 = vstv %s1546
    %v1823 = vmul.f32 %v1822, %v62
    %v1824 = vmul.f32 %v1822, %v63
    %v1825 = vadd.f32 %v1820, %v1823
    %v1826 = vadd.f32 %v1821, %v1824
    %v1827 = vstv %s1547
    %v1828 = vmul.f32 %v1827, %v65
    %v1829 = vmul.f32 %v1827, %v66
    %v1830 = vadd.f32 %v1825, %v1828
    %v1831 = vadd.f32 %v1826, %v1829
    %v1832 = vlaneseq
    %v1833 = vshrl.u32 %v1832, 7
    %v1834 = vsub.s32 0, %v1833
    %v1835 = vrot.slane %v1794, %v1834
    %v1836 = vadd.f32 %v1805, %v1835
    %v1837 = vadd.f32 %v1808, %v1835
    %v1838 = vadd.f32 %v1836, %v1830
    %v1839 = vadd.f32 %v1837, %v1831
    %v1840 = vmul.f32 %v1838, 0.2
    %v1841 = vmul.f32 %v1839, 0.2
    %v1842 = vmax.f32 %v1838, %v1840
    %v1843 = vmax.f32 %v1839, %v1841
    %v1844 = vsel %vm51, %v1842, -1e+30
    %v1845 = vsel %vm52, %v1843, -1e+30
    %v1846 = vsel %vm164, %v1844, -inf
    %1847 = vmax.xlane.f32.xlu0 %v1846
    %v1848 = vpop.xlane.xlu0 %1847
    %v1849 = vsel %vm164, %v1845, -inf
    %1850 = vmax.xlane.f32.xlu0 %v1849
    %v1851 = vpop.xlane.xlu0 %1850
    %v1852 = vsub.f32 %v1844, %v1848
    %v1853 = vsub.f32 %v1845, %v1851
    %v1854 = vmul.f32 %v1852, 1.442695
    %v1855 = vpow.pop %v1854
    %v1856 = vmul.f32 %v1853, 1.442695
    %v1857 = vpow.pop %v1856
    %v1858 = vsel %vm51, %v1855, 0.0
    %v1859 = vsel %vm52, %v1857, 0.0
    %v1860 = vsel %vm164, %v1858, 0.0
    %1861 = vadd.xlane.f32.xlu0 %v1860
    %v1862 = vpop.xlane.xlu0 %1861
    %v1863 = vsel %vm164, %v1859, 0.0
    %1864 = vadd.xlane.f32.xlu0 %v1863
    %v1865 = vpop.xlane.xlu0 %1864
    %v1866 = vrcp.pop %v1862
    %v1867 = vrcp.pop %v1865
    %v1868 = vmul.f32 %v1858, %v1866
    %v1869 = vmul.f32 %v1859, %v1867
    %v1870 = vld [vmem:[%s1715 + $0x2] sm:$0x1]
    %v1871 = vlaneseq
    %v1872 = vshrl.u32 %v1871, 7
    %v1873 = vsub.s32 0, %v1872
    %v1874 = vrot.slane %v1870, %v1873
    %v1876 = vsel %vm164, %v1868, 0
    %v1879 = vsel %vm164, %v1869, 0
    %1881 = vmatprep.subr.mxu0 0.0
    %1882 = vmatpush1.msra.mxu0 %v1707
    %1883 = vmatprep.subr.mxu0 0.0
    %1884 = vmatpush1.msra.mxu0 %v1712
    %1885 = vmatprep.subr.mxu0 0.0
    %1886 = vmatpush1.msra.mxu0 0.0
    %1887 = vmatprep.subr.mxu0 0.0
    %1888 = vmatpush1.msra.mxu0 0.0
    %1889 = vmatprep.subr.mxu0 0.0
    %1890 = vmatpush1.msra.mxu0 0.0
    %1891 = vmatprep.subr.mxu0 0.0
    %1892 = vmatpush1.msra.mxu0 0.0
    %1893 = vmatprep.subr.mxu0 0.0
    %1894 = vmatpush1.msra.mxu0 0.0
    %1895 = vmatprep.subr.mxu0 0.0
    %1896 = vmatpush1.msra.mxu0 0.0
    %1897 = vmatprep.subr.mxu0 0.0
    %1898 = vmatpush1.msra.mxu0 0.0
    %1899 = vmatprep.subr.mxu0 0.0
    %1900 = vmatpush1.msra.mxu0 0.0
    %1901 = vmatprep.subr.mxu0 0.0
    %1902 = vmatpush1.msra.mxu0 0.0
    %1903 = vmatprep.subr.mxu0 0.0
    %1904 = vmatpush1.msra.mxu0 0.0
    %1905 = vmatprep.subr.mxu0 0.0
    %1906 = vmatpush1.msra.mxu0 0.0
    %1907 = vmatprep.subr.mxu0 0.0
    %1908 = vmatpush1.msra.mxu0 0.0
    %1909 = vmatprep.subr.mxu0 0.0
    %1910 = vmatpush1.msra.mxu0 0.0
    %1911 = vmatprep.subr.mxu0 0.0
    %1912 = vmatpush1.msra.mxu0 0.0
    %1913 = vmatprep.subr.mxu0 0.0
    %1914 = vmatpush1.msra.mxu0 0.0
    %1915 = vmatprep.subr.mxu0 0.0
    %1916 = vmatpush1.msra.mxu0 0.0
    %1917 = vmatprep.subr.mxu0 0.0
    %1918 = vmatpush1.msra.mxu0 0.0
    %1919 = vmatprep.subr.mxu0 0.0
    %1920 = vmatpush1.msra.mxu0 0.0
    %1921 = vmatprep.subr.mxu0 0.0
    %1922 = vmatpush1.msra.mxu0 0.0
    %1923 = vmatprep.subr.mxu0 0.0
    %1924 = vmatpush1.msra.mxu0 0.0
    %1925 = vmatprep.subr.mxu0 0.0
    %1926 = vmatpush1.msra.mxu0 0.0
    %1927 = vmatprep.subr.mxu0 0.0
    %1928 = vmatpush1.msra.mxu0 0.0
    %1929 = vmatprep.subr.mxu0 0.0
    %1930 = vmatpush1.msra.mxu0 0.0
    %1931 = vmatprep.subr.mxu0 0.0
    %1932 = vmatpush1.msra.mxu0 0.0
    %1933 = vmatprep.subr.mxu0 0.0
    %1934 = vmatpush1.msra.mxu0 0.0
    %1935 = vmatprep.subr.mxu0 0.0
    %1936 = vmatpush1.msra.mxu0 0.0
    %1937 = vmatprep.subr.mxu0 0.0
    %1938 = vmatpush1.msra.mxu0 0.0
    %1939 = vmatprep.subr.mxu0 0.0
    %1940 = vmatpush1.msra.mxu0 0.0
    %1941 = vmatprep.subr.mxu0 0.0
    %1942 = vmatpush1.msra.mxu0 0.0
    %1943 = vmatprep.subr.mxu0 0.0
    %1944 = vmatpush1.msra.mxu0 0.0
    %1945 = vmatprep.mubr.f32.mxu0 0.0
    %1946 = vmatmul.mubr.f32.gmra.mrb[0].mxu0 %v1876
    %v1947 = vpop.f32.mrb[0].mxu0
    %v1948 = vadd.f32 %v1874, %v1947
    %v1949 = vpop.f32.mrb[0].mxu0
    %1950 = vmatprep.mubr.f32.mxu0 0.0
    %1951 = vmatmul.mubr.f32.gmra.mrb[0].mxu0 %v1879
    %v1952 = vpop.f32.mrb[0].mxu0
    %v1953 = vadd.f32 %v1874, %v1952
    %v1954 = vpop.f32.mrb[0].mxu0
    %1955 = vdwg.mxu0
    %v1956 = vmax.f32 %v1948, 0.0
    %v1957 = vmax.f32 %v1953, 0.0
    %v1958 = vld [vmem:[%s6] sm:$0x3]
    %v1960 = vsel %vm164, %v1958, 0
    %1962 = vmatprep.subr.mxu0 0.0
    %1963 = vmatpush1.msra.mxu0 %v1956
    %1964 = vmatprep.subr.mxu0 0.0
    %1965 = vmatpush1.msra.mxu0 %v1957
    %1966 = vmatprep.subr.mxu0 0.0
    %1967 = vmatpush1.msra.mxu0 0.0
    %1968 = vmatprep.subr.mxu0 0.0
    %1969 = vmatpush1.msra.mxu0 0.0
    %1970 = vmatprep.subr.mxu0 0.0
    %1971 = vmatpush1.msra.mxu0 0.0
    %1972 = vmatprep.subr.mxu0 0.0
    %1973 = vmatpush1.msra.mxu0 0.0
    %1974 = vmatprep.subr.mxu0 0.0
    %1975 = vmatpush1.msra.mxu0 0.0
    %1976 = vmatprep.subr.mxu0 0.0
    %1977 = vmatpush1.msra.mxu0 0.0
    %1978 = vmatprep.subr.mxu0 0.0
    %1979 = vmatpush1.msra.mxu0 0.0
    %1980 = vmatprep.subr.mxu0 0.0
    %1981 = vmatpush1.msra.mxu0 0.0
    %1982 = vmatprep.subr.mxu0 0.0
    %1983 = vmatpush1.msra.mxu0 0.0
    %1984 = vmatprep.subr.mxu0 0.0
    %1985 = vmatpush1.msra.mxu0 0.0
    %1986 = vmatprep.subr.mxu0 0.0
    %1987 = vmatpush1.msra.mxu0 0.0
    %1988 = vmatprep.subr.mxu0 0.0
    %1989 = vmatpush1.msra.mxu0 0.0
    %1990 = vmatprep.subr.mxu0 0.0
    %1991 = vmatpush1.msra.mxu0 0.0
    %1992 = vmatprep.subr.mxu0 0.0
    %1993 = vmatpush1.msra.mxu0 0.0
    %1994 = vmatprep.subr.mxu0 0.0
    %1995 = vmatpush1.msra.mxu0 0.0
    %1996 = vmatprep.subr.mxu0 0.0
    %1997 = vmatpush1.msra.mxu0 0.0
    %1998 = vmatprep.subr.mxu0 0.0
    %1999 = vmatpush1.msra.mxu0 0.0
    %2000 = vmatprep.subr.mxu0 0.0
    %2001 = vmatpush1.msra.mxu0 0.0
    %2002 = vmatprep.subr.mxu0 0.0
    %2003 = vmatpush1.msra.mxu0 0.0
    %2004 = vmatprep.subr.mxu0 0.0
    %2005 = vmatpush1.msra.mxu0 0.0
    %2006 = vmatprep.subr.mxu0 0.0
    %2007 = vmatpush1.msra.mxu0 0.0
    %2008 = vmatprep.subr.mxu0 0.0
    %2009 = vmatpush1.msra.mxu0 0.0
    %2010 = vmatprep.subr.mxu0 0.0
    %2011 = vmatpush1.msra.mxu0 0.0
    %2012 = vmatprep.subr.mxu0 0.0
    %2013 = vmatpush1.msra.mxu0 0.0
    %2014 = vmatprep.subr.mxu0 0.0
    %2015 = vmatpush1.msra.mxu0 0.0
    %2016 = vmatprep.subr.mxu0 0.0
    %2017 = vmatpush1.msra.mxu0 0.0
    %2018 = vmatprep.subr.mxu0 0.0
    %2019 = vmatpush1.msra.mxu0 0.0
    %2020 = vmatprep.subr.mxu0 0.0
    %2021 = vmatpush1.msra.mxu0 0.0
    %2022 = vmatprep.subr.mxu0 0.0
    %2023 = vmatpush1.msra.mxu0 0.0
    %2024 = vmatprep.subr.mxu0 0.0
    %2025 = vmatpush1.msra.mxu0 0.0
    %2026 = vmatprep.mubr.f32.mxu0 0.0
    %2027 = vmatmul.mubr.f32.gmra.mrb[0].mxu0 %v1960
    %v2028 = vpop.f32.mrb[0].mxu0
    %v2029 = vadd.f32 0.0, %v2028
    %v2030 = vpop.f32.mrb[0].mxu0
    %2031 = vdwg.mxu0
    %v2032 = vld [vmem:[%s7] sm:$0x3]
    %v2033 = vld [vmem:[%s8] sm:$0xff]
    %v2034 = vld [vmem:[%s8 + $0x8] sm:$0xff]
    %v2035 = vld [vmem:[%s8 + $0x10] sm:$0xff]
    %v2036 = vld [vmem:[%s8 + $0x18] sm:$0xff]
    %vm2037 = vcmask 261120
    %v2039 = vsel %vm2037, %v2032, 0
    %2041 = vmatprep.subr.mxu0 0.0
    %2042 = vmatpush1.msra.mxu0 %v2033
    %2043 = vmatprep.subr.mxu0 0.0
    %2044 = vmatpush1.msra.mxu0 %v2034
    %2045 = vmatprep.subr.mxu0 0.0
    %2046 = vmatpush1.msra.mxu0 %v2035
    %2047 = vmatprep.subr.mxu0 0.0
    %2048 = vmatpush1.msra.mxu0 %v2036
    %2049 = vmatprep.subr.mxu0 0.0
    %2050 = vmatpush1.msra.mxu0 0.0
    %2051 = vmatprep.subr.mxu0 0.0
    %2052 = vmatpush1.msra.mxu0 0.0
    %2053 = vmatprep.subr.mxu0 0.0
    %2054 = vmatpush1.msra.mxu0 0.0
    %2055 = vmatprep.subr.mxu0 0.0
    %2056 = vmatpush1.msra.mxu0 0.0
    %2057 = vmatprep.subr.mxu0 0.0
    %2058 = vmatpush1.msra.mxu0 0.0
    %2059 = vmatprep.subr.mxu0 0.0
    %2060 = vmatpush1.msra.mxu0 0.0
    %2061 = vmatprep.subr.mxu0 0.0
    %2062 = vmatpush1.msra.mxu0 0.0
    %2063 = vmatprep.subr.mxu0 0.0
    %2064 = vmatpush1.msra.mxu0 0.0
    %2065 = vmatprep.subr.mxu0 0.0
    %2066 = vmatpush1.msra.mxu0 0.0
    %2067 = vmatprep.subr.mxu0 0.0
    %2068 = vmatpush1.msra.mxu0 0.0
    %2069 = vmatprep.subr.mxu0 0.0
    %2070 = vmatpush1.msra.mxu0 0.0
    %2071 = vmatprep.subr.mxu0 0.0
    %2072 = vmatpush1.msra.mxu0 0.0
    %2073 = vmatprep.subr.mxu0 0.0
    %2074 = vmatpush1.msra.mxu0 0.0
    %2075 = vmatprep.subr.mxu0 0.0
    %2076 = vmatpush1.msra.mxu0 0.0
    %2077 = vmatprep.subr.mxu0 0.0
    %2078 = vmatpush1.msra.mxu0 0.0
    %2079 = vmatprep.subr.mxu0 0.0
    %2080 = vmatpush1.msra.mxu0 0.0
    %2081 = vmatprep.subr.mxu0 0.0
    %2082 = vmatpush1.msra.mxu0 0.0
    %2083 = vmatprep.subr.mxu0 0.0
    %2084 = vmatpush1.msra.mxu0 0.0
    %2085 = vmatprep.subr.mxu0 0.0
    %2086 = vmatpush1.msra.mxu0 0.0
    %2087 = vmatprep.subr.mxu0 0.0
    %2088 = vmatpush1.msra.mxu0 0.0
    %2089 = vmatprep.subr.mxu0 0.0
    %2090 = vmatpush1.msra.mxu0 0.0
    %2091 = vmatprep.subr.mxu0 0.0
    %2092 = vmatpush1.msra.mxu0 0.0
    %2093 = vmatprep.subr.mxu0 0.0
    %2094 = vmatpush1.msra.mxu0 0.0
    %2095 = vmatprep.subr.mxu0 0.0
    %2096 = vmatpush1.msra.mxu0 0.0
    %2097 = vmatprep.subr.mxu0 0.0
    %2098 = vmatpush1.msra.mxu0 0.0
    %2099 = vmatprep.subr.mxu0 0.0
    %2100 = vmatpush1.msra.mxu0 0.0
    %2101 = vmatprep.subr.mxu0 0.0
    %2102 = vmatpush1.msra.mxu0 0.0
    %2103 = vmatprep.subr.mxu0 0.0
    %2104 = vmatpush1.msra.mxu0 0.0
    %2105 = vmatprep.mubr.f32.mxu0 0.0
    %2106 = vmatmul.mubr.f32.gmra.mrb[0].mxu0 %v2039
    %v2107 = vpop.f32.mrb[0].mxu0
    %v2108 = vadd.f32 0.0, %v2107
    %v2109 = vpop.f32.mrb[0].mxu0
    %2110 = vdwg.mxu0
    %v2111 = vmul.f32 %v2108, %v2108
    %vm2112 = vcmask 25600
    %v2113 = vsel %vm2112, %v2111, 0.0
    %2114 = vadd.xlane.f32.xlu0 %v2113
    %v2115 = vpop.xlane.xlu0 %2114
    %v2116 = vmax.f32 %v2115, 1e-24
    %v2117 = vrsqrt.pop %v2116
    %v2118 = vmul.f32 %v2108, %v2117
    %v2119 = vld [vmem:[%s9] sm:$0xff]
    %v2120 = vld [vmem:[%s9 + $0x8] sm:$0xf]
    %v2121 = vld [vmem:[%s9 + $0x10] sm:$0x1]
    %v2122 = vld [vmem:[%s9 + $0x18] sm:$0x3f]
    %v2123 = vld [vmem:[%s9 + $0x20] sm:$0x1]
    %vm2124 = vcmask 31744
    %v2126 = vsel %vm2124, %v2118, 0
    %vm2128 = vcmask 1043456
    %v2130 = vsel %vm2128, %v2120, 0
    %2132 = vmatprep.subr.mxu0 0.0
    %2133 = vmatpush1.msra.mxu0 %v2130
    %2134 = vmatprep.subr.mxu0 0.0
    %2135 = vmatpush1.msra.mxu0 0.0
    %2136 = vmatprep.subr.mxu0 0.0
    %2137 = vmatpush1.msra.mxu0 0.0
    %2138 = vmatprep.subr.mxu0 0.0
    %2139 = vmatpush1.msra.mxu0 0.0
    %2140 = vmatprep.subr.mxu0 0.0
    %2141 = vmatpush1.msra.mxu0 0.0
    %2142 = vmatprep.subr.mxu0 0.0
    %2143 = vmatpush1.msra.mxu0 0.0
    %2144 = vmatprep.subr.mxu0 0.0
    %2145 = vmatpush1.msra.mxu0 0.0
    %2146 = vmatprep.subr.mxu0 0.0
    %2147 = vmatpush1.msra.mxu0 0.0
    %2148 = vmatprep.subr.mxu0 0.0
    %2149 = vmatpush1.msra.mxu0 0.0
    %2150 = vmatprep.subr.mxu0 0.0
    %2151 = vmatpush1.msra.mxu0 0.0
    %2152 = vmatprep.subr.mxu0 0.0
    %2153 = vmatpush1.msra.mxu0 0.0
    %2154 = vmatprep.subr.mxu0 0.0
    %2155 = vmatpush1.msra.mxu0 0.0
    %2156 = vmatprep.subr.mxu0 0.0
    %2157 = vmatpush1.msra.mxu0 0.0
    %2158 = vmatprep.subr.mxu0 0.0
    %2159 = vmatpush1.msra.mxu0 0.0
    %2160 = vmatprep.subr.mxu0 0.0
    %2161 = vmatpush1.msra.mxu0 0.0
    %2162 = vmatprep.subr.mxu0 0.0
    %2163 = vmatpush1.msra.mxu0 0.0
    %2164 = vmatprep.subr.mxu0 0.0
    %2165 = vmatpush1.msra.mxu0 0.0
    %2166 = vmatprep.subr.mxu0 0.0
    %2167 = vmatpush1.msra.mxu0 0.0
    %2168 = vmatprep.subr.mxu0 0.0
    %2169 = vmatpush1.msra.mxu0 0.0
    %2170 = vmatprep.subr.mxu0 0.0
    %2171 = vmatpush1.msra.mxu0 0.0
    %2172 = vmatprep.subr.mxu0 0.0
    %2173 = vmatpush1.msra.mxu0 0.0
    %2174 = vmatprep.subr.mxu0 0.0
    %2175 = vmatpush1.msra.mxu0 0.0
    %2176 = vmatprep.subr.mxu0 0.0
    %2177 = vmatpush1.msra.mxu0 0.0
    %2178 = vmatprep.subr.mxu0 0.0
    %2179 = vmatpush1.msra.mxu0 0.0
    %2180 = vmatprep.subr.mxu0 0.0
    %2181 = vmatpush1.msra.mxu0 0.0
    %2182 = vmatprep.subr.mxu0 0.0
    %2183 = vmatpush1.msra.mxu0 0.0
    %2184 = vmatprep.subr.mxu0 0.0
    %2185 = vmatpush1.msra.mxu0 0.0
    %2186 = vmatprep.subr.mxu0 0.0
    %2187 = vmatpush1.msra.mxu0 0.0
    %2188 = vmatprep.subr.mxu0 0.0
    %2189 = vmatpush1.msra.mxu0 0.0
    %2190 = vmatprep.subr.mxu0 0.0
    %2191 = vmatpush1.msra.mxu0 0.0
    %2192 = vmatprep.subr.mxu0 0.0
    %2193 = vmatpush1.msra.mxu0 0.0
    %2194 = vmatprep.subr.mxu0 0.0
    %2195 = vmatpush1.msra.mxu0 0.0
    %2196 = vmatprep.mubr.f32.mxu0 0.0
    %2197 = vmatmul.mubr.f32.gmra.mrb[0].mxu0 %v2126
    %v2198 = vpop.f32.mrb[0].mxu0
    %v2199 = vadd.f32 0.0, %v2198
    %v2200 = vpop.f32.mrb[0].mxu0
    %2201 = vdwg.mxu0
    %v2203 = vsel %vm80, %v2029, 0
    %2205 = vmatprep.subr.mxu0 0.0
    %2206 = vmatpush1.msra.mxu0 %v2119
    %2207 = vmatprep.subr.mxu0 0.0
    %2208 = vmatpush1.msra.mxu0 0.0
    %2209 = vmatprep.subr.mxu0 0.0
    %2210 = vmatpush1.msra.mxu0 0.0
    %2211 = vmatprep.subr.mxu0 0.0
    %2212 = vmatpush1.msra.mxu0 0.0
    %2213 = vmatprep.subr.mxu0 0.0
    %2214 = vmatpush1.msra.mxu0 0.0
    %2215 = vmatprep.subr.mxu0 0.0
    %2216 = vmatpush1.msra.mxu0 0.0
    %2217 = vmatprep.subr.mxu0 0.0
    %2218 = vmatpush1.msra.mxu0 0.0
    %2219 = vmatprep.subr.mxu0 0.0
    %2220 = vmatpush1.msra.mxu0 0.0
    %2221 = vmatprep.subr.mxu0 0.0
    %2222 = vmatpush1.msra.mxu0 0.0
    %2223 = vmatprep.subr.mxu0 0.0
    %2224 = vmatpush1.msra.mxu0 0.0
    %2225 = vmatprep.subr.mxu0 0.0
    %2226 = vmatpush1.msra.mxu0 0.0
    %2227 = vmatprep.subr.mxu0 0.0
    %2228 = vmatpush1.msra.mxu0 0.0
    %2229 = vmatprep.subr.mxu0 0.0
    %2230 = vmatpush1.msra.mxu0 0.0
    %2231 = vmatprep.subr.mxu0 0.0
    %2232 = vmatpush1.msra.mxu0 0.0
    %2233 = vmatprep.subr.mxu0 0.0
    %2234 = vmatpush1.msra.mxu0 0.0
    %2235 = vmatprep.subr.mxu0 0.0
    %2236 = vmatpush1.msra.mxu0 0.0
    %2237 = vmatprep.subr.mxu0 0.0
    %2238 = vmatpush1.msra.mxu0 0.0
    %2239 = vmatprep.subr.mxu0 0.0
    %2240 = vmatpush1.msra.mxu0 0.0
    %2241 = vmatprep.subr.mxu0 0.0
    %2242 = vmatpush1.msra.mxu0 0.0
    %2243 = vmatprep.subr.mxu0 0.0
    %2244 = vmatpush1.msra.mxu0 0.0
    %2245 = vmatprep.subr.mxu0 0.0
    %2246 = vmatpush1.msra.mxu0 0.0
    %2247 = vmatprep.subr.mxu0 0.0
    %2248 = vmatpush1.msra.mxu0 0.0
    %2249 = vmatprep.subr.mxu0 0.0
    %2250 = vmatpush1.msra.mxu0 0.0
    %2251 = vmatprep.subr.mxu0 0.0
    %2252 = vmatpush1.msra.mxu0 0.0
    %2253 = vmatprep.subr.mxu0 0.0
    %2254 = vmatpush1.msra.mxu0 0.0
    %2255 = vmatprep.subr.mxu0 0.0
    %2256 = vmatpush1.msra.mxu0 0.0
    %2257 = vmatprep.subr.mxu0 0.0
    %2258 = vmatpush1.msra.mxu0 0.0
    %2259 = vmatprep.subr.mxu0 0.0
    %2260 = vmatpush1.msra.mxu0 0.0
    %2261 = vmatprep.subr.mxu0 0.0
    %2262 = vmatpush1.msra.mxu0 0.0
    %2263 = vmatprep.subr.mxu0 0.0
    %2264 = vmatpush1.msra.mxu0 0.0
    %2265 = vmatprep.subr.mxu0 0.0
    %2266 = vmatpush1.msra.mxu0 0.0
    %2267 = vmatprep.subr.mxu0 0.0
    %2268 = vmatpush1.msra.mxu0 0.0
    %2269 = vmatprep.mubr.f32.mxu0 0.0
    %2270 = vmatmul.mubr.f32.gmra.mrb[0].mxu0 %v2203
    %v2271 = vpop.f32.mrb[0].mxu0
    %v2272 = vadd.f32 %v2199, %v2271
    %v2273 = vpop.f32.mrb[0].mxu0
    %2274 = vdwg.mxu0
    %v2275 = vlaneseq
    %v2276 = vshrl.u32 %v2275, 7
    %v2277 = vsub.s32 0, %v2276
    %v2278 = vrot.slane %v2121, %v2277
    %v2279 = vadd.f32 %v2272, %v2278
    %v2280 = vmax.f32 %v2279, 0.0
    %v2281 = vlaneseq
    %v2282 = vshrl.u32 %v2281, 7
    %v2283 = vsub.s32 0, %v2282
    %v2284 = vrot.slane %v2123, %v2283
    %vm2285 = vcmask 48128
    %v2287 = vsel %vm2285, %v2280, 0
    %vm2289 = vcmask 1045504
    %v2291 = vsel %vm2289, %v2122, 0
    %2293 = vmatprep.subr.mxu0 0.0
    %2294 = vmatpush1.msra.mxu0 %v2291
    %2295 = vmatprep.subr.mxu0 0.0
    %2296 = vmatpush1.msra.mxu0 0.0
    %2297 = vmatprep.subr.mxu0 0.0
    %2298 = vmatpush1.msra.mxu0 0.0
    %2299 = vmatprep.subr.mxu0 0.0
    %2300 = vmatpush1.msra.mxu0 0.0
    %2301 = vmatprep.subr.mxu0 0.0
    %2302 = vmatpush1.msra.mxu0 0.0
    %2303 = vmatprep.subr.mxu0 0.0
    %2304 = vmatpush1.msra.mxu0 0.0
    %2305 = vmatprep.subr.mxu0 0.0
    %2306 = vmatpush1.msra.mxu0 0.0
    %2307 = vmatprep.subr.mxu0 0.0
    %2308 = vmatpush1.msra.mxu0 0.0
    %2309 = vmatprep.subr.mxu0 0.0
    %2310 = vmatpush1.msra.mxu0 0.0
    %2311 = vmatprep.subr.mxu0 0.0
    %2312 = vmatpush1.msra.mxu0 0.0
    %2313 = vmatprep.subr.mxu0 0.0
    %2314 = vmatpush1.msra.mxu0 0.0
    %2315 = vmatprep.subr.mxu0 0.0
    %2316 = vmatpush1.msra.mxu0 0.0
    %2317 = vmatprep.subr.mxu0 0.0
    %2318 = vmatpush1.msra.mxu0 0.0
    %2319 = vmatprep.subr.mxu0 0.0
    %2320 = vmatpush1.msra.mxu0 0.0
    %2321 = vmatprep.subr.mxu0 0.0
    %2322 = vmatpush1.msra.mxu0 0.0
    %2323 = vmatprep.subr.mxu0 0.0
    %2324 = vmatpush1.msra.mxu0 0.0
    %2325 = vmatprep.subr.mxu0 0.0
    %2326 = vmatpush1.msra.mxu0 0.0
    %2327 = vmatprep.subr.mxu0 0.0
    %2328 = vmatpush1.msra.mxu0 0.0
    %2329 = vmatprep.subr.mxu0 0.0
    %2330 = vmatpush1.msra.mxu0 0.0
    %2331 = vmatprep.subr.mxu0 0.0
    %2332 = vmatpush1.msra.mxu0 0.0
    %2333 = vmatprep.subr.mxu0 0.0
    %2334 = vmatpush1.msra.mxu0 0.0
    %2335 = vmatprep.subr.mxu0 0.0
    %2336 = vmatpush1.msra.mxu0 0.0
    %2337 = vmatprep.subr.mxu0 0.0
    %2338 = vmatpush1.msra.mxu0 0.0
    %2339 = vmatprep.subr.mxu0 0.0
    %2340 = vmatpush1.msra.mxu0 0.0
    %2341 = vmatprep.subr.mxu0 0.0
    %2342 = vmatpush1.msra.mxu0 0.0
    %2343 = vmatprep.subr.mxu0 0.0
    %2344 = vmatpush1.msra.mxu0 0.0
    %2345 = vmatprep.subr.mxu0 0.0
    %2346 = vmatpush1.msra.mxu0 0.0
    %2347 = vmatprep.subr.mxu0 0.0
    %2348 = vmatpush1.msra.mxu0 0.0
    %2349 = vmatprep.subr.mxu0 0.0
    %2350 = vmatpush1.msra.mxu0 0.0
    %2351 = vmatprep.subr.mxu0 0.0
    %2352 = vmatpush1.msra.mxu0 0.0
    %2353 = vmatprep.subr.mxu0 0.0
    %2354 = vmatpush1.msra.mxu0 0.0
    %2355 = vmatprep.subr.mxu0 0.0
    %2356 = vmatpush1.msra.mxu0 0.0
    %2357 = vmatprep.mubr.f32.mxu0 0.0
    %2358 = vmatmul.mubr.f32.gmra.mrb[0].mxu0 %v2287
    %v2359 = vpop.f32.mrb[0].mxu0
    %v2360 = vadd.f32 %v2284, %v2359
    %v2361 = vpop.f32.mrb[0].mxu0
    %2362 = vdwg.mxu0
    %vm2363 = vcmask 17408
    %v2364 = vsel %vm2363, %v2360, -inf
    %2365 = vmax.xlane.f32.xlu0 %v2364
    %v2366 = vpop.xlane.xlu0 %2365
    %v2367 = vsub.f32 %v2360, %v2366
    %v2368 = vmul.f32 %v2367, 1.442695
    %v2369 = vpow.pop %v2368
    %v2370 = vsel %vm2363, %v2369, 0.0
    %2371 = vadd.xlane.f32.xlu0 %v2370
    %v2372 = vpop.xlane.xlu0 %2371
    %v2373 = vrcp.pop %v2372
    %v2374 = vmul.f32 %v2369, %v2373
    %2375 = vst.msk [vmem:[#allocation5] sm:$0x3] %vm2363, %v2374
    // Predicated region
    $region46: #{tpu_custom_call.1} parent=1 // pred_check
      _
    $region47: #{tpu_custom_call.1} parent=1 // pred_check_branch
      %2377 = sbr.rel (0) target = $region49
    $region48: #{tpu_custom_call.1} parent=1 // pred_region
      %s2379 = ssub.s32 32, 32
      %2380 = vsyncadd [#allocation3], %s2379
      %s2382 = sshll.u32 [#allocation5], 4
      %s2383 = int_to_ptr.vmem [resolvable:$true] %s2382
      %2385 = dma.vmem_to_hbm [thread:$0]  %s2383, 32, %s10, [#allocation3]
    $region49: #{tpu_custom_call.1} parent=1 // pred_fallthru
      _
    // Predicated region
    $region50: #{tpu_custom_call.1} parent=1 // pred_check
      _
    $region51: #{tpu_custom_call.1} parent=1 // pred_check_branch
      %2387 = sbr.rel (0) target = $region53
    $region52: #{tpu_custom_call.1} parent=1 // pred_region
      %2388 = dma.done [#allocation3], 32
    $region53: #{tpu_custom_call.1} parent=1 // pred_fallthru
      _
    %2389 = vsyncpa [#allocation3], 1
    %2390 = vsyncpa [#allocation4], 1

</llo_original>
